<compile_context>
chip_gen: v5e
topology: v5e:2x2
jax: 0.10.0
libtpu: 0.0.40
codegen_flags: <defaults>
</compile_context>

<pallas_src>
import numpy as np
import jax
import jax.numpy as jnp
from jax.experimental import pallas as pl
from jax.experimental.pallas import tpu as pltpu

LRELU_SLOPE = 0.01   # nn.LeakyReLU default
BN_EPS = 1e-5        # nn.BatchNorm1d default


# ---------------------------------------------------------------------------
# Constant 0/1 gather / scatter matrices over the length axis (built once).
# ---------------------------------------------------------------------------
def _conv_select(lin):
    """Conv1d(k=3, stride=2, pad=1): S[k, o, l] = 1  iff  l == 2*o + k - 1."""
    lout = lin // 2
    o = np.arange(lout)[:, None]
    l = np.arange(lin)[None, :]
    return np.stack([(l == 2 * o + k - 1) for k in range(3)]).astype(np.float32)


def _convT_select(lin):
    """ConvTranspose1d(k=3, s=2, p=1, out_pad=1): T[k, o, i] = 1 iff o == 2*i + k - 1."""
    lout = 2 * lin
    o = np.arange(lout)[:, None]
    i = np.arange(lin)[None, :]
    return np.stack([(o == 2 * i + k - 1) for k in range(3)]).astype(np.float32)


# ---------------------------------------------------------------------------
# Deterministic parameters with the same shapes as the PyTorch module.
# ---------------------------------------------------------------------------
def init_params(key, in_channels=1, num_classes=10, latent_dim=16,
                hidden_dims=(32, 64, 128), seq_length=32):
    keys = iter(jax.random.split(key, 64))

    def rnd(shape, scale=0.05):
        return scale * jax.random.normal(next(keys), shape, jnp.float32)

    p = {}
    p["embed_class"] = dict(w=rnd((seq_length, num_classes)), b=rnd((seq_length,)))
    p["embed_data"] = dict(w=rnd((in_channels, in_channels, 1)), b=rnd((in_channels,)))
    enc, cin = [], in_channels + 1
    for h in hidden_dims:
        enc.append(dict(w=rnd((h, cin, 3)), b=rnd((h,)),
                        gamma=1.0 + rnd((h,)), beta=rnd((h,))))
        cin = h
    p["encoder"] = enc
    flat = hidden_dims[-1] * (seq_length // 8)
    p["fc_mu"] = dict(w=rnd((latent_dim, flat)), b=rnd((latent_dim,)))
    p["fc_var"] = dict(w=rnd((latent_dim, flat)), b=rnd((latent_dim,)))
    p["decoder_input"] = dict(w=rnd((flat, latent_dim + num_classes)), b=rnd((flat,)))
    hid_rev = list(hidden_dims)[::-1]
    dec = []
    for i in range(len(hid_rev) - 1):
        dec.append(dict(w=rnd((hid_rev[i], hid_rev[i + 1], 3)), b=rnd((hid_rev[i + 1],)),
                        gamma=1.0 + rnd((hid_rev[i + 1],)), beta=rnd((hid_rev[i + 1],))))
    p["decoder"] = dec
    p["final"] = dict(w=rnd((hid_rev[-1], 1, 3)), b=rnd((1,)))
    return p


# ---------------------------------------------------------------------------
# One-time repacking of PyTorch-layout params into matmul-ready, channels-last
# layout (no per-step weight transposes / flips inside the jitted forward).
# ---------------------------------------------------------------------------
def prepare_params(raw):
    L, NC = raw["embed_class"]["w"].shape
    latent = raw["fc_mu"]["w"].shape[0]
    c_last = raw["encoder"][-1]["w"].shape[0]
    L8 = L // 8
    assert raw["embed_data"]["w"].shape == (1, 1, 1), "kernel assumes in_channels == 1"

    prep = {}
    prep["embed_class_w"] = raw["embed_class"]["w"]                      # (L, NC)
    prep["embed_class_b"] = raw["embed_class"]["b"].reshape(L, 1)        # (L, 1)
    prep["embed_data_w"] = raw["embed_data"]["w"].reshape(1, 1)
    prep["embed_data_b"] = raw["embed_data"]["b"].reshape(1, 1)

    enc, lin = [], L
    for lyr in raw["encoder"]:
        cout = lyr["w"].shape[0]
        enc.append(dict(
            S=jnp.asarray(_conv_select(lin)),                            # (3, lin//2, lin)
            W=jnp.transpose(lyr["w"], (2, 1, 0)),                        # (3, cin, cout)
            # conv bias dropped: exactly cancelled by training-mode BatchNorm.
            gamma=lyr["gamma"].reshape(1, cout),
            beta=lyr["beta"].reshape(1, cout),
        ))
        lin //= 2
    prep["encoder"] = enc

    def perm_fc(w):  # (latent, c_last*L8) -> (L8, c_last, latent), channels-last order
        return jnp.transpose(w.reshape(latent, c_last, L8), (2, 1, 0))

    prep["fc_w"] = jnp.concatenate([perm_fc(raw["fc_mu"]["w"]),
                                    perm_fc(raw["fc_var"]["w"])], axis=2)    # (L8, C, 2*latent)
    prep["fc_b"] = jnp.concatenate([raw["fc_mu"]["b"],
                                    raw["fc_var"]["b"]]).reshape(1, 2 * latent)

    wd = raw["decoder_input"]["w"]                                        # (flat, latent+NC)
    wd3 = jnp.transpose(wd.reshape(c_last, L8, latent + NC), (1, 2, 0))   # (L8, latent+NC, C)
    prep["dec_in_wz"] = wd3[:, :latent, :]                                # (L8, latent, C)
    prep["dec_in_wlab"] = wd3[:, latent:, :]                              # (L8, NC, C)
    prep["dec_in_b"] = jnp.transpose(
        raw["decoder_input"]["b"].reshape(c_last, L8), (1, 0))[:, None, :]  # (L8, 1, C)

    dec, lin = [], L8
    for lyr in raw["decoder"]:
        cout = lyr["w"].shape[1]
        dec.append(dict(
            T=jnp.asarray(_convT_select(lin)),                            # (3, 2*lin, lin)
            W=jnp.transpose(lyr["w"], (2, 0, 1)),                         # (3, cin, cout)
            gamma=lyr["gamma"].reshape(1, cout),
            beta=lyr["beta"].reshape(1, cout),
        ))
        lin *= 2
    prep["decoder"] = dec

    prep["final_T"] = jnp.asarray(_convT_select(lin))                     # (3, L, L//2)
    prep["final_W"] = jnp.transpose(raw["final"]["w"], (2, 0, 1))         # (3, cin, 1)
    prep["final_b"] = raw["final"]["b"].reshape(1, 1)
    return prep


# ---------------------------------------------------------------------------
# Fused forward pass (mirrors ConditionalVAE.forward).
# ---------------------------------------------------------------------------
def cvae_forward(prep, x, labels, eps):
    B, _, L = x.shape
    NC = labels.shape[1]
    latent = eps.shape[1]
    L8 = L // 8
    n_enc = len(prep["encoder"])
    n_dec = len(prep["decoder"])

    labels = labels.astype(jnp.float32)
    # boundary-only layout plumbing (NCL -> channels-last)
    x_nlc = jnp.transpose(x.astype(jnp.float32), (0, 2, 1))               # (B, L, 1)
    labels_1c = labels[:, None, :]                                        # (B, 1, NC)
    eps3 = eps.astype(jnp.float32)[:, None, :]                            # (B, 1, latent)

    inputs = [x_nlc, labels_1c, eps3,
              prep["embed_class_w"], prep["embed_class_b"],
              prep["embed_data_w"], prep["embed_data_b"]]
    for lyr in prep["encoder"]:
        inputs += [lyr["S"], lyr["W"], lyr["gamma"], lyr["beta"]]
    inputs += [prep["fc_w"], prep["fc_b"],
               prep["dec_in_wz"], prep["dec_in_wlab"], prep["dec_in_b"]]
    for lyr in prep["decoder"]:
        inputs += [lyr["T"], lyr["W"], lyr["gamma"], lyr["beta"]]
    inputs += [prep["final_T"], prep["final_W"], prep["final_b"]]

    def _mm(a, w):      # (B, M, K) @ (K, N) -> (B, M, N)
        return jax.lax.dot_general(a, w, (((2,), (0,)), ((), ())),
                                   preferred_element_type=jnp.float32)

    def _bmm(a, b):     # (B, M, K) @ (B, K, N) -> (B, M, N)
        return jax.lax.dot_general(a, b, (((2,), (1,)), ((0,), (0,))),
                                   preferred_element_type=jnp.float32)

    def kernel(*refs):
        refs = list(refs)
        pos = [0]

        def take(n):
            out = refs[pos[0]:pos[0] + n]
            pos[0] += n
            return out

        (x_r, lab_r, eps_r, ecw_r, ecb_r, edw_r, edb_r) = take(7)
        enc_refs = [take(4) for _ in range(n_enc)]
        (fcw_r, fcb_r, diz_r, dil_r, dib_r) = take(5)
        dec_refs = [take(4) for _ in range(n_dec)]
        (ft_r, fw_r, fb_r) = take(3)
        (xcat_o, mu_o, lv_o, rec_o) = take(4)

        def length_mix_conv(h, sel_r, w_r):
            # strided / transposed conv as   sum_k  S_k @ (h @ W_k)
            # h: (B, Lin, Cin); sel_r: (3, Lout, Lin); w_r: (3, Cin, Cout)
            lout, lin = sel_r.shape[1], sel_r.shape[2]
            y = None
            for k in range(sel_r.shape[0]):
                z = _mm(h, w_r[k])                                        # (B, Lin, Cout)
                t = _bmm(jnp.broadcast_to(sel_r[k], (B, lout, lin)), z)   # (B, Lout, Cout)
                y = t if y is None else y + t
            return y

        def bn_lrelu(y, g_r, b_r):
            # training-mode BatchNorm1d (stats over batch*length, per channel)
            n = y.shape[0] * y.shape[1]
            s = jnp.sum(jnp.sum(y, axis=1, keepdims=True), axis=0, keepdims=True)
            mean = s * (1.0 / n)
            yc = y - mean
            s2 = jnp.sum(jnp.sum(yc * yc, axis=1, keepdims=True), axis=0, keepdims=True)
            scale = g_r[...] * jax.lax.rsqrt(s2 * (1.0 / n) + BN_EPS)      # (1, 1, C)
            yn = yc * scale + b_r[...]
            return jnp.where(yn > 0, yn, LRELU_SLOPE * yn)                # LeakyReLU

        # ---- embed_data (1x1x1 conv == scale + shift) and embed_class (Linear)
        emb_x = x_r[...] * edw_r[...] + edb_r[...]                         # (B, L, 1)
        emb_c = jnp.sum(ecw_r[...] * lab_r[...], axis=2, keepdims=True) \
            + ecb_r[...]                                                   # (B, L, 1)
        lane = jax.lax.broadcasted_iota(jnp.int32, (1, 1, 2), 2)
        h = jnp.where(lane == 0, emb_x, emb_c)                             # (B, L, 2)
        xcat_o[...] = h

        # ---- encoder: 3 x (Conv1d k3 s2 p1 -> BN(train) -> LeakyReLU) ----
        for s_r, w_r, g_r, b_r in enc_refs:
            h = bn_lrelu(length_mix_conv(h, s_r, w_r), g_r, b_r)

        # ---- flatten + fused fc_mu | fc_var (weight columns pre-permuted) ----
        mv = None
        for l in range(L8):
            t = _mm(h[:, l:l + 1, :], fcw_r[l])                            # (B, 1, 2*latent)
            mv = t if mv is None else mv + t
        mv = mv + fcb_r[...]
        mu, lv = mv[:, :, :latent], mv[:, :, latent:]
        mu_o[...] = mu
        lv_o[...] = lv

        # ---- reparameterize:  z = eps * exp(0.5*logvar) + mu ----
        z = eps_r[...] * jnp.exp(0.5 * lv) + mu                            # (B, 1, latent)

        # ---- decoder_input([z | labels]) -> (B, L8, C_last), no concat needed
        d = None
        for l in range(L8):
            dl = _mm(z, diz_r[l]) + _mm(lab_r[...], dil_r[l]) + dib_r[l]   # (B, 1, C)
            row = jax.lax.broadcasted_iota(jnp.int32, (1, L8, 1), 1)
            dl = jnp.where(row == l, dl, 0.0)                              # place at length l
            d = dl if d is None else d + dl

        # ---- decoder: 2 x (ConvTranspose1d -> BN(train) -> LeakyReLU) ----
        for s_r, w_r, g_r, b_r in dec_refs:
            d = bn_lrelu(length_mix_conv(d, s_r, w_r), g_r, b_r)

        # ---- final ConvTranspose1d (bias, no BN / activation) ----
        rec_o[...] = length_mix_conv(d, ft_r, fw_r) + fb_r[...]            # (B, L, 1)

    vmem = pl.BlockSpec(memory_space=pltpu.MemorySpace.VMEM)
    xcat_nlc, mu3, lv3, rec_nlc = pl.pallas_call(
        kernel,
        out_shape=(jax.ShapeDtypeStruct((B, L, 2), jnp.float32),
                   jax.ShapeDtypeStruct((B, 1, latent), jnp.float32),
                   jax.ShapeDtypeStruct((B, 1, latent), jnp.float32),
                   jax.ShapeDtypeStruct((B, L, 1), jnp.float32)),
        in_specs=[vmem] * len(inputs),
        out_specs=(vmem, vmem, vmem, vmem),
    )(*inputs)

    # boundary-only layout plumbing back to the PyTorch NCL convention
    recons = jnp.transpose(rec_nlc, (0, 2, 1))                             # (B, 1, L)
    xcat = jnp.transpose(xcat_nlc, (0, 2, 1))                              # (B, 2, L)
    return recons, xcat, mu3[:, 0, :], lv3[:, 0, :]


# ---------------------------------------------------------------------------
# Pure-JAX/XLA reference (no Pallas) mirroring the PyTorch module exactly.
# ---------------------------------------------------------------------------
def cvae_reference(raw, x, labels, eps):
    hp = jax.lax.Precision.HIGHEST
    B, _, L = x.shape
    labels = labels.astype(jnp.float32)
    dn = ("NCH", "OIH", "NCH")

    def mm(a, b):
        return jnp.matmul(a, b, precision=hp)

    def conv(x_, w, stride, pad, lhs_dil=1):
        return jax.lax.conv_general_dilated(x_, w, (stride,), [pad],
                                            lhs_dilation=(lhs_dil,),
                                            dimension_numbers=dn, precision=hp)

    def bn_lrelu(y, gamma, beta):
        mean = jnp.mean(y, axis=(0, 2), keepdims=True)
        var = jnp.mean((y - mean) ** 2, axis=(0, 2), keepdims=True)
        yn = (y - mean) * jax.lax.rsqrt(var + BN_EPS)
        yn = yn * gamma[None, :, None] + beta[None, :, None]
        return jnp.where(yn > 0, yn, LRELU_SLOPE * yn)

    emb_c = (mm(labels, raw["embed_class"]["w"].T) + raw["embed_class"]["b"])[:, None, :]
    emb_x = conv(x, raw["embed_data"]["w"], 1, (0, 0)) + raw["embed_data"]["b"][None, :, None]
    xcat = jnp.concatenate([emb_x, emb_c], axis=1)
    h = xcat
    for lyr in raw["encoder"]:
        h = bn_lrelu(conv(h, lyr["w"], 2, (1, 1)) + lyr["b"][None, :, None],
                     lyr["gamma"], lyr["beta"])
    flat = h.reshape(B, -1)
    mu = mm(flat, raw["fc_mu"]["w"].T) + raw["fc_mu"]["b"]
    lv = mm(flat, raw["fc_var"]["w"].T) + raw["fc_var"]["b"]
    z = eps * jnp.exp(0.5 * lv) + mu
    zc = jnp.concatenate([z, labels], axis=1)
    d = (mm(zc, raw["decoder_input"]["w"].T) + raw["decoder_input"]["b"]).reshape(B, -1, L // 8)

    def convT(x_, w, b):
        wflip = jnp.flip(jnp.transpose(w, (1, 0, 2)), axis=2)
        return conv(x_, wflip, 1, (1, 2), lhs_dil=2) + b[None, :, None]

    for lyr in raw["decoder"]:
        d = bn_lrelu(convT(d, lyr["w"], lyr["b"]), lyr["gamma"], lyr["beta"])
    recons = convT(d, raw["final"]["w"], raw["final"]["b"])
    return recons, xcat, mu, lv


if __name__ == "__main__":
    key = jax.random.PRNGKey(0)
    k_param, k_x, k_lab, k_eps = jax.random.split(key, 4)

    B, Cin, NC, latent, L = 2, 1, 10, 16, 32
    raw = init_params(k_param, in_channels=Cin, num_classes=NC,
                      latent_dim=latent, hidden_dims=(32, 64, 128), seq_length=L)
    prep = prepare_params(raw)

    x = jax.random.normal(k_x, (B, Cin, L), jnp.float32)
    labels = jax.nn.one_hot(jax.random.randint(k_lab, (B,), 0, NC), NC, dtype=jnp.float32)
    eps = jax.random.normal(k_eps, (B, latent), jnp.float32)   # torch.randn_like stand-in

    fwd = jax.jit(cvae_forward)
    recons, xcat, mu, log_var = fwd(prep, x, labels, eps)
    jax.block_until_ready((recons, xcat, mu, log_var))

    assert recons.shape == (B, 1, L)
    assert xcat.shape == (B, Cin + 1, L)
    assert mu.shape == (B, latent)
    assert log_var.shape == (B, latent)
    assert bool(jnp.all(jnp.isfinite(recons)))

    # Cross-check the fused kernel against the pure-XLA reference of the module.
    ref = jax.jit(cvae_reference)(raw, x, labels, eps)
    for got, want, name in zip((recons, xcat, mu, log_var), ref,
                               ("recons", "xcat", "mu", "log_var")):
        err = float(jnp.max(jnp.abs(got - want)))
        assert err < 5e-2, f"{name} mismatch vs reference: max|diff|={err}"

    print("KERNEL_OK")
</pallas_src>

<mosaic_0001>
module attributes {stable_mosaic.version = 11 : i64} {
  func.func @kernel(%arg0: memref<2x32x1xf32, #tpu.memory_space<vmem>>, %arg1: memref<2x1x10xf32, #tpu.memory_space<vmem>>, %arg2: memref<2x1x16xf32, #tpu.memory_space<vmem>>, %arg3: memref<32x10xf32, #tpu.memory_space<vmem>>, %arg4: memref<32x1xf32, #tpu.memory_space<vmem>>, %arg5: memref<1x1xf32, #tpu.memory_space<vmem>>, %arg6: memref<1x1xf32, #tpu.memory_space<vmem>>, %arg7: memref<3x16x32xf32, #tpu.memory_space<vmem>>, %arg8: memref<3x2x32xf32, #tpu.memory_space<vmem>>, %arg9: memref<1x32xf32, #tpu.memory_space<vmem>>, %arg10: memref<1x32xf32, #tpu.memory_space<vmem>>, %arg11: memref<3x8x16xf32, #tpu.memory_space<vmem>>, %arg12: memref<3x32x64xf32, #tpu.memory_space<vmem>>, %arg13: memref<1x64xf32, #tpu.memory_space<vmem>>, %arg14: memref<1x64xf32, #tpu.memory_space<vmem>>, %arg15: memref<3x4x8xf32, #tpu.memory_space<vmem>>, %arg16: memref<3x64x128xf32, #tpu.memory_space<vmem>>, %arg17: memref<1x128xf32, #tpu.memory_space<vmem>>, %arg18: memref<1x128xf32, #tpu.memory_space<vmem>>, %arg19: memref<4x128x32xf32, #tpu.memory_space<vmem>>, %arg20: memref<1x32xf32, #tpu.memory_space<vmem>>, %arg21: memref<4x16x128xf32, #tpu.memory_space<vmem>>, %arg22: memref<4x10x128xf32, #tpu.memory_space<vmem>>, %arg23: memref<4x1x128xf32, #tpu.memory_space<vmem>>, %arg24: memref<3x8x4xf32, #tpu.memory_space<vmem>>, %arg25: memref<3x128x64xf32, #tpu.memory_space<vmem>>, %arg26: memref<1x64xf32, #tpu.memory_space<vmem>>, %arg27: memref<1x64xf32, #tpu.memory_space<vmem>>, %arg28: memref<3x16x8xf32, #tpu.memory_space<vmem>>, %arg29: memref<3x64x32xf32, #tpu.memory_space<vmem>>, %arg30: memref<1x32xf32, #tpu.memory_space<vmem>>, %arg31: memref<1x32xf32, #tpu.memory_space<vmem>>, %arg32: memref<3x32x16xf32, #tpu.memory_space<vmem>>, %arg33: memref<3x32x1xf32, #tpu.memory_space<vmem>>, %arg34: memref<1x1xf32, #tpu.memory_space<vmem>>, %arg35: memref<2x32x2xf32, #tpu.memory_space<vmem>>, %arg36: memref<2x1x16xf32, #tpu.memory_space<vmem>>, %arg37: memref<2x1x16xf32, #tpu.memory_space<vmem>>, %arg38: memref<2x32x1xf32, #tpu.memory_space<vmem>>) attributes {dimension_semantics = [], scalar_prefetch = 0 : i64, scratch_operands = 0 : i64, tpu.core_type = #tpu.core_type<tc>} {
    %c0 = arith.constant 0 : index
    %c0_0 = arith.constant 0 : index
    %c0_1 = arith.constant 0 : index
    %0 = vector.load %arg0[%c0, %c0_0, %c0_1] : memref<2x32x1xf32, #tpu.memory_space<vmem>>, vector<2x32x1xf32>
    %c0_2 = arith.constant 0 : index
    %c0_3 = arith.constant 0 : index
    %1 = vector.load %arg5[%c0_2, %c0_3] : memref<1x1xf32, #tpu.memory_space<vmem>>, vector<1x1xf32>
    %2 = vector.shape_cast %1 : vector<1x1xf32> to vector<1x1x1xf32>
    %3 = vector.broadcast %2 : vector<1x1x1xf32> to vector<2x32x1xf32>
    %4 = arith.mulf %0, %3 : vector<2x32x1xf32>
    %c0_4 = arith.constant 0 : index
    %c0_5 = arith.constant 0 : index
    %5 = vector.load %arg6[%c0_4, %c0_5] : memref<1x1xf32, #tpu.memory_space<vmem>>, vector<1x1xf32>
    %6 = vector.shape_cast %5 : vector<1x1xf32> to vector<1x1x1xf32>
    %7 = vector.broadcast %6 : vector<1x1x1xf32> to vector<2x32x1xf32>
    %8 = arith.addf %4, %7 : vector<2x32x1xf32>
    %c0_6 = arith.constant 0 : index
    %c0_7 = arith.constant 0 : index
    %9 = vector.load %arg3[%c0_6, %c0_7] : memref<32x10xf32, #tpu.memory_space<vmem>>, vector<32x10xf32>
    %c0_8 = arith.constant 0 : index
    %c0_9 = arith.constant 0 : index
    %c0_10 = arith.constant 0 : index
    %10 = vector.load %arg1[%c0_8, %c0_9, %c0_10] : memref<2x1x10xf32, #tpu.memory_space<vmem>>, vector<2x1x10xf32>
    %11 = vector.shape_cast %9 : vector<32x10xf32> to vector<1x32x10xf32>
    %12 = vector.broadcast %11 : vector<1x32x10xf32> to vector<2x32x10xf32>
    %13 = vector.broadcast %10 : vector<2x1x10xf32> to vector<2x32x10xf32>
    %14 = arith.mulf %12, %13 : vector<2x32x10xf32>
    %cst = arith.constant dense<0.000000e+00> : vector<2x32xf32>
    %15 = vector.multi_reduction <add>, %14, %cst [2] : vector<2x32x10xf32> to vector<2x32xf32>
    %16 = vector.shape_cast %15 : vector<2x32xf32> to vector<2x32x1xf32>
    %c0_11 = arith.constant 0 : index
    %c0_12 = arith.constant 0 : index
    %17 = vector.load %arg4[%c0_11, %c0_12] : memref<32x1xf32, #tpu.memory_space<vmem>>, vector<32x1xf32>
    %18 = vector.shape_cast %17 : vector<32x1xf32> to vector<1x32x1xf32>
    %19 = vector.broadcast %18 : vector<1x32x1xf32> to vector<2x32x1xf32>
    %20 = arith.addf %16, %19 : vector<2x32x1xf32>
    %21 = tpu.iota {dimensions = array<i32: 2>} : vector<1x1x2xi32>
    %c0_i32 = arith.constant 0 : i32
    %22 = vector.broadcast %c0_i32 : i32 to vector<1x1x2xi32>
    %23 = arith.cmpi eq, %21, %22 : vector<1x1x2xi32>
    %24 = vector.shape_cast %23 : vector<1x1x2xi1> to vector<1x1x2xi1>
    %25 = vector.broadcast %24 : vector<1x1x2xi1> to vector<2x32x2xi1>
    %26 = vector.shape_cast %8 : vector<2x32x1xf32> to vector<2x32x1xf32>
    %27 = vector.broadcast %26 : vector<2x32x1xf32> to vector<2x32x2xf32>
    %28 = vector.shape_cast %20 : vector<2x32x1xf32> to vector<2x32x1xf32>
    %29 = vector.broadcast %28 : vector<2x32x1xf32> to vector<2x32x2xf32>
    %30 = arith.select %25, %27, %29 : vector<2x32x2xi1>, vector<2x32x2xf32>
    %c0_13 = arith.constant 0 : index
    %c0_14 = arith.constant 0 : index
    %c0_15 = arith.constant 0 : index
    %31 = vector.load %arg35[%c0_13, %c0_14, %c0_15] : memref<2x32x2xf32, #tpu.memory_space<vmem>>, vector<2x32x2xf32>
    tpu.vector_store %arg35[%c0_13, %c0_14, %c0_15], %30 {strides = array<i32>} : memref<2x32x2xf32, #tpu.memory_space<vmem>>, vector<2x32x2xf32>,
    %c0_16 = arith.constant 0 : index
    %c0_17 = arith.constant 0 : index
    %c0_18 = arith.constant 0 : index
    %32 = vector.load %arg8[%c0_16, %c0_17, %c0_18] : memref<3x2x32xf32, #tpu.memory_space<vmem>>, vector<1x2x32xf32>
    %33 = vector.shape_cast %32 : vector<1x2x32xf32> to vector<2x32xf32>
    %cst_19 = arith.constant dense<0.000000e+00> : vector<2x32x32xf32>
    %34 = tpu.matmul %30, %33, %cst_19 {dimension_numbers = #tpu.dot_dimension_numbers<[2], [0], [0, 1], [1], [0, 0, 0, 1, 1, 1], [], []>} : vector<2x32x2xf32>, vector<2x32xf32>, vector<2x32x32xf32> -> vector<2x32x32xf32>
    %c0_20 = arith.constant 0 : index
    %c0_21 = arith.constant 0 : index
    %c0_22 = arith.constant 0 : index
    %35 = vector.load %arg7[%c0_20, %c0_21, %c0_22] : memref<3x16x32xf32, #tpu.memory_space<vmem>>, vector<1x16x32xf32>
    %36 = vector.shape_cast %35 : vector<1x16x32xf32> to vector<16x32xf32>
    %37 = vector.shape_cast %36 : vector<16x32xf32> to vector<1x16x32xf32>
    %38 = vector.broadcast %37 : vector<1x16x32xf32> to vector<2x16x32xf32>
    %cst_23 = arith.constant dense<0.000000e+00> : vector<2x16x32xf32>
    %39 = tpu.matmul %38, %34, %cst_23 {dimension_numbers = #tpu.dot_dimension_numbers<[2], [1], [1], [2], [0, 0, 0, 1, 1, 2], [0], [0]>} : vector<2x16x32xf32>, vector<2x32x32xf32>, vector<2x16x32xf32> -> vector<2x16x32xf32>
    %c1 = arith.constant 1 : index
    %c0_24 = arith.constant 0 : index
    %c0_25 = arith.constant 0 : index
    %40 = vector.load %arg8[%c1, %c0_24, %c0_25] : memref<3x2x32xf32, #tpu.memory_space<vmem>>, vector<1x2x32xf32>
    %41 = vector.shape_cast %40 : vector<1x2x32xf32> to vector<2x32xf32>
    %cst_26 = arith.constant dense<0.000000e+00> : vector<2x32x32xf32>
    %42 = tpu.matmul %30, %41, %cst_26 {dimension_numbers = #tpu.dot_dimension_numbers<[2], [0], [0, 1], [1], [0, 0, 0, 1, 1, 1], [], []>} : vector<2x32x2xf32>, vector<2x32xf32>, vector<2x32x32xf32> -> vector<2x32x32xf32>
    %c1_27 = arith.constant 1 : index
    %c0_28 = arith.constant 0 : index
    %c0_29 = arith.constant 0 : index
    %43 = vector.load %arg7[%c1_27, %c0_28, %c0_29] : memref<3x16x32xf32, #tpu.memory_space<vmem>>, vector<1x16x32xf32>
    %44 = vector.shape_cast %43 : vector<1x16x32xf32> to vector<16x32xf32>
    %45 = vector.shape_cast %44 : vector<16x32xf32> to vector<1x16x32xf32>
    %46 = vector.broadcast %45 : vector<1x16x32xf32> to vector<2x16x32xf32>
    %cst_30 = arith.constant dense<0.000000e+00> : vector<2x16x32xf32>
    %47 = tpu.matmul %46, %42, %cst_30 {dimension_numbers = #tpu.dot_dimension_numbers<[2], [1], [1], [2], [0, 0, 0, 1, 1, 2], [0], [0]>} : vector<2x16x32xf32>, vector<2x32x32xf32>, vector<2x16x32xf32> -> vector<2x16x32xf32>
    %48 = arith.addf %39, %47 : vector<2x16x32xf32>
    %c2 = arith.constant 2 : index
    %c0_31 = arith.constant 0 : index
    %c0_32 = arith.constant 0 : index
    %49 = vector.load %arg8[%c2, %c0_31, %c0_32] : memref<3x2x32xf32, #tpu.memory_space<vmem>>, vector<1x2x32xf32>
    %50 = vector.shape_cast %49 : vector<1x2x32xf32> to vector<2x32xf32>
    %cst_33 = arith.constant dense<0.000000e+00> : vector<2x32x32xf32>
    %51 = tpu.matmul %30, %50, %cst_33 {dimension_numbers = #tpu.dot_dimension_numbers<[2], [0], [0, 1], [1], [0, 0, 0, 1, 1, 1], [], []>} : vector<2x32x2xf32>, vector<2x32xf32>, vector<2x32x32xf32> -> vector<2x32x32xf32>
    %c2_34 = arith.constant 2 : index
    %c0_35 = arith.constant 0 : index
    %c0_36 = arith.constant 0 : index
    %52 = vector.load %arg7[%c2_34, %c0_35, %c0_36] : memref<3x16x32xf32, #tpu.memory_space<vmem>>, vector<1x16x32xf32>
    %53 = vector.shape_cast %52 : vector<1x16x32xf32> to vector<16x32xf32>
    %54 = vector.shape_cast %53 : vector<16x32xf32> to vector<1x16x32xf32>
    %55 = vector.broadcast %54 : vector<1x16x32xf32> to vector<2x16x32xf32>
    %cst_37 = arith.constant dense<0.000000e+00> : vector<2x16x32xf32>
    %56 = tpu.matmul %55, %51, %cst_37 {dimension_numbers = #tpu.dot_dimension_numbers<[2], [1], [1], [2], [0, 0, 0, 1, 1, 2], [0], [0]>} : vector<2x16x32xf32>, vector<2x32x32xf32>, vector<2x16x32xf32> -> vector<2x16x32xf32>
    %57 = arith.addf %48, %56 : vector<2x16x32xf32>
    %cst_38 = arith.constant dense<0.000000e+00> : vector<2x32xf32>
    %58 = vector.multi_reduction <add>, %57, %cst_38 [1] : vector<2x16x32xf32> to vector<2x32xf32>
    %59 = vector.shape_cast %58 : vector<2x32xf32> to vector<2x1x32xf32>
    %cst_39 = arith.constant dense<0.000000e+00> : vector<1x32xf32>
    %60 = vector.multi_reduction <add>, %59, %cst_39 [0] : vector<2x1x32xf32> to vector<1x32xf32>
    %61 = vector.shape_cast %60 : vector<1x32xf32> to vector<1x1x32xf32>
    %cst_40 = arith.constant 3.125000e-02 : f32
    %62 = vector.broadcast %cst_40 : f32 to vector<1x1x32xf32>
    %63 = arith.mulf %61, %62 : vector<1x1x32xf32>
    %64 = vector.broadcast %63 : vector<1x1x32xf32> to vector<2x16x32xf32>
    %65 = arith.subf %57, %64 : vector<2x16x32xf32>
    %66 = arith.mulf %65, %65 : vector<2x16x32xf32>
    %cst_41 = arith.constant dense<0.000000e+00> : vector<2x32xf32>
    %67 = vector.multi_reduction <add>, %66, %cst_41 [1] : vector<2x16x32xf32> to vector<2x32xf32>
    %68 = vector.shape_cast %67 : vector<2x32xf32> to vector<2x1x32xf32>
    %cst_42 = arith.constant dense<0.000000e+00> : vector<1x32xf32>
    %69 = vector.multi_reduction <add>, %68, %cst_42 [0] : vector<2x1x32xf32> to vector<1x32xf32>
    %70 = vector.shape_cast %69 : vector<1x32xf32> to vector<1x1x32xf32>
    %c0_43 = arith.constant 0 : index
    %c0_44 = arith.constant 0 : index
    %71 = vector.load %arg9[%c0_43, %c0_44] : memref<1x32xf32, #tpu.memory_space<vmem>>, vector<1x32xf32>
    %cst_45 = arith.constant 3.125000e-02 : f32
    %72 = vector.broadcast %cst_45 : f32 to vector<1x1x32xf32>
    %73 = arith.mulf %70, %72 : vector<1x1x32xf32>
    %cst_46 = arith.constant 9.99999974E-6 : f32
    %74 = vector.broadcast %cst_46 : f32 to vector<1x1x32xf32>
    %75 = arith.addf %73, %74 : vector<1x1x32xf32>
    %76 = math.rsqrt %75 : vector<1x1x32xf32>
    %77 = vector.shape_cast %71 : vector<1x32xf32> to vector<1x1x32xf32>
    %78 = arith.mulf %77, %76 : vector<1x1x32xf32>
    %79 = vector.broadcast %78 : vector<1x1x32xf32> to vector<2x16x32xf32>
    %80 = arith.mulf %65, %79 : vector<2x16x32xf32>
    %c0_47 = arith.constant 0 : index
    %c0_48 = arith.constant 0 : index
    %81 = vector.load %arg10[%c0_47, %c0_48] : memref<1x32xf32, #tpu.memory_space<vmem>>, vector<1x32xf32>
    %82 = vector.shape_cast %81 : vector<1x32xf32> to vector<1x1x32xf32>
    %83 = vector.broadcast %82 : vector<1x1x32xf32> to vector<2x16x32xf32>
    %84 = arith.addf %80, %83 : vector<2x16x32xf32>
    %cst_49 = arith.constant 0.000000e+00 : f32
    %85 = vector.broadcast %cst_49 : f32 to vector<2x16x32xf32>
    %86 = arith.cmpf ogt, %84, %85 : vector<2x16x32xf32>
    %cst_50 = arith.constant 0.00999999977 : f32
    %87 = vector.broadcast %cst_50 : f32 to vector<2x16x32xf32>
    %88 = arith.mulf %87, %84 : vector<2x16x32xf32>
    %89 = arith.select %86, %84, %88 : vector<2x16x32xi1>, vector<2x16x32xf32>
    %c0_51 = arith.constant 0 : index
    %c0_52 = arith.constant 0 : index
    %c0_53 = arith.constant 0 : index
    %90 = vector.load %arg12[%c0_51, %c0_52, %c0_53] : memref<3x32x64xf32, #tpu.memory_space<vmem>>, vector<1x32x64xf32>
    %91 = vector.shape_cast %90 : vector<1x32x64xf32> to vector<32x64xf32>
    %cst_54 = arith.constant dense<0.000000e+00> : vector<2x16x64xf32>
    %92 = tpu.matmul %89, %91, %cst_54 {dimension_numbers = #tpu.dot_dimension_numbers<[2], [0], [0, 1], [1], [0, 0, 0, 1, 1, 1], [], []>} : vector<2x16x32xf32>, vector<32x64xf32>, vector<2x16x64xf32> -> vector<2x16x64xf32>
    %c0_55 = arith.constant 0 : index
    %c0_56 = arith.constant 0 : index
    %c0_57 = arith.constant 0 : index
    %93 = vector.load %arg11[%c0_55, %c0_56, %c0_57] : memref<3x8x16xf32, #tpu.memory_space<vmem>>, vector<1x8x16xf32>
    %94 = vector.shape_cast %93 : vector<1x8x16xf32> to vector<8x16xf32>
    %95 = vector.shape_cast %94 : vector<8x16xf32> to vector<1x8x16xf32>
    %96 = vector.broadcast %95 : vector<1x8x16xf32> to vector<2x8x16xf32>
    %cst_58 = arith.constant dense<0.000000e+00> : vector<2x8x64xf32>
    %97 = tpu.matmul %96, %92, %cst_58 {dimension_numbers = #tpu.dot_dimension_numbers<[2], [1], [1], [2], [0, 0, 0, 1, 1, 2], [0], [0]>} : vector<2x8x16xf32>, vector<2x16x64xf32>, vector<2x8x64xf32> -> vector<2x8x64xf32>
    %c1_59 = arith.constant 1 : index
    %c0_60 = arith.constant 0 : index
    %c0_61 = arith.constant 0 : index
    %98 = vector.load %arg12[%c1_59, %c0_60, %c0_61] : memref<3x32x64xf32, #tpu.memory_space<vmem>>, vector<1x32x64xf32>
    %99 = vector.shape_cast %98 : vector<1x32x64xf32> to vector<32x64xf32>
    %cst_62 = arith.constant dense<0.000000e+00> : vector<2x16x64xf32>
    %100 = tpu.matmul %89, %99, %cst_62 {dimension_numbers = #tpu.dot_dimension_numbers<[2], [0], [0, 1], [1], [0, 0, 0, 1, 1, 1], [], []>} : vector<2x16x32xf32>, vector<32x64xf32>, vector<2x16x64xf32> -> vector<2x16x64xf32>
    %c1_63 = arith.constant 1 : index
    %c0_64 = arith.constant 0 : index
    %c0_65 = arith.constant 0 : index
    %101 = vector.load %arg11[%c1_63, %c0_64, %c0_65] : memref<3x8x16xf32, #tpu.memory_space<vmem>>, vector<1x8x16xf32>
    %102 = vector.shape_cast %101 : vector<1x8x16xf32> to vector<8x16xf32>
    %103 = vector.shape_cast %102 : vector<8x16xf32> to vector<1x8x16xf32>
    %104 = vector.broadcast %103 : vector<1x8x16xf32> to vector<2x8x16xf32>
    %cst_66 = arith.constant dense<0.000000e+00> : vector<2x8x64xf32>
    %105 = tpu.matmul %104, %100, %cst_66 {dimension_numbers = #tpu.dot_dimension_numbers<[2], [1], [1], [2], [0, 0, 0, 1, 1, 2], [0], [0]>} : vector<2x8x16xf32>, vector<2x16x64xf32>, vector<2x8x64xf32> -> vector<2x8x64xf32>
    %106 = arith.addf %97, %105 : vector<2x8x64xf32>
    %c2_67 = arith.constant 2 : index
    %c0_68 = arith.constant 0 : index
    %c0_69 = arith.constant 0 : index
    %107 = vector.load %arg12[%c2_67, %c0_68, %c0_69] : memref<3x32x64xf32, #tpu.memory_space<vmem>>, vector<1x32x64xf32>
    %108 = vector.shape_cast %107 : vector<1x32x64xf32> to vector<32x64xf32>
    %cst_70 = arith.constant dense<0.000000e+00> : vector<2x16x64xf32>
    %109 = tpu.matmul %89, %108, %cst_70 {dimension_numbers = #tpu.dot_dimension_numbers<[2], [0], [0, 1], [1], [0, 0, 0, 1, 1, 1], [], []>} : vector<2x16x32xf32>, vector<32x64xf32>, vector<2x16x64xf32> -> vector<2x16x64xf32>
    %c2_71 = arith.constant 2 : index
    %c0_72 = arith.constant 0 : index
    %c0_73 = arith.constant 0 : index
    %110 = vector.load %arg11[%c2_71, %c0_72, %c0_73] : memref<3x8x16xf32, #tpu.memory_space<vmem>>, vector<1x8x16xf32>
    %111 = vector.shape_cast %110 : vector<1x8x16xf32> to vector<8x16xf32>
    %112 = vector.shape_cast %111 : vector<8x16xf32> to vector<1x8x16xf32>
    %113 = vector.broadcast %112 : vector<1x8x16xf32> to vector<2x8x16xf32>
    %cst_74 = arith.constant dense<0.000000e+00> : vector<2x8x64xf32>
    %114 = tpu.matmul %113, %109, %cst_74 {dimension_numbers = #tpu.dot_dimension_numbers<[2], [1], [1], [2], [0, 0, 0, 1, 1, 2], [0], [0]>} : vector<2x8x16xf32>, vector<2x16x64xf32>, vector<2x8x64xf32> -> vector<2x8x64xf32>
    %115 = arith.addf %106, %114 : vector<2x8x64xf32>
    %cst_75 = arith.constant dense<0.000000e+00> : vector<2x64xf32>
    %116 = vector.multi_reduction <add>, %115, %cst_75 [1] : vector<2x8x64xf32> to vector<2x64xf32>
    %117 = vector.shape_cast %116 : vector<2x64xf32> to vector<2x1x64xf32>
    %cst_76 = arith.constant dense<0.000000e+00> : vector<1x64xf32>
    %118 = vector.multi_reduction <add>, %117, %cst_76 [0] : vector<2x1x64xf32> to vector<1x64xf32>
    %119 = vector.shape_cast %118 : vector<1x64xf32> to vector<1x1x64xf32>
    %cst_77 = arith.constant 6.250000e-02 : f32
    %120 = vector.broadcast %cst_77 : f32 to vector<1x1x64xf32>
    %121 = arith.mulf %119, %120 : vector<1x1x64xf32>
    %122 = vector.broadcast %121 : vector<1x1x64xf32> to vector<2x8x64xf32>
    %123 = arith.subf %115, %122 : vector<2x8x64xf32>
    %124 = arith.mulf %123, %123 : vector<2x8x64xf32>
    %cst_78 = arith.constant dense<0.000000e+00> : vector<2x64xf32>
    %125 = vector.multi_reduction <add>, %124, %cst_78 [1] : vector<2x8x64xf32> to vector<2x64xf32>
    %126 = vector.shape_cast %125 : vector<2x64xf32> to vector<2x1x64xf32>
    %cst_79 = arith.constant dense<0.000000e+00> : vector<1x64xf32>
    %127 = vector.multi_reduction <add>, %126, %cst_79 [0] : vector<2x1x64xf32> to vector<1x64xf32>
    %128 = vector.shape_cast %127 : vector<1x64xf32> to vector<1x1x64xf32>
    %c0_80 = arith.constant 0 : index
    %c0_81 = arith.constant 0 : index
    %129 = vector.load %arg13[%c0_80, %c0_81] : memref<1x64xf32, #tpu.memory_space<vmem>>, vector<1x64xf32>
    %cst_82 = arith.constant 6.250000e-02 : f32
    %130 = vector.broadcast %cst_82 : f32 to vector<1x1x64xf32>
    %131 = arith.mulf %128, %130 : vector<1x1x64xf32>
    %cst_83 = arith.constant 9.99999974E-6 : f32
    %132 = vector.broadcast %cst_83 : f32 to vector<1x1x64xf32>
    %133 = arith.addf %131, %132 : vector<1x1x64xf32>
    %134 = math.rsqrt %133 : vector<1x1x64xf32>
    %135 = vector.shape_cast %129 : vector<1x64xf32> to vector<1x1x64xf32>
    %136 = arith.mulf %135, %134 : vector<1x1x64xf32>
    %137 = vector.broadcast %136 : vector<1x1x64xf32> to vector<2x8x64xf32>
    %138 = arith.mulf %123, %137 : vector<2x8x64xf32>
    %c0_84 = arith.constant 0 : index
    %c0_85 = arith.constant 0 : index
    %139 = vector.load %arg14[%c0_84, %c0_85] : memref<1x64xf32, #tpu.memory_space<vmem>>, vector<1x64xf32>
    %140 = vector.shape_cast %139 : vector<1x64xf32> to vector<1x1x64xf32>
    %141 = vector.broadcast %140 : vector<1x1x64xf32> to vector<2x8x64xf32>
    %142 = arith.addf %138, %141 : vector<2x8x64xf32>
    %cst_86 = arith.constant 0.000000e+00 : f32
    %143 = vector.broadcast %cst_86 : f32 to vector<2x8x64xf32>
    %144 = arith.cmpf ogt, %142, %143 : vector<2x8x64xf32>
    %cst_87 = arith.constant 0.00999999977 : f32
    %145 = vector.broadcast %cst_87 : f32 to vector<2x8x64xf32>
    %146 = arith.mulf %145, %142 : vector<2x8x64xf32>
    %147 = arith.select %144, %142, %146 : vector<2x8x64xi1>, vector<2x8x64xf32>
    %c0_88 = arith.constant 0 : index
    %c0_89 = arith.constant 0 : index
    %c0_90 = arith.constant 0 : index
    %148 = vector.load %arg16[%c0_88, %c0_89, %c0_90] : memref<3x64x128xf32, #tpu.memory_space<vmem>>, vector<1x64x128xf32>
    %149 = vector.shape_cast %148 : vector<1x64x128xf32> to vector<64x128xf32>
    %cst_91 = arith.constant dense<0.000000e+00> : vector<2x8x128xf32>
    %150 = tpu.matmul %147, %149, %cst_91 {dimension_numbers = #tpu.dot_dimension_numbers<[2], [0], [0, 1], [1], [0, 0, 0, 1, 1, 1], [], []>} : vector<2x8x64xf32>, vector<64x128xf32>, vector<2x8x128xf32> -> vector<2x8x128xf32>
    %c0_92 = arith.constant 0 : index
    %c0_93 = arith.constant 0 : index
    %c0_94 = arith.constant 0 : index
    %151 = vector.load %arg15[%c0_92, %c0_93, %c0_94] : memref<3x4x8xf32, #tpu.memory_space<vmem>>, vector<1x4x8xf32>
    %152 = vector.shape_cast %151 : vector<1x4x8xf32> to vector<4x8xf32>
    %153 = vector.shape_cast %152 : vector<4x8xf32> to vector<1x4x8xf32>
    %154 = vector.broadcast %153 : vector<1x4x8xf32> to vector<2x4x8xf32>
    %cst_95 = arith.constant dense<0.000000e+00> : vector<2x4x128xf32>
    %155 = tpu.matmul %154, %150, %cst_95 {dimension_numbers = #tpu.dot_dimension_numbers<[2], [1], [1], [2], [0, 0, 0, 1, 1, 2], [0], [0]>} : vector<2x4x8xf32>, vector<2x8x128xf32>, vector<2x4x128xf32> -> vector<2x4x128xf32>
    %c1_96 = arith.constant 1 : index
    %c0_97 = arith.constant 0 : index
    %c0_98 = arith.constant 0 : index
    %156 = vector.load %arg16[%c1_96, %c0_97, %c0_98] : memref<3x64x128xf32, #tpu.memory_space<vmem>>, vector<1x64x128xf32>
    %157 = vector.shape_cast %156 : vector<1x64x128xf32> to vector<64x128xf32>
    %cst_99 = arith.constant dense<0.000000e+00> : vector<2x8x128xf32>
    %158 = tpu.matmul %147, %157, %cst_99 {dimension_numbers = #tpu.dot_dimension_numbers<[2], [0], [0, 1], [1], [0, 0, 0, 1, 1, 1], [], []>} : vector<2x8x64xf32>, vector<64x128xf32>, vector<2x8x128xf32> -> vector<2x8x128xf32>
    %c1_100 = arith.constant 1 : index
    %c0_101 = arith.constant 0 : index
    %c0_102 = arith.constant 0 : index
    %159 = vector.load %arg15[%c1_100, %c0_101, %c0_102] : memref<3x4x8xf32, #tpu.memory_space<vmem>>, vector<1x4x8xf32>
    %160 = vector.shape_cast %159 : vector<1x4x8xf32> to vector<4x8xf32>
    %161 = vector.shape_cast %160 : vector<4x8xf32> to vector<1x4x8xf32>
    %162 = vector.broadcast %161 : vector<1x4x8xf32> to vector<2x4x8xf32>
    %cst_103 = arith.constant dense<0.000000e+00> : vector<2x4x128xf32>
    %163 = tpu.matmul %162, %158, %cst_103 {dimension_numbers = #tpu.dot_dimension_numbers<[2], [1], [1], [2], [0, 0, 0, 1, 1, 2], [0], [0]>} : vector<2x4x8xf32>, vector<2x8x128xf32>, vector<2x4x128xf32> -> vector<2x4x128xf32>
    %164 = arith.addf %155, %163 : vector<2x4x128xf32>
    %c2_104 = arith.constant 2 : index
    %c0_105 = arith.constant 0 : index
    %c0_106 = arith.constant 0 : index
    %165 = vector.load %arg16[%c2_104, %c0_105, %c0_106] : memref<3x64x128xf32, #tpu.memory_space<vmem>>, vector<1x64x128xf32>
    %166 = vector.shape_cast %165 : vector<1x64x128xf32> to vector<64x128xf32>
    %cst_107 = arith.constant dense<0.000000e+00> : vector<2x8x128xf32>
    %167 = tpu.matmul %147, %166, %cst_107 {dimension_numbers = #tpu.dot_dimension_numbers<[2], [0], [0, 1], [1], [0, 0, 0, 1, 1, 1], [], []>} : vector<2x8x64xf32>, vector<64x128xf32>, vector<2x8x128xf32> -> vector<2x8x128xf32>
    %c2_108 = arith.constant 2 : index
    %c0_109 = arith.constant 0 : index
    %c0_110 = arith.constant 0 : index
    %168 = vector.load %arg15[%c2_108, %c0_109, %c0_110] : memref<3x4x8xf32, #tpu.memory_space<vmem>>, vector<1x4x8xf32>
    %169 = vector.shape_cast %168 : vector<1x4x8xf32> to vector<4x8xf32>
    %170 = vector.shape_cast %169 : vector<4x8xf32> to vector<1x4x8xf32>
    %171 = vector.broadcast %170 : vector<1x4x8xf32> to vector<2x4x8xf32>
    %cst_111 = arith.constant dense<0.000000e+00> : vector<2x4x128xf32>
    %172 = tpu.matmul %171, %167, %cst_111 {dimension_numbers = #tpu.dot_dimension_numbers<[2], [1], [1], [2], [0, 0, 0, 1, 1, 2], [0], [0]>} : vector<2x4x8xf32>, vector<2x8x128xf32>, vector<2x4x128xf32> -> vector<2x4x128xf32>
    %173 = arith.addf %164, %172 : vector<2x4x128xf32>
    %cst_112 = arith.constant dense<0.000000e+00> : vector<2x128xf32>
    %174 = vector.multi_reduction <add>, %173, %cst_112 [1] : vector<2x4x128xf32> to vector<2x128xf32>
    %175 = vector.shape_cast %174 : vector<2x128xf32> to vector<2x1x128xf32>
    %cst_113 = arith.constant dense<0.000000e+00> : vector<1x128xf32>
    %176 = vector.multi_reduction <add>, %175, %cst_113 [0] : vector<2x1x128xf32> to vector<1x128xf32>
    %177 = vector.shape_cast %176 : vector<1x128xf32> to vector<1x1x128xf32>
    %cst_114 = arith.constant 1.250000e-01 : f32
    %178 = vector.broadcast %cst_114 : f32 to vector<1x1x128xf32>
    %179 = arith.mulf %177, %178 : vector<1x1x128xf32>
    %180 = vector.broadcast %179 : vector<1x1x128xf32> to vector<2x4x128xf32>
    %181 = arith.subf %173, %180 : vector<2x4x128xf32>
    %182 = arith.mulf %181, %181 : vector<2x4x128xf32>
    %cst_115 = arith.constant dense<0.000000e+00> : vector<2x128xf32>
    %183 = vector.multi_reduction <add>, %182, %cst_115 [1] : vector<2x4x128xf32> to vector<2x128xf32>
    %184 = vector.shape_cast %183 : vector<2x128xf32> to vector<2x1x128xf32>
    %cst_116 = arith.constant dense<0.000000e+00> : vector<1x128xf32>
    %185 = vector.multi_reduction <add>, %184, %cst_116 [0] : vector<2x1x128xf32> to vector<1x128xf32>
    %186 = vector.shape_cast %185 : vector<1x128xf32> to vector<1x1x128xf32>
    %c0_117 = arith.constant 0 : index
    %c0_118 = arith.constant 0 : index
    %187 = vector.load %arg17[%c0_117, %c0_118] : memref<1x128xf32, #tpu.memory_space<vmem>>, vector<1x128xf32>
    %cst_119 = arith.constant 1.250000e-01 : f32
    %188 = vector.broadcast %cst_119 : f32 to vector<1x1x128xf32>
    %189 = arith.mulf %186, %188 : vector<1x1x128xf32>
    %cst_120 = arith.constant 9.99999974E-6 : f32
    %190 = vector.broadcast %cst_120 : f32 to vector<1x1x128xf32>
    %191 = arith.addf %189, %190 : vector<1x1x128xf32>
    %192 = math.rsqrt %191 : vector<1x1x128xf32>
    %193 = vector.shape_cast %187 : vector<1x128xf32> to vector<1x1x128xf32>
    %194 = arith.mulf %193, %192 : vector<1x1x128xf32>
    %195 = vector.broadcast %194 : vector<1x1x128xf32> to vector<2x4x128xf32>
    %196 = arith.mulf %181, %195 : vector<2x4x128xf32>
    %c0_121 = arith.constant 0 : index
    %c0_122 = arith.constant 0 : index
    %197 = vector.load %arg18[%c0_121, %c0_122] : memref<1x128xf32, #tpu.memory_space<vmem>>, vector<1x128xf32>
    %198 = vector.shape_cast %197 : vector<1x128xf32> to vector<1x1x128xf32>
    %199 = vector.broadcast %198 : vector<1x1x128xf32> to vector<2x4x128xf32>
    %200 = arith.addf %196, %199 : vector<2x4x128xf32>
    %cst_123 = arith.constant 0.000000e+00 : f32
    %201 = vector.broadcast %cst_123 : f32 to vector<2x4x128xf32>
    %202 = arith.cmpf ogt, %200, %201 : vector<2x4x128xf32>
    %cst_124 = arith.constant 0.00999999977 : f32
    %203 = vector.broadcast %cst_124 : f32 to vector<2x4x128xf32>
    %204 = arith.mulf %203, %200 : vector<2x4x128xf32>
    %205 = arith.select %202, %200, %204 : vector<2x4x128xi1>, vector<2x4x128xf32>
    %206 = vector.extract_strided_slice %205 {offsets = [0, 0, 0], sizes = [2, 1, 128], strides = [1, 1, 1]} : vector<2x4x128xf32> to vector<2x1x128xf32>
    %c0_125 = arith.constant 0 : index
    %c0_126 = arith.constant 0 : index
    %c0_127 = arith.constant 0 : index
    %207 = vector.load %arg19[%c0_125, %c0_126, %c0_127] : memref<4x128x32xf32, #tpu.memory_space<vmem>>, vector<1x128x32xf32>
    %208 = vector.shape_cast %207 : vector<1x128x32xf32> to vector<128x32xf32>
    %cst_128 = arith.constant dense<0.000000e+00> : vector<2x1x32xf32>
    %209 = tpu.matmul %206, %208, %cst_128 {dimension_numbers = #tpu.dot_dimension_numbers<[2], [0], [0, 1], [1], [0, 0, 0, 1, 1, 1], [], []>} : vector<2x1x128xf32>, vector<128x32xf32>, vector<2x1x32xf32> -> vector<2x1x32xf32>
    %210 = vector.extract_strided_slice %205 {offsets = [0, 1, 0], sizes = [2, 1, 128], strides = [1, 1, 1]} : vector<2x4x128xf32> to vector<2x1x128xf32>
    %c1_129 = arith.constant 1 : index
    %c0_130 = arith.constant 0 : index
    %c0_131 = arith.constant 0 : index
    %211 = vector.load %arg19[%c1_129, %c0_130, %c0_131] : memref<4x128x32xf32, #tpu.memory_space<vmem>>, vector<1x128x32xf32>
    %212 = vector.shape_cast %211 : vector<1x128x32xf32> to vector<128x32xf32>
    %cst_132 = arith.constant dense<0.000000e+00> : vector<2x1x32xf32>
    %213 = tpu.matmul %210, %212, %cst_132 {dimension_numbers = #tpu.dot_dimension_numbers<[2], [0], [0, 1], [1], [0, 0, 0, 1, 1, 1], [], []>} : vector<2x1x128xf32>, vector<128x32xf32>, vector<2x1x32xf32> -> vector<2x1x32xf32>
    %214 = arith.addf %209, %213 : vector<2x1x32xf32>
    %215 = vector.extract_strided_slice %205 {offsets = [0, 2, 0], sizes = [2, 1, 128], strides = [1, 1, 1]} : vector<2x4x128xf32> to vector<2x1x128xf32>
    %c2_133 = arith.constant 2 : index
    %c0_134 = arith.constant 0 : index
    %c0_135 = arith.constant 0 : index
    %216 = vector.load %arg19[%c2_133, %c0_134, %c0_135] : memref<4x128x32xf32, #tpu.memory_space<vmem>>, vector<1x128x32xf32>
    %217 = vector.shape_cast %216 : vector<1x128x32xf32> to vector<128x32xf32>
    %cst_136 = arith.constant dense<0.000000e+00> : vector<2x1x32xf32>
    %218 = tpu.matmul %215, %217, %cst_136 {dimension_numbers = #tpu.dot_dimension_numbers<[2], [0], [0, 1], [1], [0, 0, 0, 1, 1, 1], [], []>} : vector<2x1x128xf32>, vector<128x32xf32>, vector<2x1x32xf32> -> vector<2x1x32xf32>
    %219 = arith.addf %214, %218 : vector<2x1x32xf32>
    %220 = vector.extract_strided_slice %205 {offsets = [0, 3, 0], sizes = [2, 1, 128], strides = [1, 1, 1]} : vector<2x4x128xf32> to vector<2x1x128xf32>
    %c3 = arith.constant 3 : index
    %c0_137 = arith.constant 0 : index
    %c0_138 = arith.constant 0 : index
    %221 = vector.load %arg19[%c3, %c0_137, %c0_138] : memref<4x128x32xf32, #tpu.memory_space<vmem>>, vector<1x128x32xf32>
    %222 = vector.shape_cast %221 : vector<1x128x32xf32> to vector<128x32xf32>
    %cst_139 = arith.constant dense<0.000000e+00> : vector<2x1x32xf32>
    %223 = tpu.matmul %220, %222, %cst_139 {dimension_numbers = #tpu.dot_dimension_numbers<[2], [0], [0, 1], [1], [0, 0, 0, 1, 1, 1], [], []>} : vector<2x1x128xf32>, vector<128x32xf32>, vector<2x1x32xf32> -> vector<2x1x32xf32>
    %224 = arith.addf %219, %223 : vector<2x1x32xf32>
    %c0_140 = arith.constant 0 : index
    %c0_141 = arith.constant 0 : index
    %225 = vector.load %arg20[%c0_140, %c0_141] : memref<1x32xf32, #tpu.memory_space<vmem>>, vector<1x32xf32>
    %226 = vector.shape_cast %225 : vector<1x32xf32> to vector<1x1x32xf32>
    %227 = vector.broadcast %226 : vector<1x1x32xf32> to vector<2x1x32xf32>
    %228 = arith.addf %224, %227 : vector<2x1x32xf32>
    %229 = vector.extract_strided_slice %228 {offsets = [0, 0, 0], sizes = [2, 1, 16], strides = [1, 1, 1]} : vector<2x1x32xf32> to vector<2x1x16xf32>
    %230 = vector.extract_strided_slice %228 {offsets = [0, 0, 16], sizes = [2, 1, 16], strides = [1, 1, 1]} : vector<2x1x32xf32> to vector<2x1x16xf32>
    %c0_142 = arith.constant 0 : index
    %c0_143 = arith.constant 0 : index
    %c0_144 = arith.constant 0 : index
    %231 = vector.load %arg36[%c0_142, %c0_143, %c0_144] : memref<2x1x16xf32, #tpu.memory_space<vmem>>, vector<2x1x16xf32>
    tpu.vector_store %arg36[%c0_142, %c0_143, %c0_144], %229 {strides = array<i32>} : memref<2x1x16xf32, #tpu.memory_space<vmem>>, vector<2x1x16xf32>,
    %c0_145 = arith.constant 0 : index
    %c0_146 = arith.constant 0 : index
    %c0_147 = arith.constant 0 : index
    %232 = vector.load %arg37[%c0_145, %c0_146, %c0_147] : memref<2x1x16xf32, #tpu.memory_space<vmem>>, vector<2x1x16xf32>
    tpu.vector_store %arg37[%c0_145, %c0_146, %c0_147], %230 {strides = array<i32>} : memref<2x1x16xf32, #tpu.memory_space<vmem>>, vector<2x1x16xf32>,
    %c0_148 = arith.constant 0 : index
    %c0_149 = arith.constant 0 : index
    %c0_150 = arith.constant 0 : index
    %233 = vector.load %arg2[%c0_148, %c0_149, %c0_150] : memref<2x1x16xf32, #tpu.memory_space<vmem>>, vector<2x1x16xf32>
    %cst_151 = arith.constant 5.000000e-01 : f32
    %234 = vector.broadcast %cst_151 : f32 to vector<2x1x16xf32>
    %235 = arith.mulf %234, %230 : vector<2x1x16xf32>
    %236 = math.exp %235 : vector<2x1x16xf32>
    %237 = arith.mulf %233, %236 : vector<2x1x16xf32>
    %238 = arith.addf %237, %229 : vector<2x1x16xf32>
    %c0_152 = arith.constant 0 : index
    %c0_153 = arith.constant 0 : index
    %c0_154 = arith.constant 0 : index
    %239 = vector.load %arg21[%c0_152, %c0_153, %c0_154] : memref<4x16x128xf32, #tpu.memory_space<vmem>>, vector<1x16x128xf32>
    %240 = vector.shape_cast %239 : vector<1x16x128xf32> to vector<16x128xf32>
    %cst_155 = arith.constant dense<0.000000e+00> : vector<2x1x128xf32>
    %241 = tpu.matmul %238, %240, %cst_155 {dimension_numbers = #tpu.dot_dimension_numbers<[2], [0], [0, 1], [1], [0, 0, 0, 1, 1, 1], [], []>} : vector<2x1x16xf32>, vector<16x128xf32>, vector<2x1x128xf32> -> vector<2x1x128xf32>
    %c0_156 = arith.constant 0 : index
    %c0_157 = arith.constant 0 : index
    %c0_158 = arith.constant 0 : index
    %242 = vector.load %arg1[%c0_156, %c0_157, %c0_158] : memref<2x1x10xf32, #tpu.memory_space<vmem>>, vector<2x1x10xf32>
    %c0_159 = arith.constant 0 : index
    %c0_160 = arith.constant 0 : index
    %c0_161 = arith.constant 0 : index
    %243 = vector.load %arg22[%c0_159, %c0_160, %c0_161] : memref<4x10x128xf32, #tpu.memory_space<vmem>>, vector<1x10x128xf32>
    %244 = vector.shape_cast %243 : vector<1x10x128xf32> to vector<10x128xf32>
    %cst_162 = arith.constant dense<0.000000e+00> : vector<2x1x128xf32>
    %245 = tpu.matmul %242, %244, %cst_162 {dimension_numbers = #tpu.dot_dimension_numbers<[2], [0], [0, 1], [1], [0, 0, 0, 1, 1, 1], [], []>} : vector<2x1x10xf32>, vector<10x128xf32>, vector<2x1x128xf32> -> vector<2x1x128xf32>
    %246 = arith.addf %241, %245 : vector<2x1x128xf32>
    %c0_163 = arith.constant 0 : index
    %c0_164 = arith.constant 0 : index
    %c0_165 = arith.constant 0 : index
    %247 = vector.load %arg23[%c0_163, %c0_164, %c0_165] : memref<4x1x128xf32, #tpu.memory_space<vmem>>, vector<1x1x128xf32>
    %248 = vector.shape_cast %247 : vector<1x1x128xf32> to vector<1x128xf32>
    %249 = vector.shape_cast %248 : vector<1x128xf32> to vector<1x1x128xf32>
    %250 = vector.broadcast %249 : vector<1x1x128xf32> to vector<2x1x128xf32>
    %251 = arith.addf %246, %250 : vector<2x1x128xf32>
    %252 = tpu.iota {dimensions = array<i32: 1>} : vector<1x4x1xi32>
    %c0_i32_166 = arith.constant 0 : i32
    %253 = vector.broadcast %c0_i32_166 : i32 to vector<1x4x1xi32>
    %254 = arith.cmpi eq, %252, %253 : vector<1x4x1xi32>
    %cst_167 = arith.constant 0.000000e+00 : f32
    %255 = vector.shape_cast %254 : vector<1x4x1xi1> to vector<1x4x1xi1>
    %256 = vector.broadcast %255 : vector<1x4x1xi1> to vector<2x4x128xi1>
    %257 = vector.shape_cast %251 : vector<2x1x128xf32> to vector<2x1x128xf32>
    %258 = vector.broadcast %257 : vector<2x1x128xf32> to vector<2x4x128xf32>
    %259 = vector.broadcast %cst_167 : f32 to vector<2x4x128xf32>
    %260 = arith.select %256, %258, %259 : vector<2x4x128xi1>, vector<2x4x128xf32>
    %c1_168 = arith.constant 1 : index
    %c0_169 = arith.constant 0 : index
    %c0_170 = arith.constant 0 : index
    %261 = vector.load %arg21[%c1_168, %c0_169, %c0_170] : memref<4x16x128xf32, #tpu.memory_space<vmem>>, vector<1x16x128xf32>
    %262 = vector.shape_cast %261 : vector<1x16x128xf32> to vector<16x128xf32>
    %cst_171 = arith.constant dense<0.000000e+00> : vector<2x1x128xf32>
    %263 = tpu.matmul %238, %262, %cst_171 {dimension_numbers = #tpu.dot_dimension_numbers<[2], [0], [0, 1], [1], [0, 0, 0, 1, 1, 1], [], []>} : vector<2x1x16xf32>, vector<16x128xf32>, vector<2x1x128xf32> -> vector<2x1x128xf32>
    %c0_172 = arith.constant 0 : index
    %c0_173 = arith.constant 0 : index
    %c0_174 = arith.constant 0 : index
    %264 = vector.load %arg1[%c0_172, %c0_173, %c0_174] : memref<2x1x10xf32, #tpu.memory_space<vmem>>, vector<2x1x10xf32>
    %c1_175 = arith.constant 1 : index
    %c0_176 = arith.constant 0 : index
    %c0_177 = arith.constant 0 : index
    %265 = vector.load %arg22[%c1_175, %c0_176, %c0_177] : memref<4x10x128xf32, #tpu.memory_space<vmem>>, vector<1x10x128xf32>
    %266 = vector.shape_cast %265 : vector<1x10x128xf32> to vector<10x128xf32>
    %cst_178 = arith.constant dense<0.000000e+00> : vector<2x1x128xf32>
    %267 = tpu.matmul %264, %266, %cst_178 {dimension_numbers = #tpu.dot_dimension_numbers<[2], [0], [0, 1], [1], [0, 0, 0, 1, 1, 1], [], []>} : vector<2x1x10xf32>, vector<10x128xf32>, vector<2x1x128xf32> -> vector<2x1x128xf32>
    %268 = arith.addf %263, %267 : vector<2x1x128xf32>
    %c1_179 = arith.constant 1 : index
    %c0_180 = arith.constant 0 : index
    %c0_181 = arith.constant 0 : index
    %269 = vector.load %arg23[%c1_179, %c0_180, %c0_181] : memref<4x1x128xf32, #tpu.memory_space<vmem>>, vector<1x1x128xf32>
    %270 = vector.shape_cast %269 : vector<1x1x128xf32> to vector<1x128xf32>
    %271 = vector.shape_cast %270 : vector<1x128xf32> to vector<1x1x128xf32>
    %272 = vector.broadcast %271 : vector<1x1x128xf32> to vector<2x1x128xf32>
    %273 = arith.addf %268, %272 : vector<2x1x128xf32>
    %274 = tpu.iota {dimensions = array<i32: 1>} : vector<1x4x1xi32>
    %c1_i32 = arith.constant 1 : i32
    %275 = vector.broadcast %c1_i32 : i32 to vector<1x4x1xi32>
    %276 = arith.cmpi eq, %274, %275 : vector<1x4x1xi32>
    %cst_182 = arith.constant 0.000000e+00 : f32
    %277 = vector.shape_cast %276 : vector<1x4x1xi1> to vector<1x4x1xi1>
    %278 = vector.broadcast %277 : vector<1x4x1xi1> to vector<2x4x128xi1>
    %279 = vector.shape_cast %273 : vector<2x1x128xf32> to vector<2x1x128xf32>
    %280 = vector.broadcast %279 : vector<2x1x128xf32> to vector<2x4x128xf32>
    %281 = vector.broadcast %cst_182 : f32 to vector<2x4x128xf32>
    %282 = arith.select %278, %280, %281 : vector<2x4x128xi1>, vector<2x4x128xf32>
    %283 = arith.addf %260, %282 : vector<2x4x128xf32>
    %c2_183 = arith.constant 2 : index
    %c0_184 = arith.constant 0 : index
    %c0_185 = arith.constant 0 : index
    %284 = vector.load %arg21[%c2_183, %c0_184, %c0_185] : memref<4x16x128xf32, #tpu.memory_space<vmem>>, vector<1x16x128xf32>
    %285 = vector.shape_cast %284 : vector<1x16x128xf32> to vector<16x128xf32>
    %cst_186 = arith.constant dense<0.000000e+00> : vector<2x1x128xf32>
    %286 = tpu.matmul %238, %285, %cst_186 {dimension_numbers = #tpu.dot_dimension_numbers<[2], [0], [0, 1], [1], [0, 0, 0, 1, 1, 1], [], []>} : vector<2x1x16xf32>, vector<16x128xf32>, vector<2x1x128xf32> -> vector<2x1x128xf32>
    %c0_187 = arith.constant 0 : index
    %c0_188 = arith.constant 0 : index
    %c0_189 = arith.constant 0 : index
    %287 = vector.load %arg1[%c0_187, %c0_188, %c0_189] : memref<2x1x10xf32, #tpu.memory_space<vmem>>, vector<2x1x10xf32>
    %c2_190 = arith.constant 2 : index
    %c0_191 = arith.constant 0 : index
    %c0_192 = arith.constant 0 : index
    %288 = vector.load %arg22[%c2_190, %c0_191, %c0_192] : memref<4x10x128xf32, #tpu.memory_space<vmem>>, vector<1x10x128xf32>
    %289 = vector.shape_cast %288 : vector<1x10x128xf32> to vector<10x128xf32>
    %cst_193 = arith.constant dense<0.000000e+00> : vector<2x1x128xf32>
    %290 = tpu.matmul %287, %289, %cst_193 {dimension_numbers = #tpu.dot_dimension_numbers<[2], [0], [0, 1], [1], [0, 0, 0, 1, 1, 1], [], []>} : vector<2x1x10xf32>, vector<10x128xf32>, vector<2x1x128xf32> -> vector<2x1x128xf32>
    %291 = arith.addf %286, %290 : vector<2x1x128xf32>
    %c2_194 = arith.constant 2 : index
    %c0_195 = arith.constant 0 : index
    %c0_196 = arith.constant 0 : index
    %292 = vector.load %arg23[%c2_194, %c0_195, %c0_196] : memref<4x1x128xf32, #tpu.memory_space<vmem>>, vector<1x1x128xf32>
    %293 = vector.shape_cast %292 : vector<1x1x128xf32> to vector<1x128xf32>
    %294 = vector.shape_cast %293 : vector<1x128xf32> to vector<1x1x128xf32>
    %295 = vector.broadcast %294 : vector<1x1x128xf32> to vector<2x1x128xf32>
    %296 = arith.addf %291, %295 : vector<2x1x128xf32>
    %297 = tpu.iota {dimensions = array<i32: 1>} : vector<1x4x1xi32>
    %c2_i32 = arith.constant 2 : i32
    %298 = vector.broadcast %c2_i32 : i32 to vector<1x4x1xi32>
    %299 = arith.cmpi eq, %297, %298 : vector<1x4x1xi32>
    %cst_197 = arith.constant 0.000000e+00 : f32
    %300 = vector.shape_cast %299 : vector<1x4x1xi1> to vector<1x4x1xi1>
    %301 = vector.broadcast %300 : vector<1x4x1xi1> to vector<2x4x128xi1>
    %302 = vector.shape_cast %296 : vector<2x1x128xf32> to vector<2x1x128xf32>
    %303 = vector.broadcast %302 : vector<2x1x128xf32> to vector<2x4x128xf32>
    %304 = vector.broadcast %cst_197 : f32 to vector<2x4x128xf32>
    %305 = arith.select %301, %303, %304 : vector<2x4x128xi1>, vector<2x4x128xf32>
    %306 = arith.addf %283, %305 : vector<2x4x128xf32>
    %c3_198 = arith.constant 3 : index
    %c0_199 = arith.constant 0 : index
    %c0_200 = arith.constant 0 : index
    %307 = vector.load %arg21[%c3_198, %c0_199, %c0_200] : memref<4x16x128xf32, #tpu.memory_space<vmem>>, vector<1x16x128xf32>
    %308 = vector.shape_cast %307 : vector<1x16x128xf32> to vector<16x128xf32>
    %cst_201 = arith.constant dense<0.000000e+00> : vector<2x1x128xf32>
    %309 = tpu.matmul %238, %308, %cst_201 {dimension_numbers = #tpu.dot_dimension_numbers<[2], [0], [0, 1], [1], [0, 0, 0, 1, 1, 1], [], []>} : vector<2x1x16xf32>, vector<16x128xf32>, vector<2x1x128xf32> -> vector<2x1x128xf32>
    %c0_202 = arith.constant 0 : index
    %c0_203 = arith.constant 0 : index
    %c0_204 = arith.constant 0 : index
    %310 = vector.load %arg1[%c0_202, %c0_203, %c0_204] : memref<2x1x10xf32, #tpu.memory_space<vmem>>, vector<2x1x10xf32>
    %c3_205 = arith.constant 3 : index
    %c0_206 = arith.constant 0 : index
    %c0_207 = arith.constant 0 : index
    %311 = vector.load %arg22[%c3_205, %c0_206, %c0_207] : memref<4x10x128xf32, #tpu.memory_space<vmem>>, vector<1x10x128xf32>
    %312 = vector.shape_cast %311 : vector<1x10x128xf32> to vector<10x128xf32>
    %cst_208 = arith.constant dense<0.000000e+00> : vector<2x1x128xf32>
    %313 = tpu.matmul %310, %312, %cst_208 {dimension_numbers = #tpu.dot_dimension_numbers<[2], [0], [0, 1], [1], [0, 0, 0, 1, 1, 1], [], []>} : vector<2x1x10xf32>, vector<10x128xf32>, vector<2x1x128xf32> -> vector<2x1x128xf32>
    %314 = arith.addf %309, %313 : vector<2x1x128xf32>
    %c3_209 = arith.constant 3 : index
    %c0_210 = arith.constant 0 : index
    %c0_211 = arith.constant 0 : index
    %315 = vector.load %arg23[%c3_209, %c0_210, %c0_211] : memref<4x1x128xf32, #tpu.memory_space<vmem>>, vector<1x1x128xf32>
    %316 = vector.shape_cast %315 : vector<1x1x128xf32> to vector<1x128xf32>
    %317 = vector.shape_cast %316 : vector<1x128xf32> to vector<1x1x128xf32>
    %318 = vector.broadcast %317 : vector<1x1x128xf32> to vector<2x1x128xf32>
    %319 = arith.addf %314, %318 : vector<2x1x128xf32>
    %320 = tpu.iota {dimensions = array<i32: 1>} : vector<1x4x1xi32>
    %c3_i32 = arith.constant 3 : i32
    %321 = vector.broadcast %c3_i32 : i32 to vector<1x4x1xi32>
    %322 = arith.cmpi eq, %320, %321 : vector<1x4x1xi32>
    %cst_212 = arith.constant 0.000000e+00 : f32
    %323 = vector.shape_cast %322 : vector<1x4x1xi1> to vector<1x4x1xi1>
    %324 = vector.broadcast %323 : vector<1x4x1xi1> to vector<2x4x128xi1>
    %325 = vector.shape_cast %319 : vector<2x1x128xf32> to vector<2x1x128xf32>
    %326 = vector.broadcast %325 : vector<2x1x128xf32> to vector<2x4x128xf32>
    %327 = vector.broadcast %cst_212 : f32 to vector<2x4x128xf32>
    %328 = arith.select %324, %326, %327 : vector<2x4x128xi1>, vector<2x4x128xf32>
    %329 = arith.addf %306, %328 : vector<2x4x128xf32>
    %c0_213 = arith.constant 0 : index
    %c0_214 = arith.constant 0 : index
    %c0_215 = arith.constant 0 : index
    %330 = vector.load %arg25[%c0_213, %c0_214, %c0_215] : memref<3x128x64xf32, #tpu.memory_space<vmem>>, vector<1x128x64xf32>
    %331 = vector.shape_cast %330 : vector<1x128x64xf32> to vector<128x64xf32>
    %cst_216 = arith.constant dense<0.000000e+00> : vector<2x4x64xf32>
    %332 = tpu.matmul %329, %331, %cst_216 {dimension_numbers = #tpu.dot_dimension_numbers<[2], [0], [0, 1], [1], [0, 0, 0, 1, 1, 1], [], []>} : vector<2x4x128xf32>, vector<128x64xf32>, vector<2x4x64xf32> -> vector<2x4x64xf32>
    %c0_217 = arith.constant 0 : index
    %c0_218 = arith.constant 0 : index
    %c0_219 = arith.constant 0 : index
    %333 = vector.load %arg24[%c0_217, %c0_218, %c0_219] : memref<3x8x4xf32, #tpu.memory_space<vmem>>, vector<1x8x4xf32>
    %334 = vector.shape_cast %333 : vector<1x8x4xf32> to vector<8x4xf32>
    %335 = vector.shape_cast %334 : vector<8x4xf32> to vector<1x8x4xf32>
    %336 = vector.broadcast %335 : vector<1x8x4xf32> to vector<2x8x4xf32>
    %cst_220 = arith.constant dense<0.000000e+00> : vector<2x8x64xf32>
    %337 = tpu.matmul %336, %332, %cst_220 {dimension_numbers = #tpu.dot_dimension_numbers<[2], [1], [1], [2], [0, 0, 0, 1, 1, 2], [0], [0]>} : vector<2x8x4xf32>, vector<2x4x64xf32>, vector<2x8x64xf32> -> vector<2x8x64xf32>
    %c1_221 = arith.constant 1 : index
    %c0_222 = arith.constant 0 : index
    %c0_223 = arith.constant 0 : index
    %338 = vector.load %arg25[%c1_221, %c0_222, %c0_223] : memref<3x128x64xf32, #tpu.memory_space<vmem>>, vector<1x128x64xf32>
    %339 = vector.shape_cast %338 : vector<1x128x64xf32> to vector<128x64xf32>
    %cst_224 = arith.constant dense<0.000000e+00> : vector<2x4x64xf32>
    %340 = tpu.matmul %329, %339, %cst_224 {dimension_numbers = #tpu.dot_dimension_numbers<[2], [0], [0, 1], [1], [0, 0, 0, 1, 1, 1], [], []>} : vector<2x4x128xf32>, vector<128x64xf32>, vector<2x4x64xf32> -> vector<2x4x64xf32>
    %c1_225 = arith.constant 1 : index
    %c0_226 = arith.constant 0 : index
    %c0_227 = arith.constant 0 : index
    %341 = vector.load %arg24[%c1_225, %c0_226, %c0_227] : memref<3x8x4xf32, #tpu.memory_space<vmem>>, vector<1x8x4xf32>
    %342 = vector.shape_cast %341 : vector<1x8x4xf32> to vector<8x4xf32>
    %343 = vector.shape_cast %342 : vector<8x4xf32> to vector<1x8x4xf32>
    %344 = vector.broadcast %343 : vector<1x8x4xf32> to vector<2x8x4xf32>
    %cst_228 = arith.constant dense<0.000000e+00> : vector<2x8x64xf32>
    %345 = tpu.matmul %344, %340, %cst_228 {dimension_numbers = #tpu.dot_dimension_numbers<[2], [1], [1], [2], [0, 0, 0, 1, 1, 2], [0], [0]>} : vector<2x8x4xf32>, vector<2x4x64xf32>, vector<2x8x64xf32> -> vector<2x8x64xf32>
    %346 = arith.addf %337, %345 : vector<2x8x64xf32>
    %c2_229 = arith.constant 2 : index
    %c0_230 = arith.constant 0 : index
    %c0_231 = arith.constant 0 : index
    %347 = vector.load %arg25[%c2_229, %c0_230, %c0_231] : memref<3x128x64xf32, #tpu.memory_space<vmem>>, vector<1x128x64xf32>
    %348 = vector.shape_cast %347 : vector<1x128x64xf32> to vector<128x64xf32>
    %cst_232 = arith.constant dense<0.000000e+00> : vector<2x4x64xf32>
    %349 = tpu.matmul %329, %348, %cst_232 {dimension_numbers = #tpu.dot_dimension_numbers<[2], [0], [0, 1], [1], [0, 0, 0, 1, 1, 1], [], []>} : vector<2x4x128xf32>, vector<128x64xf32>, vector<2x4x64xf32> -> vector<2x4x64xf32>
    %c2_233 = arith.constant 2 : index
    %c0_234 = arith.constant 0 : index
    %c0_235 = arith.constant 0 : index
    %350 = vector.load %arg24[%c2_233, %c0_234, %c0_235] : memref<3x8x4xf32, #tpu.memory_space<vmem>>, vector<1x8x4xf32>
    %351 = vector.shape_cast %350 : vector<1x8x4xf32> to vector<8x4xf32>
    %352 = vector.shape_cast %351 : vector<8x4xf32> to vector<1x8x4xf32>
    %353 = vector.broadcast %352 : vector<1x8x4xf32> to vector<2x8x4xf32>
    %cst_236 = arith.constant dense<0.000000e+00> : vector<2x8x64xf32>
    %354 = tpu.matmul %353, %349, %cst_236 {dimension_numbers = #tpu.dot_dimension_numbers<[2], [1], [1], [2], [0, 0, 0, 1, 1, 2], [0], [0]>} : vector<2x8x4xf32>, vector<2x4x64xf32>, vector<2x8x64xf32> -> vector<2x8x64xf32>
    %355 = arith.addf %346, %354 : vector<2x8x64xf32>
    %cst_237 = arith.constant dense<0.000000e+00> : vector<2x64xf32>
    %356 = vector.multi_reduction <add>, %355, %cst_237 [1] : vector<2x8x64xf32> to vector<2x64xf32>
    %357 = vector.shape_cast %356 : vector<2x64xf32> to vector<2x1x64xf32>
    %cst_238 = arith.constant dense<0.000000e+00> : vector<1x64xf32>
    %358 = vector.multi_reduction <add>, %357, %cst_238 [0] : vector<2x1x64xf32> to vector<1x64xf32>
    %359 = vector.shape_cast %358 : vector<1x64xf32> to vector<1x1x64xf32>
    %cst_239 = arith.constant 6.250000e-02 : f32
    %360 = vector.broadcast %cst_239 : f32 to vector<1x1x64xf32>
    %361 = arith.mulf %359, %360 : vector<1x1x64xf32>
    %362 = vector.broadcast %361 : vector<1x1x64xf32> to vector<2x8x64xf32>
    %363 = arith.subf %355, %362 : vector<2x8x64xf32>
    %364 = arith.mulf %363, %363 : vector<2x8x64xf32>
    %cst_240 = arith.constant dense<0.000000e+00> : vector<2x64xf32>
    %365 = vector.multi_reduction <add>, %364, %cst_240 [1] : vector<2x8x64xf32> to vector<2x64xf32>
    %366 = vector.shape_cast %365 : vector<2x64xf32> to vector<2x1x64xf32>
    %cst_241 = arith.constant dense<0.000000e+00> : vector<1x64xf32>
    %367 = vector.multi_reduction <add>, %366, %cst_241 [0] : vector<2x1x64xf32> to vector<1x64xf32>
    %368 = vector.shape_cast %367 : vector<1x64xf32> to vector<1x1x64xf32>
    %c0_242 = arith.constant 0 : index
    %c0_243 = arith.constant 0 : index
    %369 = vector.load %arg26[%c0_242, %c0_243] : memref<1x64xf32, #tpu.memory_space<vmem>>, vector<1x64xf32>
    %cst_244 = arith.constant 6.250000e-02 : f32
    %370 = vector.broadcast %cst_244 : f32 to vector<1x1x64xf32>
    %371 = arith.mulf %368, %370 : vector<1x1x64xf32>
    %cst_245 = arith.constant 9.99999974E-6 : f32
    %372 = vector.broadcast %cst_245 : f32 to vector<1x1x64xf32>
    %373 = arith.addf %371, %372 : vector<1x1x64xf32>
    %374 = math.rsqrt %373 : vector<1x1x64xf32>
    %375 = vector.shape_cast %369 : vector<1x64xf32> to vector<1x1x64xf32>
    %376 = arith.mulf %375, %374 : vector<1x1x64xf32>
    %377 = vector.broadcast %376 : vector<1x1x64xf32> to vector<2x8x64xf32>
    %378 = arith.mulf %363, %377 : vector<2x8x64xf32>
    %c0_246 = arith.constant 0 : index
    %c0_247 = arith.constant 0 : index
    %379 = vector.load %arg27[%c0_246, %c0_247] : memref<1x64xf32, #tpu.memory_space<vmem>>, vector<1x64xf32>
    %380 = vector.shape_cast %379 : vector<1x64xf32> to vector<1x1x64xf32>
    %381 = vector.broadcast %380 : vector<1x1x64xf32> to vector<2x8x64xf32>
    %382 = arith.addf %378, %381 : vector<2x8x64xf32>
    %cst_248 = arith.constant 0.000000e+00 : f32
    %383 = vector.broadcast %cst_248 : f32 to vector<2x8x64xf32>
    %384 = arith.cmpf ogt, %382, %383 : vector<2x8x64xf32>
    %cst_249 = arith.constant 0.00999999977 : f32
    %385 = vector.broadcast %cst_249 : f32 to vector<2x8x64xf32>
    %386 = arith.mulf %385, %382 : vector<2x8x64xf32>
    %387 = arith.select %384, %382, %386 : vector<2x8x64xi1>, vector<2x8x64xf32>
    %c0_250 = arith.constant 0 : index
    %c0_251 = arith.constant 0 : index
    %c0_252 = arith.constant 0 : index
    %388 = vector.load %arg29[%c0_250, %c0_251, %c0_252] : memref<3x64x32xf32, #tpu.memory_space<vmem>>, vector<1x64x32xf32>
    %389 = vector.shape_cast %388 : vector<1x64x32xf32> to vector<64x32xf32>
    %cst_253 = arith.constant dense<0.000000e+00> : vector<2x8x32xf32>
    %390 = tpu.matmul %387, %389, %cst_253 {dimension_numbers = #tpu.dot_dimension_numbers<[2], [0], [0, 1], [1], [0, 0, 0, 1, 1, 1], [], []>} : vector<2x8x64xf32>, vector<64x32xf32>, vector<2x8x32xf32> -> vector<2x8x32xf32>
    %c0_254 = arith.constant 0 : index
    %c0_255 = arith.constant 0 : index
    %c0_256 = arith.constant 0 : index
    %391 = vector.load %arg28[%c0_254, %c0_255, %c0_256] : memref<3x16x8xf32, #tpu.memory_space<vmem>>, vector<1x16x8xf32>
    %392 = vector.shape_cast %391 : vector<1x16x8xf32> to vector<16x8xf32>
    %393 = vector.shape_cast %392 : vector<16x8xf32> to vector<1x16x8xf32>
    %394 = vector.broadcast %393 : vector<1x16x8xf32> to vector<2x16x8xf32>
    %cst_257 = arith.constant dense<0.000000e+00> : vector<2x16x32xf32>
    %395 = tpu.matmul %394, %390, %cst_257 {dimension_numbers = #tpu.dot_dimension_numbers<[2], [1], [1], [2], [0, 0, 0, 1, 1, 2], [0], [0]>} : vector<2x16x8xf32>, vector<2x8x32xf32>, vector<2x16x32xf32> -> vector<2x16x32xf32>
    %c1_258 = arith.constant 1 : index
    %c0_259 = arith.constant 0 : index
    %c0_260 = arith.constant 0 : index
    %396 = vector.load %arg29[%c1_258, %c0_259, %c0_260] : memref<3x64x32xf32, #tpu.memory_space<vmem>>, vector<1x64x32xf32>
    %397 = vector.shape_cast %396 : vector<1x64x32xf32> to vector<64x32xf32>
    %cst_261 = arith.constant dense<0.000000e+00> : vector<2x8x32xf32>
    %398 = tpu.matmul %387, %397, %cst_261 {dimension_numbers = #tpu.dot_dimension_numbers<[2], [0], [0, 1], [1], [0, 0, 0, 1, 1, 1], [], []>} : vector<2x8x64xf32>, vector<64x32xf32>, vector<2x8x32xf32> -> vector<2x8x32xf32>
    %c1_262 = arith.constant 1 : index
    %c0_263 = arith.constant 0 : index
    %c0_264 = arith.constant 0 : index
    %399 = vector.load %arg28[%c1_262, %c0_263, %c0_264] : memref<3x16x8xf32, #tpu.memory_space<vmem>>, vector<1x16x8xf32>
    %400 = vector.shape_cast %399 : vector<1x16x8xf32> to vector<16x8xf32>
    %401 = vector.shape_cast %400 : vector<16x8xf32> to vector<1x16x8xf32>
    %402 = vector.broadcast %401 : vector<1x16x8xf32> to vector<2x16x8xf32>
    %cst_265 = arith.constant dense<0.000000e+00> : vector<2x16x32xf32>
    %403 = tpu.matmul %402, %398, %cst_265 {dimension_numbers = #tpu.dot_dimension_numbers<[2], [1], [1], [2], [0, 0, 0, 1, 1, 2], [0], [0]>} : vector<2x16x8xf32>, vector<2x8x32xf32>, vector<2x16x32xf32> -> vector<2x16x32xf32>
    %404 = arith.addf %395, %403 : vector<2x16x32xf32>
    %c2_266 = arith.constant 2 : index
    %c0_267 = arith.constant 0 : index
    %c0_268 = arith.constant 0 : index
    %405 = vector.load %arg29[%c2_266, %c0_267, %c0_268] : memref<3x64x32xf32, #tpu.memory_space<vmem>>, vector<1x64x32xf32>
    %406 = vector.shape_cast %405 : vector<1x64x32xf32> to vector<64x32xf32>
    %cst_269 = arith.constant dense<0.000000e+00> : vector<2x8x32xf32>
    %407 = tpu.matmul %387, %406, %cst_269 {dimension_numbers = #tpu.dot_dimension_numbers<[2], [0], [0, 1], [1], [0, 0, 0, 1, 1, 1], [], []>} : vector<2x8x64xf32>, vector<64x32xf32>, vector<2x8x32xf32> -> vector<2x8x32xf32>
    %c2_270 = arith.constant 2 : index
    %c0_271 = arith.constant 0 : index
    %c0_272 = arith.constant 0 : index
    %408 = vector.load %arg28[%c2_270, %c0_271, %c0_272] : memref<3x16x8xf32, #tpu.memory_space<vmem>>, vector<1x16x8xf32>
    %409 = vector.shape_cast %408 : vector<1x16x8xf32> to vector<16x8xf32>
    %410 = vector.shape_cast %409 : vector<16x8xf32> to vector<1x16x8xf32>
    %411 = vector.broadcast %410 : vector<1x16x8xf32> to vector<2x16x8xf32>
    %cst_273 = arith.constant dense<0.000000e+00> : vector<2x16x32xf32>
    %412 = tpu.matmul %411, %407, %cst_273 {dimension_numbers = #tpu.dot_dimension_numbers<[2], [1], [1], [2], [0, 0, 0, 1, 1, 2], [0], [0]>} : vector<2x16x8xf32>, vector<2x8x32xf32>, vector<2x16x32xf32> -> vector<2x16x32xf32>
    %413 = arith.addf %404, %412 : vector<2x16x32xf32>
    %cst_274 = arith.constant dense<0.000000e+00> : vector<2x32xf32>
    %414 = vector.multi_reduction <add>, %413, %cst_274 [1] : vector<2x16x32xf32> to vector<2x32xf32>
    %415 = vector.shape_cast %414 : vector<2x32xf32> to vector<2x1x32xf32>
    %cst_275 = arith.constant dense<0.000000e+00> : vector<1x32xf32>
    %416 = vector.multi_reduction <add>, %415, %cst_275 [0] : vector<2x1x32xf32> to vector<1x32xf32>
    %417 = vector.shape_cast %416 : vector<1x32xf32> to vector<1x1x32xf32>
    %cst_276 = arith.constant 3.125000e-02 : f32
    %418 = vector.broadcast %cst_276 : f32 to vector<1x1x32xf32>
    %419 = arith.mulf %417, %418 : vector<1x1x32xf32>
    %420 = vector.broadcast %419 : vector<1x1x32xf32> to vector<2x16x32xf32>
    %421 = arith.subf %413, %420 : vector<2x16x32xf32>
    %422 = arith.mulf %421, %421 : vector<2x16x32xf32>
    %cst_277 = arith.constant dense<0.000000e+00> : vector<2x32xf32>
    %423 = vector.multi_reduction <add>, %422, %cst_277 [1] : vector<2x16x32xf32> to vector<2x32xf32>
    %424 = vector.shape_cast %423 : vector<2x32xf32> to vector<2x1x32xf32>
    %cst_278 = arith.constant dense<0.000000e+00> : vector<1x32xf32>
    %425 = vector.multi_reduction <add>, %424, %cst_278 [0] : vector<2x1x32xf32> to vector<1x32xf32>
    %426 = vector.shape_cast %425 : vector<1x32xf32> to vector<1x1x32xf32>
    %c0_279 = arith.constant 0 : index
    %c0_280 = arith.constant 0 : index
    %427 = vector.load %arg30[%c0_279, %c0_280] : memref<1x32xf32, #tpu.memory_space<vmem>>, vector<1x32xf32>
    %cst_281 = arith.constant 3.125000e-02 : f32
    %428 = vector.broadcast %cst_281 : f32 to vector<1x1x32xf32>
    %429 = arith.mulf %426, %428 : vector<1x1x32xf32>
    %cst_282 = arith.constant 9.99999974E-6 : f32
    %430 = vector.broadcast %cst_282 : f32 to vector<1x1x32xf32>
    %431 = arith.addf %429, %430 : vector<1x1x32xf32>
    %432 = math.rsqrt %431 : vector<1x1x32xf32>
    %433 = vector.shape_cast %427 : vector<1x32xf32> to vector<1x1x32xf32>
    %434 = arith.mulf %433, %432 : vector<1x1x32xf32>
    %435 = vector.broadcast %434 : vector<1x1x32xf32> to vector<2x16x32xf32>
    %436 = arith.mulf %421, %435 : vector<2x16x32xf32>
    %c0_283 = arith.constant 0 : index
    %c0_284 = arith.constant 0 : index
    %437 = vector.load %arg31[%c0_283, %c0_284] : memref<1x32xf32, #tpu.memory_space<vmem>>, vector<1x32xf32>
    %438 = vector.shape_cast %437 : vector<1x32xf32> to vector<1x1x32xf32>
    %439 = vector.broadcast %438 : vector<1x1x32xf32> to vector<2x16x32xf32>
    %440 = arith.addf %436, %439 : vector<2x16x32xf32>
    %cst_285 = arith.constant 0.000000e+00 : f32
    %441 = vector.broadcast %cst_285 : f32 to vector<2x16x32xf32>
    %442 = arith.cmpf ogt, %440, %441 : vector<2x16x32xf32>
    %cst_286 = arith.constant 0.00999999977 : f32
    %443 = vector.broadcast %cst_286 : f32 to vector<2x16x32xf32>
    %444 = arith.mulf %443, %440 : vector<2x16x32xf32>
    %445 = arith.select %442, %440, %444 : vector<2x16x32xi1>, vector<2x16x32xf32>
    %c0_287 = arith.constant 0 : index
    %c0_288 = arith.constant 0 : index
    %c0_289 = arith.constant 0 : index
    %446 = vector.load %arg33[%c0_287, %c0_288, %c0_289] : memref<3x32x1xf32, #tpu.memory_space<vmem>>, vector<1x32x1xf32>
    %447 = vector.shape_cast %446 : vector<1x32x1xf32> to vector<32x1xf32>
    %cst_290 = arith.constant dense<0.000000e+00> : vector<2x16x1xf32>
    %448 = tpu.matmul %445, %447, %cst_290 {dimension_numbers = #tpu.dot_dimension_numbers<[2], [0], [0, 1], [1], [0, 0, 0, 1, 1, 1], [], []>} : vector<2x16x32xf32>, vector<32x1xf32>, vector<2x16x1xf32> -> vector<2x16x1xf32>
    %c0_291 = arith.constant 0 : index
    %c0_292 = arith.constant 0 : index
    %c0_293 = arith.constant 0 : index
    %449 = vector.load %arg32[%c0_291, %c0_292, %c0_293] : memref<3x32x16xf32, #tpu.memory_space<vmem>>, vector<1x32x16xf32>
    %450 = vector.shape_cast %449 : vector<1x32x16xf32> to vector<32x16xf32>
    %451 = vector.shape_cast %450 : vector<32x16xf32> to vector<1x32x16xf32>
    %452 = vector.broadcast %451 : vector<1x32x16xf32> to vector<2x32x16xf32>
    %cst_294 = arith.constant dense<0.000000e+00> : vector<2x32x1xf32>
    %453 = tpu.matmul %452, %448, %cst_294 {dimension_numbers = #tpu.dot_dimension_numbers<[2], [1], [1], [2], [0, 0, 0, 1, 1, 2], [0], [0]>} : vector<2x32x16xf32>, vector<2x16x1xf32>, vector<2x32x1xf32> -> vector<2x32x1xf32>
    %c1_295 = arith.constant 1 : index
    %c0_296 = arith.constant 0 : index
    %c0_297 = arith.constant 0 : index
    %454 = vector.load %arg33[%c1_295, %c0_296, %c0_297] : memref<3x32x1xf32, #tpu.memory_space<vmem>>, vector<1x32x1xf32>
    %455 = vector.shape_cast %454 : vector<1x32x1xf32> to vector<32x1xf32>
    %cst_298 = arith.constant dense<0.000000e+00> : vector<2x16x1xf32>
    %456 = tpu.matmul %445, %455, %cst_298 {dimension_numbers = #tpu.dot_dimension_numbers<[2], [0], [0, 1], [1], [0, 0, 0, 1, 1, 1], [], []>} : vector<2x16x32xf32>, vector<32x1xf32>, vector<2x16x1xf32> -> vector<2x16x1xf32>
    %c1_299 = arith.constant 1 : index
    %c0_300 = arith.constant 0 : index
    %c0_301 = arith.constant 0 : index
    %457 = vector.load %arg32[%c1_299, %c0_300, %c0_301] : memref<3x32x16xf32, #tpu.memory_space<vmem>>, vector<1x32x16xf32>
    %458 = vector.shape_cast %457 : vector<1x32x16xf32> to vector<32x16xf32>
    %459 = vector.shape_cast %458 : vector<32x16xf32> to vector<1x32x16xf32>
    %460 = vector.broadcast %459 : vector<1x32x16xf32> to vector<2x32x16xf32>
    %cst_302 = arith.constant dense<0.000000e+00> : vector<2x32x1xf32>
    %461 = tpu.matmul %460, %456, %cst_302 {dimension_numbers = #tpu.dot_dimension_numbers<[2], [1], [1], [2], [0, 0, 0, 1, 1, 2], [0], [0]>} : vector<2x32x16xf32>, vector<2x16x1xf32>, vector<2x32x1xf32> -> vector<2x32x1xf32>
    %462 = arith.addf %453, %461 : vector<2x32x1xf32>
    %c2_303 = arith.constant 2 : index
    %c0_304 = arith.constant 0 : index
    %c0_305 = arith.constant 0 : index
    %463 = vector.load %arg33[%c2_303, %c0_304, %c0_305] : memref<3x32x1xf32, #tpu.memory_space<vmem>>, vector<1x32x1xf32>
    %464 = vector.shape_cast %463 : vector<1x32x1xf32> to vector<32x1xf32>
    %cst_306 = arith.constant dense<0.000000e+00> : vector<2x16x1xf32>
    %465 = tpu.matmul %445, %464, %cst_306 {dimension_numbers = #tpu.dot_dimension_numbers<[2], [0], [0, 1], [1], [0, 0, 0, 1, 1, 1], [], []>} : vector<2x16x32xf32>, vector<32x1xf32>, vector<2x16x1xf32> -> vector<2x16x1xf32>
    %c2_307 = arith.constant 2 : index
    %c0_308 = arith.constant 0 : index
    %c0_309 = arith.constant 0 : index
    %466 = vector.load %arg32[%c2_307, %c0_308, %c0_309] : memref<3x32x16xf32, #tpu.memory_space<vmem>>, vector<1x32x16xf32>
    %467 = vector.shape_cast %466 : vector<1x32x16xf32> to vector<32x16xf32>
    %468 = vector.shape_cast %467 : vector<32x16xf32> to vector<1x32x16xf32>
    %469 = vector.broadcast %468 : vector<1x32x16xf32> to vector<2x32x16xf32>
    %cst_310 = arith.constant dense<0.000000e+00> : vector<2x32x1xf32>
    %470 = tpu.matmul %469, %465, %cst_310 {dimension_numbers = #tpu.dot_dimension_numbers<[2], [1], [1], [2], [0, 0, 0, 1, 1, 2], [0], [0]>} : vector<2x32x16xf32>, vector<2x16x1xf32>, vector<2x32x1xf32> -> vector<2x32x1xf32>
    %471 = arith.addf %462, %470 : vector<2x32x1xf32>
    %c0_311 = arith.constant 0 : index
    %c0_312 = arith.constant 0 : index
    %472 = vector.load %arg34[%c0_311, %c0_312] : memref<1x1xf32, #tpu.memory_space<vmem>>, vector<1x1xf32>
    %473 = vector.shape_cast %472 : vector<1x1xf32> to vector<1x1x1xf32>
    %474 = vector.broadcast %473 : vector<1x1x1xf32> to vector<2x32x1xf32>
    %475 = arith.addf %471, %474 : vector<2x32x1xf32>
    %c0_313 = arith.constant 0 : index
    %c0_314 = arith.constant 0 : index
    %c0_315 = arith.constant 0 : index
    %476 = vector.load %arg38[%c0_313, %c0_314, %c0_315] : memref<2x32x1xf32, #tpu.memory_space<vmem>>, vector<2x32x1xf32>
    tpu.vector_store %arg38[%c0_313, %c0_314, %c0_315], %475 {strides = array<i32>} : memref<2x32x1xf32, #tpu.memory_space<vmem>>, vector<2x32x1xf32>,
    return
  }
}

</mosaic_0001>

<llo_original>
// kernel: cvae_forward.1
$region0: #{cvae_forward.1}
  #allocation0 [shape = 'u32[]', space=smem, size = 0x4, offset = 0x4, fixed_abs, tag = 'smem constant byte address 0x4 - core index']
  #allocation1 [shape = 'u32[72,128]{1,0:T(1,128)}', space=vmem, size = 0x9000, scoped, tag = 'internal scratch']
  #allocation2 [shape = 'f32[1,1]{1,0:T(1,128)S(1)}', space=vmem, size = 0x200, scoped, tag = 'scoped memory for cvae_forward.1']
  #allocation3 [shape = 'f32[1,1]{1,0:T(1,128)S(1)}', space=vmem, size = 0x200, scoped, tag = 'scoped memory for cvae_forward.1']
  #allocation4 [shape = 'f32[1,1]{1,0:T(1,128)S(1)}', space=vmem, size = 0x200, scoped, tag = 'scoped memory for cvae_forward.1']
  %s0 = inlined_call_operand.smem [shape: u32[39], index: -1, kind: input, shape index: {}]
  %s1 = sld [smem:[%s0]]
  %s2 = scalar_lea.smem %s0, 1
  %s3 = sld [smem:[%s2]]
  %s4 = scalar_lea.smem %s0, 2
  %s5 = sld [smem:[%s4]]
  %s6 = scalar_lea.smem %s0, 3
  %s7 = sld [smem:[%s6]]
  %s8 = scalar_lea.smem %s0, 4
  %s9 = sld [smem:[%s8]]
  %s10 = scalar_lea.smem %s0, 5
  %s11 = sld [smem:[%s10]]
  %s12 = scalar_lea.smem %s0, 6
  %s13 = sld [smem:[%s12]]
  %s14 = scalar_lea.smem %s0, 7
  %s15 = sld [smem:[%s14]]
  %s16 = scalar_lea.smem %s0, 8
  %s17 = sld [smem:[%s16]]
  %s18 = scalar_lea.smem %s0, 9
  %s19 = sld [smem:[%s18]]
  %s20 = scalar_lea.smem %s0, 10
  %s21 = sld [smem:[%s20]]
  %s22 = scalar_lea.smem %s0, 11
  %s23 = sld [smem:[%s22]]
  %s24 = scalar_lea.smem %s0, 12
  %s25 = sld [smem:[%s24]]
  %s26 = scalar_lea.smem %s0, 13
  %s27 = sld [smem:[%s26]]
  %s28 = scalar_lea.smem %s0, 14
  %s29 = sld [smem:[%s28]]
  %s30 = scalar_lea.smem %s0, 15
  %s31 = sld [smem:[%s30]]
  %s32 = scalar_lea.smem %s0, 16
  %s33 = sld [smem:[%s32]]
  %s34 = scalar_lea.smem %s0, 17
  %s35 = sld [smem:[%s34]]
  %s36 = scalar_lea.smem %s0, 18
  %s37 = sld [smem:[%s36]]
  %s38 = scalar_lea.smem %s0, 19
  %s39 = sld [smem:[%s38]]
  %s40 = scalar_lea.smem %s0, 20
  %s41 = sld [smem:[%s40]]
  %s42 = scalar_lea.smem %s0, 21
  %s43 = sld [smem:[%s42]]
  %s44 = scalar_lea.smem %s0, 22
  %s45 = sld [smem:[%s44]]
  %s46 = scalar_lea.smem %s0, 23
  %s47 = sld [smem:[%s46]]
  %s48 = scalar_lea.smem %s0, 24
  %s49 = sld [smem:[%s48]]
  %s50 = scalar_lea.smem %s0, 25
  %s51 = sld [smem:[%s50]]
  %s52 = scalar_lea.smem %s0, 26
  %s53 = sld [smem:[%s52]]
  %s54 = scalar_lea.smem %s0, 27
  %s55 = sld [smem:[%s54]]
  %s56 = scalar_lea.smem %s0, 28
  %s57 = sld [smem:[%s56]]
  %s58 = scalar_lea.smem %s0, 29
  %s59 = sld [smem:[%s58]]
  %s60 = scalar_lea.smem %s0, 30
  %s61 = sld [smem:[%s60]]
  %s62 = scalar_lea.smem %s0, 31
  %s63 = sld [smem:[%s62]]
  %s64 = scalar_lea.smem %s0, 32
  %s65 = sld [smem:[%s64]]
  %s66 = scalar_lea.smem %s0, 33
  %s67 = sld [smem:[%s66]]
  %s68 = scalar_lea.smem %s0, 34
  %s69 = sld [smem:[%s68]]
  %s70 = scalar_lea.smem %s0, 35
  %s71 = sld [smem:[%s70]]
  %s72 = scalar_lea.smem %s0, 36
  %s73 = sld [smem:[%s72]]
  %s74 = scalar_lea.smem %s0, 37
  %s75 = sld [smem:[%s74]]
  %s76 = scalar_lea.smem %s0, 38
  %s77 = sld [smem:[%s76]]
  %78 = xla_tuple %s71, %s73, %s75, %s77
  %s79 = sld [smem:[#allocation0]]
  $region174: #{cvae_forward.1} parent=0
    _
  %s81 = ssub.s32 1, %s79
  %s82 = scalar_select 0, %s81, %s79
  %v83 = vstv %s11
  %84 = vst [vmem:[#allocation2] sm:$0x1] %v83
  %v85 = vstv %s13
  %86 = vst [vmem:[#allocation3] sm:$0x1] %v85
  %v87 = vstv %s69
  %88 = vst [vmem:[#allocation4] sm:$0x1] %v87
  $region1: #{cvae_forward.1} parent=0
    #allocation5 [shape = 'u8[1024]{0}', space=vmem, size = 0x400, scoped, tag = 'output window, operand 1, single buffered']
    #allocation6 [shape = 's32[1]{0}', space=sflag, size = 0x4, scoped, tag = 'scoped memory for cvae_forward.1']
    #allocation7 [shape = 'u8[1024]{0}', space=vmem, size = 0x400, scoped, tag = 'output window, operand 2, single buffered']
    #allocation8 [shape = 's32[1]{0}', space=sflag, size = 0x4, scoped, tag = 'scoped memory for cvae_forward.1']
    %89 = vsyncpa [#allocation6], 0
    %90 = vsyncpa [#allocation8], 0
    // Predicated region
    $region2: #{cvae_forward.1} parent=1 // pred_check
      _
    $region3: #{cvae_forward.1} parent=1 // pred_check_branch
      %92 = sbr.rel (0) target = $region5
    $region4: #{cvae_forward.1} parent=1 // pred_region
      _
    $region5: #{cvae_forward.1} parent=1 // pred_fallthru
      _
    // Predicated region
    $region6: #{cvae_forward.1} parent=1 // pred_check
      _
    $region7: #{cvae_forward.1} parent=1 // pred_check_branch
      %94 = sbr.rel (0) target = $region9
    $region8: #{cvae_forward.1} parent=1 // pred_region
      _
    $region9: #{cvae_forward.1} parent=1 // pred_fallthru
      _
    // Predicated region
    $region10: #{cvae_forward.1} parent=1 // pred_check
      _
    $region11: #{cvae_forward.1} parent=1 // pred_check_branch
      %96 = sbr.rel (0) target = $region13
    $region12: #{cvae_forward.1} parent=1 // pred_region
      _
    $region13: #{cvae_forward.1} parent=1 // pred_fallthru
      _
    // Predicated region
    $region14: #{cvae_forward.1} parent=1 // pred_check
      _
    $region15: #{cvae_forward.1} parent=1 // pred_check_branch
      %98 = sbr.rel (0) target = $region17
    $region16: #{cvae_forward.1} parent=1 // pred_region
      _
    $region17: #{cvae_forward.1} parent=1 // pred_fallthru
      _
    // Predicated region
    $region18: #{cvae_forward.1} parent=1 // pred_check
      _
    $region19: #{cvae_forward.1} parent=1 // pred_check_branch
      %100 = sbr.rel (0) target = $region21
    $region20: #{cvae_forward.1} parent=1 // pred_region
      _
    $region21: #{cvae_forward.1} parent=1 // pred_fallthru
      _
    // Predicated region
    $region22: #{cvae_forward.1} parent=1 // pred_check
      _
    $region23: #{cvae_forward.1} parent=1 // pred_check_branch
      %102 = sbr.rel (0) target = $region25
    $region24: #{cvae_forward.1} parent=1 // pred_region
      _
    $region25: #{cvae_forward.1} parent=1 // pred_fallthru
      _
    // Predicated region
    $region26: #{cvae_forward.1} parent=1 // pred_check
      _
    $region27: #{cvae_forward.1} parent=1 // pred_check_branch
      %104 = sbr.rel (0) target = $region29
    $region28: #{cvae_forward.1} parent=1 // pred_region
      _
    $region29: #{cvae_forward.1} parent=1 // pred_fallthru
      _
    // Predicated region
    $region30: #{cvae_forward.1} parent=1 // pred_check
      _
    $region31: #{cvae_forward.1} parent=1 // pred_check_branch
      %106 = sbr.rel (0) target = $region33
    $region32: #{cvae_forward.1} parent=1 // pred_region
      _
    $region33: #{cvae_forward.1} parent=1 // pred_fallthru
      _
    // Predicated region
    $region34: #{cvae_forward.1} parent=1 // pred_check
      _
    $region35: #{cvae_forward.1} parent=1 // pred_check_branch
      %108 = sbr.rel (0) target = $region37
    $region36: #{cvae_forward.1} parent=1 // pred_region
      _
    $region37: #{cvae_forward.1} parent=1 // pred_fallthru
      _
    // Predicated region
    $region38: #{cvae_forward.1} parent=1 // pred_check
      _
    $region39: #{cvae_forward.1} parent=1 // pred_check_branch
      %110 = sbr.rel (0) target = $region41
    $region40: #{cvae_forward.1} parent=1 // pred_region
      _
    $region41: #{cvae_forward.1} parent=1 // pred_fallthru
      _
    // Predicated region
    $region42: #{cvae_forward.1} parent=1 // pred_check
      _
    $region43: #{cvae_forward.1} parent=1 // pred_check_branch
      %112 = sbr.rel (0) target = $region45
    $region44: #{cvae_forward.1} parent=1 // pred_region
      _
    $region45: #{cvae_forward.1} parent=1 // pred_fallthru
      _
    // Predicated region
    $region46: #{cvae_forward.1} parent=1 // pred_check
      _
    $region47: #{cvae_forward.1} parent=1 // pred_check_branch
      %114 = sbr.rel (0) target = $region49
    $region48: #{cvae_forward.1} parent=1 // pred_region
      _
    $region49: #{cvae_forward.1} parent=1 // pred_fallthru
      _
    // Predicated region
    $region50: #{cvae_forward.1} parent=1 // pred_check
      _
    $region51: #{cvae_forward.1} parent=1 // pred_check_branch
      %116 = sbr.rel (0) target = $region53
    $region52: #{cvae_forward.1} parent=1 // pred_region
      _
    $region53: #{cvae_forward.1} parent=1 // pred_fallthru
      _
    // Predicated region
    $region54: #{cvae_forward.1} parent=1 // pred_check
      _
    $region55: #{cvae_forward.1} parent=1 // pred_check_branch
      %118 = sbr.rel (0) target = $region57
    $region56: #{cvae_forward.1} parent=1 // pred_region
      _
    $region57: #{cvae_forward.1} parent=1 // pred_fallthru
      _
    // Predicated region
    $region58: #{cvae_forward.1} parent=1 // pred_check
      _
    $region59: #{cvae_forward.1} parent=1 // pred_check_branch
      %120 = sbr.rel (0) target = $region61
    $region60: #{cvae_forward.1} parent=1 // pred_region
      _
    $region61: #{cvae_forward.1} parent=1 // pred_fallthru
      _
    // Predicated region
    $region62: #{cvae_forward.1} parent=1 // pred_check
      _
    $region63: #{cvae_forward.1} parent=1 // pred_check_branch
      %122 = sbr.rel (0) target = $region65
    $region64: #{cvae_forward.1} parent=1 // pred_region
      _
    $region65: #{cvae_forward.1} parent=1 // pred_fallthru
      _
    // Predicated region
    $region66: #{cvae_forward.1} parent=1 // pred_check
      _
    $region67: #{cvae_forward.1} parent=1 // pred_check_branch
      %124 = sbr.rel (0) target = $region69
    $region68: #{cvae_forward.1} parent=1 // pred_region
      _
    $region69: #{cvae_forward.1} parent=1 // pred_fallthru
      _
    // Predicated region
    $region70: #{cvae_forward.1} parent=1 // pred_check
      _
    $region71: #{cvae_forward.1} parent=1 // pred_check_branch
      %126 = sbr.rel (0) target = $region73
    $region72: #{cvae_forward.1} parent=1 // pred_region
      _
    $region73: #{cvae_forward.1} parent=1 // pred_fallthru
      _
    // Predicated region
    $region74: #{cvae_forward.1} parent=1 // pred_check
      _
    $region75: #{cvae_forward.1} parent=1 // pred_check_branch
      %128 = sbr.rel (0) target = $region77
    $region76: #{cvae_forward.1} parent=1 // pred_region
      _
    $region77: #{cvae_forward.1} parent=1 // pred_fallthru
      _
    // Predicated region
    $region78: #{cvae_forward.1} parent=1 // pred_check
      _
    $region79: #{cvae_forward.1} parent=1 // pred_check_branch
      %130 = sbr.rel (0) target = $region81
    $region80: #{cvae_forward.1} parent=1 // pred_region
      _
    $region81: #{cvae_forward.1} parent=1 // pred_fallthru
      _
    // Predicated region
    $region82: #{cvae_forward.1} parent=1 // pred_check
      _
    $region83: #{cvae_forward.1} parent=1 // pred_check_branch
      %132 = sbr.rel (0) target = $region85
    $region84: #{cvae_forward.1} parent=1 // pred_region
      _
    $region85: #{cvae_forward.1} parent=1 // pred_fallthru
      _
    // Predicated region
    $region86: #{cvae_forward.1} parent=1 // pred_check
      _
    $region87: #{cvae_forward.1} parent=1 // pred_check_branch
      %134 = sbr.rel (0) target = $region89
    $region88: #{cvae_forward.1} parent=1 // pred_region
      _
    $region89: #{cvae_forward.1} parent=1 // pred_fallthru
      _
    // Predicated region
    $region90: #{cvae_forward.1} parent=1 // pred_check
      _
    $region91: #{cvae_forward.1} parent=1 // pred_check_branch
      %136 = sbr.rel (0) target = $region93
    $region92: #{cvae_forward.1} parent=1 // pred_region
      _
    $region93: #{cvae_forward.1} parent=1 // pred_fallthru
      _
    // Predicated region
    $region94: #{cvae_forward.1} parent=1 // pred_check
      _
    $region95: #{cvae_forward.1} parent=1 // pred_check_branch
      %138 = sbr.rel (0) target = $region97
    $region96: #{cvae_forward.1} parent=1 // pred_region
      _
    $region97: #{cvae_forward.1} parent=1 // pred_fallthru
      _
    // Predicated region
    $region98: #{cvae_forward.1} parent=1 // pred_check
      _
    $region99: #{cvae_forward.1} parent=1 // pred_check_branch
      %140 = sbr.rel (0) target = $region101
    $region100: #{cvae_forward.1} parent=1 // pred_region
      _
    $region101: #{cvae_forward.1} parent=1 // pred_fallthru
      _
    // Predicated region
    $region102: #{cvae_forward.1} parent=1 // pred_check
      _
    $region103: #{cvae_forward.1} parent=1 // pred_check_branch
      %142 = sbr.rel (0) target = $region105
    $region104: #{cvae_forward.1} parent=1 // pred_region
      _
    $region105: #{cvae_forward.1} parent=1 // pred_fallthru
      _
    // Predicated region
    $region106: #{cvae_forward.1} parent=1 // pred_check
      _
    $region107: #{cvae_forward.1} parent=1 // pred_check_branch
      %144 = sbr.rel (0) target = $region109
    $region108: #{cvae_forward.1} parent=1 // pred_region
      _
    $region109: #{cvae_forward.1} parent=1 // pred_fallthru
      _
    // Predicated region
    $region110: #{cvae_forward.1} parent=1 // pred_check
      _
    $region111: #{cvae_forward.1} parent=1 // pred_check_branch
      %146 = sbr.rel (0) target = $region113
    $region112: #{cvae_forward.1} parent=1 // pred_region
      _
    $region113: #{cvae_forward.1} parent=1 // pred_fallthru
      _
    // Predicated region
    $region114: #{cvae_forward.1} parent=1 // pred_check
      _
    $region115: #{cvae_forward.1} parent=1 // pred_check_branch
      %148 = sbr.rel (0) target = $region117
    $region116: #{cvae_forward.1} parent=1 // pred_region
      _
    $region117: #{cvae_forward.1} parent=1 // pred_fallthru
      _
    // Predicated region
    $region118: #{cvae_forward.1} parent=1 // pred_check
      _
    $region119: #{cvae_forward.1} parent=1 // pred_check_branch
      %150 = sbr.rel (0) target = $region121
    $region120: #{cvae_forward.1} parent=1 // pred_region
      _
    $region121: #{cvae_forward.1} parent=1 // pred_fallthru
      _
    // Predicated region
    $region122: #{cvae_forward.1} parent=1 // pred_check
      _
    $region123: #{cvae_forward.1} parent=1 // pred_check_branch
      %152 = sbr.rel (0) target = $region125
    $region124: #{cvae_forward.1} parent=1 // pred_region
      _
    $region125: #{cvae_forward.1} parent=1 // pred_fallthru
      _
    // Predicated region
    $region126: #{cvae_forward.1} parent=1 // pred_check
      _
    $region127: #{cvae_forward.1} parent=1 // pred_check_branch
      %154 = sbr.rel (0) target = $region129
    $region128: #{cvae_forward.1} parent=1 // pred_region
      _
    $region129: #{cvae_forward.1} parent=1 // pred_fallthru
      _
    // Predicated region
    $region130: #{cvae_forward.1} parent=1 // pred_check
      _
    $region131: #{cvae_forward.1} parent=1 // pred_check_branch
      %156 = sbr.rel (0) target = $region133
    $region132: #{cvae_forward.1} parent=1 // pred_region
      _
    $region133: #{cvae_forward.1} parent=1 // pred_fallthru
      _
    // Predicated region
    $region134: #{cvae_forward.1} parent=1 // pred_check
      _
    $region135: #{cvae_forward.1} parent=1 // pred_check_branch
      %158 = sbr.rel (0) target = $region137
    $region136: #{cvae_forward.1} parent=1 // pred_region
      _
    $region137: #{cvae_forward.1} parent=1 // pred_fallthru
      _
    // Predicated region
    $region138: #{cvae_forward.1} parent=1 // pred_check
      _
    $region139: #{cvae_forward.1} parent=1 // pred_check_branch
      %160 = sbr.rel (0) target = $region141
    $region140: #{cvae_forward.1} parent=1 // pred_region
      _
    $region141: #{cvae_forward.1} parent=1 // pred_fallthru
      _
    %v161 = vld [vmem:[%s1] sm:$0xff]
    %v162 = vld [vmem:[%s1 + $0x8] sm:$0xff]
    %v163 = vld [vmem:[%s1 + $0x10] sm:$0xff]
    %v164 = vld [vmem:[%s1 + $0x18] sm:$0xff]
    %v165 = vld [vmem:[%s1 + $0x20] sm:$0xff]
    %v166 = vld [vmem:[%s1 + $0x28] sm:$0xff]
    %v167 = vld [vmem:[%s1 + $0x30] sm:$0xff]
    %v168 = vld [vmem:[%s1 + $0x38] sm:$0xff]
    %v169 = vld [vmem:[#allocation2] sm:$0x1]
    %v171 = vperm.slane %v169, 0
    %v173 = vmul.f32 %v161, %v171
    %v174 = vmul.f32 %v162, %v171
    %v175 = vmul.f32 %v163, %v171
    %v176 = vmul.f32 %v164, %v171
    %v177 = vmul.f32 %v165, %v171
    %v178 = vmul.f32 %v166, %v171
    %v179 = vmul.f32 %v167, %v171
    %v180 = vmul.f32 %v168, %v171
    %v181 = vld [vmem:[#allocation3] sm:$0x1]
    %v183 = vperm.slane %v181, 0
    %v185 = vadd.f32 %v173, %v183
    %v186 = vadd.f32 %v174, %v183
    %v187 = vadd.f32 %v175, %v183
    %v188 = vadd.f32 %v176, %v183
    %v189 = vadd.f32 %v177, %v183
    %v190 = vadd.f32 %v178, %v183
    %v191 = vadd.f32 %v179, %v183
    %v192 = vadd.f32 %v180, %v183
    %v193 = vld [vmem:[%s7] sm:$0xff]
    %v194 = vld [vmem:[%s7 + $0x8] sm:$0xff]
    %v195 = vld [vmem:[%s7 + $0x10] sm:$0xff]
    %v196 = vld [vmem:[%s7 + $0x18] sm:$0xff]
    %v197 = vld [vmem:[%s3] sm:$0x1]
    %v198 = vld [vmem:[%s3 + $0x1] sm:$0x1]
    %v201 = vperm.slane %v197, 0
    %v202 = vperm.slane %v198, 0
    %v205 = vmul.f32 %v193, %v201
    %v206 = vmul.f32 %v194, %v201
    %v207 = vmul.f32 %v195, %v201
    %v208 = vmul.f32 %v196, %v201
    %v209 = vmul.f32 %v193, %v202
    %v210 = vmul.f32 %v194, %v202
    %v211 = vmul.f32 %v195, %v202
    %v212 = vmul.f32 %v196, %v202
    %vm213 = vcmask 80896
    %v214 = vsel %vm213, %v205, 0.0
    %215 = vadd.xlane.f32.xlu0 %v214
    %v216 = vpop.xlane.xlu0 %215
    %v217 = vsel %vm213, %v206, 0.0
    %218 = vadd.xlane.f32.xlu0 %v217
    %v219 = vpop.xlane.xlu0 %218
    %v220 = vsel %vm213, %v207, 0.0
    %221 = vadd.xlane.f32.xlu0 %v220
    %v222 = vpop.xlane.xlu0 %221
    %v223 = vsel %vm213, %v208, 0.0
    %224 = vadd.xlane.f32.xlu0 %v223
    %v225 = vpop.xlane.xlu0 %224
    %v226 = vsel %vm213, %v209, 0.0
    %227 = vadd.xlane.f32.xlu0 %v226
    %v228 = vpop.xlane.xlu0 %227
    %v229 = vsel %vm213, %v210, 0.0
    %230 = vadd.xlane.f32.xlu0 %v229
    %v231 = vpop.xlane.xlu0 %230
    %v232 = vsel %vm213, %v211, 0.0
    %233 = vadd.xlane.f32.xlu0 %v232
    %v234 = vpop.xlane.xlu0 %233
    %v235 = vsel %vm213, %v212, 0.0
    %236 = vadd.xlane.f32.xlu0 %v235
    %v237 = vpop.xlane.xlu0 %236
    %v238 = vld [vmem:[%s9] sm:$0xff]
    %v239 = vld [vmem:[%s9 + $0x8] sm:$0xff]
    %v240 = vld [vmem:[%s9 + $0x10] sm:$0xff]
    %v241 = vld [vmem:[%s9 + $0x18] sm:$0xff]
    %v242 = vadd.f32 %v216, %v238
    %v243 = vadd.f32 %v219, %v239
    %v244 = vadd.f32 %v222, %v240
    %v245 = vadd.f32 %v225, %v241
    %v246 = vadd.f32 %v228, %v238
    %v247 = vadd.f32 %v231, %v239
    %v248 = vadd.f32 %v234, %v240
    %v249 = vadd.f32 %v237, %v241
    %v250 = vlaneseq
    %v251 = vand.u32 %v250, 127
    %vm252 = vcmp.eq.s32.totalorder %v251, 0
    %v253 = vsel %vm252, 1, 0
    %vm254 = vcmp.eq.s32.totalorder %v253, 1
    %256 = vset.pattern.permute.xlu0 0
    %257 = vperm.xlu0 %256, %v185
    %v258 = vpop.permute.xlu0 %257
    %261 = vset.pattern.permute.xlu0 0
    %262 = vperm.xlu0 %261, %v186
    %v263 = vpop.permute.xlu0 %262
    %266 = vset.pattern.permute.xlu0 0
    %267 = vperm.xlu0 %266, %v187
    %v268 = vpop.permute.xlu0 %267
    %271 = vset.pattern.permute.xlu0 0
    %272 = vperm.xlu0 %271, %v188
    %v273 = vpop.permute.xlu0 %272
    %276 = vset.pattern.permute.xlu0 0
    %277 = vperm.xlu0 %276, %v189
    %v278 = vpop.permute.xlu0 %277
    %281 = vset.pattern.permute.xlu0 0
    %282 = vperm.xlu0 %281, %v190
    %v283 = vpop.permute.xlu0 %282
    %286 = vset.pattern.permute.xlu0 0
    %287 = vperm.xlu0 %286, %v191
    %v288 = vpop.permute.xlu0 %287
    %291 = vset.pattern.permute.xlu0 0
    %292 = vperm.xlu0 %291, %v192
    %v293 = vpop.permute.xlu0 %292
    %296 = vset.pattern.permute.xlu0 0
    %297 = vperm.xlu0 %296, %v242
    %v298 = vpop.permute.xlu0 %297
    %301 = vset.pattern.permute.xlu0 0
    %302 = vperm.xlu0 %301, %v243
    %v303 = vpop.permute.xlu0 %302
    %306 = vset.pattern.permute.xlu0 0
    %307 = vperm.xlu0 %306, %v244
    %v308 = vpop.permute.xlu0 %307
    %311 = vset.pattern.permute.xlu0 0
    %312 = vperm.xlu0 %311, %v245
    %v313 = vpop.permute.xlu0 %312
    %316 = vset.pattern.permute.xlu0 0
    %317 = vperm.xlu0 %316, %v246
    %v318 = vpop.permute.xlu0 %317
    %321 = vset.pattern.permute.xlu0 0
    %322 = vperm.xlu0 %321, %v247
    %v323 = vpop.permute.xlu0 %322
    %326 = vset.pattern.permute.xlu0 0
    %327 = vperm.xlu0 %326, %v248
    %v328 = vpop.permute.xlu0 %327
    %331 = vset.pattern.permute.xlu0 0
    %332 = vperm.xlu0 %331, %v249
    %v333 = vpop.permute.xlu0 %332
    %v335 = vsel %vm254, %v258, %v298
    %v336 = vsel %vm254, %v263, %v303
    %v337 = vsel %vm254, %v268, %v308
    %v338 = vsel %vm254, %v273, %v313
    %v339 = vsel %vm254, %v278, %v318
    %v340 = vsel %vm254, %v283, %v323
    %v341 = vsel %vm254, %v288, %v328
    %v342 = vsel %vm254, %v293, %v333
    %vm343 = vcmask 15360
    %344 = vst.msk [vmem:[%s71] sm:$0xff] %vm343, %v335
    %345 = vst.msk [vmem:[%s71 + $0x8] sm:$0xff] %vm343, %v336
    %346 = vst.msk [vmem:[%s71 + $0x10] sm:$0xff] %vm343, %v337
    %347 = vst.msk [vmem:[%s71 + $0x18] sm:$0xff] %vm343, %v338
    %348 = vst.msk [vmem:[%s71 + $0x20] sm:$0xff] %vm343, %v339
    %349 = vst.msk [vmem:[%s71 + $0x28] sm:$0xff] %vm343, %v340
    %350 = vst.msk [vmem:[%s71 + $0x30] sm:$0xff] %vm343, %v341
    %351 = vst.msk [vmem:[%s71 + $0x38] sm:$0xff] %vm343, %v342
    %v352 = vld [vmem:[%s17] sm:$0x3]
    %v354 = vsel %vm343, %v335, 0
    %v357 = vsel %vm343, %v336, 0
    %v360 = vsel %vm343, %v337, 0
    %v363 = vsel %vm343, %v338, 0
    %v366 = vsel %vm343, %v339, 0
    %v369 = vsel %vm343, %v340, 0
    %v372 = vsel %vm343, %v341, 0
    %v375 = vsel %vm343, %v342, 0
    %vm377 = vcmask 1041408
    %v379 = vsel %vm377, %v352, 0
    %381 = vmatpush.msra.mxu0 0.0
    %382 = vmatpush.msra.mxu0 0.0
    %383 = vmatpush.msra.mxu0 0.0
    %384 = vmatpush.msra.mxu0 0.0
    %385 = vmatpush.msra.mxu0 0.0
    %386 = vmatpush.msra.mxu0 0.0
    %387 = vmatpush.msra.mxu0 0.0
    %388 = vmatpush.msra.mxu0 0.0
    %389 = vmatpush.msra.mxu0 0.0
    %390 = vmatpush.msra.mxu0 0.0
    %391 = vmatpush.msra.mxu0 0.0
    %392 = vmatpush.msra.mxu0 0.0
    %393 = vmatpush.msra.mxu0 0.0
    %394 = vmatpush.msra.mxu0 0.0
    %395 = vmatpush.msra.mxu0 0.0
    %396 = vmatpush.msra.mxu0 %v379
    %397 = vmatmul.f32.gmra.mxu0 %v354
    %v398 = vpop.f32.mrf.mxu0
    %v399 = vadd.f32 0.0, %v398
    %400 = vmatmul.f32.gmra.mxu0 %v357
    %v401 = vpop.f32.mrf.mxu0
    %v402 = vadd.f32 0.0, %v401
    %403 = vmatmul.f32.gmra.mxu0 %v360
    %v404 = vpop.f32.mrf.mxu0
    %v405 = vadd.f32 0.0, %v404
    %406 = vmatmul.f32.gmra.mxu0 %v363
    %v407 = vpop.f32.mrf.mxu0
    %v408 = vadd.f32 0.0, %v407
    %409 = vmatmul.f32.gmra.mxu0 %v366
    %v410 = vpop.f32.mrf.mxu0
    %v411 = vadd.f32 0.0, %v410
    %412 = vmatmul.f32.gmra.mxu0 %v369
    %v413 = vpop.f32.mrf.mxu0
    %v414 = vadd.f32 0.0, %v413
    %415 = vmatmul.f32.gmra.mxu0 %v372
    %v416 = vpop.f32.mrf.mxu0
    %v417 = vadd.f32 0.0, %v416
    %418 = vmatmul.f32.gmra.mxu0 %v375
    %v419 = vpop.f32.mrf.mxu0
    %v420 = vadd.f32 0.0, %v419
    %421 = vdwg.mxu0
    %v422 = vld [vmem:[%s15] sm:$0xff]
    %v423 = vld [vmem:[%s15 + $0x8] sm:$0xff]
    %s424 = scalar_lea.vmem %s17, 2
    %v425 = vld [vmem:[%s424] sm:$0x3]
    %v427 = vsel %vm377, %v425, 0
    %429 = vmatpush.msra.mxu0 0.0
    %430 = vmatpush.msra.mxu0 0.0
    %431 = vmatpush.msra.mxu0 0.0
    %432 = vmatpush.msra.mxu0 0.0
    %433 = vmatpush.msra.mxu0 0.0
    %434 = vmatpush.msra.mxu0 0.0
    %435 = vmatpush.msra.mxu0 0.0
    %436 = vmatpush.msra.mxu0 0.0
    %437 = vmatpush.msra.mxu0 0.0
    %438 = vmatpush.msra.mxu0 0.0
    %439 = vmatpush.msra.mxu0 0.0
    %440 = vmatpush.msra.mxu0 0.0
    %441 = vmatpush.msra.mxu0 0.0
    %442 = vmatpush.msra.mxu0 0.0
    %443 = vmatpush.msra.mxu0 0.0
    %444 = vmatpush.msra.mxu0 %v427
    %445 = vmatmul.f32.gmra.mxu0 %v354
    %v446 = vpop.f32.mrf.mxu0
    %v447 = vadd.f32 0.0, %v446
    %448 = vmatmul.f32.gmra.mxu0 %v357
    %v449 = vpop.f32.mrf.mxu0
    %v450 = vadd.f32 0.0, %v449
    %451 = vmatmul.f32.gmra.mxu0 %v360
    %v452 = vpop.f32.mrf.mxu0
    %v453 = vadd.f32 0.0, %v452
    %454 = vmatmul.f32.gmra.mxu0 %v363
    %v455 = vpop.f32.mrf.mxu0
    %v456 = vadd.f32 0.0, %v455
    %457 = vmatmul.f32.gmra.mxu0 %v366
    %v458 = vpop.f32.mrf.mxu0
    %v459 = vadd.f32 0.0, %v458
    %460 = vmatmul.f32.gmra.mxu0 %v369
    %v461 = vpop.f32.mrf.mxu0
    %v462 = vadd.f32 0.0, %v461
    %463 = vmatmul.f32.gmra.mxu0 %v372
    %v464 = vpop.f32.mrf.mxu0
    %v465 = vadd.f32 0.0, %v464
    %466 = vmatmul.f32.gmra.mxu0 %v375
    %v467 = vpop.f32.mrf.mxu0
    %v468 = vadd.f32 0.0, %v467
    %469 = vdwg.mxu0
    %s470 = scalar_lea.vmem %s15, 16
    %v471 = vld [vmem:[%s470] sm:$0xff]
    %v472 = vld [vmem:[%s470 + $0x8] sm:$0xff]
    %vm473 = vcmask 261120
    %v475 = vsel %vm473, %v471, 0
    %v478 = vsel %vm473, %v472, 0
    %480 = vmatpush.msra.mxu0 0.0
    %481 = vmatpush.msra.mxu0 0.0
    %482 = vmatpush.msra.mxu0 0.0
    %483 = vmatpush.msra.mxu0 0.0
    %484 = vmatpush.msra.mxu0 0.0
    %485 = vmatpush.msra.mxu0 0.0
    %486 = vmatpush.msra.mxu0 0.0
    %487 = vmatpush.msra.mxu0 0.0
    %488 = vmatpush.msra.mxu0 0.0
    %489 = vmatpush.msra.mxu0 0.0
    %490 = vmatpush.msra.mxu0 0.0
    %491 = vmatpush.msra.mxu0 0.0
    %492 = vmatpush.msra.mxu0 %v456
    %493 = vmatpush.msra.mxu0 %v453
    %494 = vmatpush.msra.mxu0 %v450
    %495 = vmatpush.msra.mxu0 %v447
    %496 = vmatmul.f32.gmra.mxu0 %v475
    %v497 = vpop.f32.mrf.mxu0
    %v498 = vadd.f32 0.0, %v497
    %499 = vmatmul.f32.gmra.mxu0 %v478
    %v500 = vpop.f32.mrf.mxu0
    %v501 = vadd.f32 0.0, %v500
    %502 = vdwg.mxu0
    %503 = vmatpush.msra.mxu0 0.0
    %504 = vmatpush.msra.mxu0 0.0
    %505 = vmatpush.msra.mxu0 0.0
    %506 = vmatpush.msra.mxu0 0.0
    %507 = vmatpush.msra.mxu0 0.0
    %508 = vmatpush.msra.mxu0 0.0
    %509 = vmatpush.msra.mxu0 0.0
    %510 = vmatpush.msra.mxu0 0.0
    %511 = vmatpush.msra.mxu0 0.0
    %512 = vmatpush.msra.mxu0 0.0
    %513 = vmatpush.msra.mxu0 0.0
    %514 = vmatpush.msra.mxu0 0.0
    %515 = vmatpush.msra.mxu0 %v468
    %516 = vmatpush.msra.mxu0 %v465
    %517 = vmatpush.msra.mxu0 %v462
    %518 = vmatpush.msra.mxu0 %v459
    %519 = vmatmul.f32.gmra.mxu0 %v475
    %v520 = vpop.f32.mrf.mxu0
    %v521 = vadd.f32 0.0, %v520
    %522 = vmatmul.f32.gmra.mxu0 %v478
    %v523 = vpop.f32.mrf.mxu0
    %v524 = vadd.f32 0.0, %v523
    %525 = vdwg.mxu0
    %v527 = vsel %vm473, %v422, 0
    %v530 = vsel %vm473, %v423, 0
    %532 = vmatpush.msra.mxu0 0.0
    %533 = vmatpush.msra.mxu0 0.0
    %534 = vmatpush.msra.mxu0 0.0
    %535 = vmatpush.msra.mxu0 0.0
    %536 = vmatpush.msra.mxu0 0.0
    %537 = vmatpush.msra.mxu0 0.0
    %538 = vmatpush.msra.mxu0 0.0
    %539 = vmatpush.msra.mxu0 0.0
    %540 = vmatpush.msra.mxu0 0.0
    %541 = vmatpush.msra.mxu0 0.0
    %542 = vmatpush.msra.mxu0 0.0
    %543 = vmatpush.msra.mxu0 0.0
    %544 = vmatpush.msra.mxu0 %v408
    %545 = vmatpush.msra.mxu0 %v405
    %546 = vmatpush.msra.mxu0 %v402
    %547 = vmatpush.msra.mxu0 %v399
    %548 = vmatmul.f32.gmra.mxu0 %v527
    %v549 = vpop.f32.mrf.mxu0
    %v550 = vadd.f32 %v498, %v549
    %551 = vmatmul.f32.gmra.mxu0 %v530
    %v552 = vpop.f32.mrf.mxu0
    %v553 = vadd.f32 %v501, %v552
    %554 = vdwg.mxu0
    %555 = vmatpush.msra.mxu0 0.0
    %556 = vmatpush.msra.mxu0 0.0
    %557 = vmatpush.msra.mxu0 0.0
    %558 = vmatpush.msra.mxu0 0.0
    %559 = vmatpush.msra.mxu0 0.0
    %560 = vmatpush.msra.mxu0 0.0
    %561 = vmatpush.msra.mxu0 0.0
    %562 = vmatpush.msra.mxu0 0.0
    %563 = vmatpush.msra.mxu0 0.0
    %564 = vmatpush.msra.mxu0 0.0
    %565 = vmatpush.msra.mxu0 0.0
    %566 = vmatpush.msra.mxu0 0.0
    %567 = vmatpush.msra.mxu0 %v420
    %568 = vmatpush.msra.mxu0 %v417
    %569 = vmatpush.msra.mxu0 %v414
    %570 = vmatpush.msra.mxu0 %v411
    %571 = vmatmul.f32.gmra.mxu0 %v527
    %v572 = vpop.f32.mrf.mxu0
    %v573 = vadd.f32 %v521, %v572
    %574 = vmatmul.f32.gmra.mxu0 %v530
    %v575 = vpop.f32.mrf.mxu0
    %v576 = vadd.f32 %v524, %v575
    %577 = vdwg.mxu0
    %s578 = scalar_lea.vmem %s17, 4
    %v579 = vld [vmem:[%s578] sm:$0x3]
    %v581 = vsel %vm377, %v579, 0
    %583 = vmatpush.msra.mxu0 0.0
    %584 = vmatpush.msra.mxu0 0.0
    %585 = vmatpush.msra.mxu0 0.0
    %586 = vmatpush.msra.mxu0 0.0
    %587 = vmatpush.msra.mxu0 0.0
    %588 = vmatpush.msra.mxu0 0.0
    %589 = vmatpush.msra.mxu0 0.0
    %590 = vmatpush.msra.mxu0 0.0
    %591 = vmatpush.msra.mxu0 0.0
    %592 = vmatpush.msra.mxu0 0.0
    %593 = vmatpush.msra.mxu0 0.0
    %594 = vmatpush.msra.mxu0 0.0
    %595 = vmatpush.msra.mxu0 0.0
    %596 = vmatpush.msra.mxu0 0.0
    %597 = vmatpush.msra.mxu0 0.0
    %598 = vmatpush.msra.mxu0 %v581
    %599 = vmatmul.f32.gmra.mxu0 %v354
    %v600 = vpop.f32.mrf.mxu0
    %v601 = vadd.f32 0.0, %v600
    %602 = vmatmul.f32.gmra.mxu0 %v357
    %v603 = vpop.f32.mrf.mxu0
    %v604 = vadd.f32 0.0, %v603
    %605 = vmatmul.f32.gmra.mxu0 %v360
    %v606 = vpop.f32.mrf.mxu0
    %v607 = vadd.f32 0.0, %v606
    %608 = vmatmul.f32.gmra.mxu0 %v363
    %v609 = vpop.f32.mrf.mxu0
    %v610 = vadd.f32 0.0, %v609
    %611 = vmatmul.f32.gmra.mxu0 %v366
    %v612 = vpop.f32.mrf.mxu0
    %v613 = vadd.f32 0.0, %v612
    %614 = vmatmul.f32.gmra.mxu0 %v369
    %v615 = vpop.f32.mrf.mxu0
    %v616 = vadd.f32 0.0, %v615
    %617 = vmatmul.f32.gmra.mxu0 %v372
    %v618 = vpop.f32.mrf.mxu0
    %v619 = vadd.f32 0.0, %v618
    %620 = vmatmul.f32.gmra.mxu0 %v375
    %v621 = vpop.f32.mrf.mxu0
    %v622 = vadd.f32 0.0, %v621
    %623 = vdwg.mxu0
    %s624 = scalar_lea.vmem %s15, 32
    %v625 = vld [vmem:[%s624] sm:$0xff]
    %v626 = vld [vmem:[%s624 + $0x8] sm:$0xff]
    %v628 = vsel %vm473, %v625, 0
    %v631 = vsel %vm473, %v626, 0
    %633 = vmatpush.msra.mxu0 0.0
    %634 = vmatpush.msra.mxu0 0.0
    %635 = vmatpush.msra.mxu0 0.0
    %636 = vmatpush.msra.mxu0 0.0
    %637 = vmatpush.msra.mxu0 0.0
    %638 = vmatpush.msra.mxu0 0.0
    %639 = vmatpush.msra.mxu0 0.0
    %640 = vmatpush.msra.mxu0 0.0
    %641 = vmatpush.msra.mxu0 0.0
    %642 = vmatpush.msra.mxu0 0.0
    %643 = vmatpush.msra.mxu0 0.0
    %644 = vmatpush.msra.mxu0 0.0
    %645 = vmatpush.msra.mxu0 %v610
    %646 = vmatpush.msra.mxu0 %v607
    %647 = vmatpush.msra.mxu0 %v604
    %648 = vmatpush.msra.mxu0 %v601
    %649 = vmatmul.f32.gmra.mxu0 %v628
    %v650 = vpop.f32.mrf.mxu0
    %v651 = vadd.f32 0.0, %v650
    %652 = vmatmul.f32.gmra.mxu0 %v631
    %v653 = vpop.f32.mrf.mxu0
    %v654 = vadd.f32 0.0, %v653
    %655 = vdwg.mxu0
    %656 = vmatpush.msra.mxu0 0.0
    %657 = vmatpush.msra.mxu0 0.0
    %658 = vmatpush.msra.mxu0 0.0
    %659 = vmatpush.msra.mxu0 0.0
    %660 = vmatpush.msra.mxu0 0.0
    %661 = vmatpush.msra.mxu0 0.0
    %662 = vmatpush.msra.mxu0 0.0
    %663 = vmatpush.msra.mxu0 0.0
    %664 = vmatpush.msra.mxu0 0.0
    %665 = vmatpush.msra.mxu0 0.0
    %666 = vmatpush.msra.mxu0 0.0
    %667 = vmatpush.msra.mxu0 0.0
    %668 = vmatpush.msra.mxu0 %v622
    %669 = vmatpush.msra.mxu0 %v619
    %670 = vmatpush.msra.mxu0 %v616
    %671 = vmatpush.msra.mxu0 %v613
    %672 = vmatmul.f32.gmra.mxu0 %v628
    %v673 = vpop.f32.mrf.mxu0
    %v674 = vadd.f32 0.0, %v673
    %675 = vmatmul.f32.gmra.mxu0 %v631
    %v676 = vpop.f32.mrf.mxu0
    %v677 = vadd.f32 0.0, %v676
    %678 = vdwg.mxu0
    %v679 = vadd.f32 %v550, %v651
    %v680 = vadd.f32 %v553, %v654
    %v681 = vadd.f32 %v573, %v674
    %v682 = vadd.f32 %v576, %v677
    %v683 = vsel %vm473, %v679, 0.0
    %v684 = vsel %vm473, %v680, 0.0
    %v685 = vadd.f32 %v683, %v684
    %v686 = vrot.slane %v685, 4
    %v687 = vadd.f32 %v685, %v686
    %v688 = vrot.slane %v687, 2
    %v689 = vadd.f32 %v687, %v688
    %v690 = vrot.slane %v689, 1
    %v691 = vadd.f32 %v689, %v690
    %v692 = vsel %vm473, %v681, 0.0
    %v693 = vsel %vm473, %v682, 0.0
    %v694 = vadd.f32 %v692, %v693
    %v695 = vrot.slane %v694, 4
    %v696 = vadd.f32 %v694, %v695
    %v697 = vrot.slane %v696, 2
    %v698 = vadd.f32 %v696, %v697
    %v699 = vrot.slane %v698, 1
    %v700 = vadd.f32 %v698, %v699
    %v701 = vsel %vm473, %v691, 0.0
    %v702 = vsel %vm473, %v700, 0.0
    %v703 = vadd.f32 %v701, %v702
    %v704 = vmul.f32 %v703, 0.03125
    %v705 = vsub.f32 %v679, %v704
    %v706 = vsub.f32 %v680, %v704
    %v707 = vsub.f32 %v681, %v704
    %v708 = vsub.f32 %v682, %v704
    %v709 = vmul.f32 %v705, %v705
    %v710 = vmul.f32 %v706, %v706
    %v711 = vmul.f32 %v707, %v707
    %v712 = vmul.f32 %v708, %v708
    %v713 = vsel %vm473, %v709, 0.0
    %v714 = vsel %vm473, %v710, 0.0
    %v715 = vadd.f32 %v713, %v714
    %v716 = vrot.slane %v715, 4
    %v717 = vadd.f32 %v715, %v716
    %v718 = vrot.slane %v717, 2
    %v719 = vadd.f32 %v717, %v718
    %v720 = vrot.slane %v719, 1
    %v721 = vadd.f32 %v719, %v720
    %v722 = vsel %vm473, %v711, 0.0
    %v723 = vsel %vm473, %v712, 0.0
    %v724 = vadd.f32 %v722, %v723
    %v725 = vrot.slane %v724, 4
    %v726 = vadd.f32 %v724, %v725
    %v727 = vrot.slane %v726, 2
    %v728 = vadd.f32 %v726, %v727
    %v729 = vrot.slane %v728, 1
    %v730 = vadd.f32 %v728, %v729
    %v731 = vsel %vm473, %v721, 0.0
    %v732 = vsel %vm473, %v730, 0.0
    %v733 = vadd.f32 %v731, %v732
    %v734 = vld [vmem:[%s19] sm:$0x1]
    %v735 = vmul.f32 %v733, 0.03125
    %v736 = vadd.f32 %v735, 1e-05
    %v737 = vrsqrt.pop %v736
    %v738 = vmul.f32 %v737, %v736
    %v739 = vmul.f32 %v738, %v737
    %v740 = vmul.f32 0.5, %v739
    %v741 = vsub.f32 1.5, %v740
    %v742 = vmul.f32 %v737, %v741
    %vm743 = vweird.f32 %v736
    %vm744 = vweird.f32 %v737
    %vm745 = vmor %vm743, %vm744
    %v746 = vsel %vm745, %v737, %v742
    %v747 = vmul.f32 %v734, %v746
    %v749 = vperm.slane %v747, 0
    %v751 = vmul.f32 %v705, %v749
    %v752 = vmul.f32 %v706, %v749
    %v753 = vmul.f32 %v707, %v749
    %v754 = vmul.f32 %v708, %v749
    %v755 = vld [vmem:[%s21] sm:$0x1]
    %v757 = vperm.slane %v755, 0
    %v759 = vadd.f32 %v751, %v757
    %v760 = vadd.f32 %v752, %v757
    %v761 = vadd.f32 %v753, %v757
    %v762 = vadd.f32 %v754, %v757
    %vm763 = vcmp.gt.f32.partialorder %v759, 0.0
    %vm764 = vcmp.gt.f32.partialorder %v760, 0.0
    %vm765 = vcmp.gt.f32.partialorder %v761, 0.0
    %vm766 = vcmp.gt.f32.partialorder %v762, 0.0
    %v767 = vmul.f32 %v759, 0.01
    %v768 = vmul.f32 %v760, 0.01
    %v769 = vmul.f32 %v761, 0.01
    %v770 = vmul.f32 %v762, 0.01
    %v771 = vsel %vm763, %v759, %v767
    %v772 = vsel %vm764, %v760, %v768
    %v773 = vsel %vm765, %v761, %v769
    %v774 = vsel %vm766, %v762, %v770
    %v775 = vld [vmem:[%s25] sm:$0xff]
    %v776 = vld [vmem:[%s25 + $0x8] sm:$0xff]
    %v777 = vld [vmem:[%s25 + $0x10] sm:$0xff]
    %v778 = vld [vmem:[%s25 + $0x18] sm:$0xff]
    %v780 = vsel %vm473, %v771, 0
    %v783 = vsel %vm473, %v772, 0
    %v786 = vsel %vm473, %v773, 0
    %v789 = vsel %vm473, %v774, 0
    %791 = vmatpush.msra.mxu0 0.0
    %792 = vmatpush.msra.mxu0 0.0
    %793 = vmatpush.msra.mxu0 0.0
    %794 = vmatpush.msra.mxu0 0.0
    %795 = vmatpush.msra.mxu0 0.0
    %796 = vmatpush.msra.mxu0 0.0
    %797 = vmatpush.msra.mxu0 0.0
    %798 = vmatpush.msra.mxu0 0.0
    %799 = vmatpush.msra.mxu0 0.0
    %800 = vmatpush.msra.mxu0 0.0
    %801 = vmatpush.msra.mxu0 0.0
    %802 = vmatpush.msra.mxu0 0.0
    %803 = vmatpush.msra.mxu0 %v778
    %804 = vmatpush.msra.mxu0 %v777
    %805 = vmatpush.msra.mxu0 %v776
    %806 = vmatpush.msra.mxu0 %v775
    %807 = vmatmul.f32.gmra.mxu0 %v780
    %v808 = vpop.f32.mrf.mxu0
    %v809 = vadd.f32 0.0, %v808
    %810 = vmatmul.f32.gmra.mxu0 %v783
    %v811 = vpop.f32.mrf.mxu0
    %v812 = vadd.f32 0.0, %v811
    %813 = vmatmul.f32.gmra.mxu0 %v786
    %v814 = vpop.f32.mrf.mxu0
    %v815 = vadd.f32 0.0, %v814
    %816 = vmatmul.f32.gmra.mxu0 %v789
    %v817 = vpop.f32.mrf.mxu0
    %v818 = vadd.f32 0.0, %v817
    %819 = vdwg.mxu0
    %v820 = vld [vmem:[%s23] sm:$0xff]
    %s821 = scalar_lea.vmem %s25, 32
    %v822 = vld [vmem:[%s821] sm:$0xff]
    %v823 = vld [vmem:[%s821 + $0x8] sm:$0xff]
    %v824 = vld [vmem:[%s821 + $0x10] sm:$0xff]
    %v825 = vld [vmem:[%s821 + $0x18] sm:$0xff]
    %826 = vmatpush.msra.mxu0 0.0
    %827 = vmatpush.msra.mxu0 0.0
    %828 = vmatpush.msra.mxu0 0.0
    %829 = vmatpush.msra.mxu0 0.0
    %830 = vmatpush.msra.mxu0 0.0
    %831 = vmatpush.msra.mxu0 0.0
    %832 = vmatpush.msra.mxu0 0.0
    %833 = vmatpush.msra.mxu0 0.0
    %834 = vmatpush.msra.mxu0 0.0
    %835 = vmatpush.msra.mxu0 0.0
    %836 = vmatpush.msra.mxu0 0.0
    %837 = vmatpush.msra.mxu0 0.0
    %838 = vmatpush.msra.mxu0 %v825
    %839 = vmatpush.msra.mxu0 %v824
    %840 = vmatpush.msra.mxu0 %v823
    %841 = vmatpush.msra.mxu0 %v822
    %842 = vmatmul.f32.gmra.mxu0 %v780
    %v843 = vpop.f32.mrf.mxu0
    %v844 = vadd.f32 0.0, %v843
    %845 = vmatmul.f32.gmra.mxu0 %v783
    %v846 = vpop.f32.mrf.mxu0
    %v847 = vadd.f32 0.0, %v846
    %848 = vmatmul.f32.gmra.mxu0 %v786
    %v849 = vpop.f32.mrf.mxu0
    %v850 = vadd.f32 0.0, %v849
    %851 = vmatmul.f32.gmra.mxu0 %v789
    %v852 = vpop.f32.mrf.mxu0
    %v853 = vadd.f32 0.0, %v852
    %854 = vdwg.mxu0
    %s855 = scalar_lea.vmem %s23, 8
    %v856 = vld [vmem:[%s855] sm:$0xff]
    %vm857 = vcmask 130048
    %v859 = vsel %vm857, %v856, 0
    %861 = vmatpush.msra.mxu0 0.0
    %862 = vmatpush.msra.mxu0 0.0
    %863 = vmatpush.msra.mxu0 0.0
    %864 = vmatpush.msra.mxu0 0.0
    %865 = vmatpush.msra.mxu0 0.0
    %866 = vmatpush.msra.mxu0 0.0
    %867 = vmatpush.msra.mxu0 0.0
    %868 = vmatpush.msra.mxu0 0.0
    %869 = vmatpush.msra.mxu0 0.0
    %870 = vmatpush.msra.mxu0 0.0
    %871 = vmatpush.msra.mxu0 0.0
    %872 = vmatpush.msra.mxu0 0.0
    %873 = vmatpush.msra.mxu0 0.0
    %874 = vmatpush.msra.mxu0 0.0
    %875 = vmatpush.msra.mxu0 %v847
    %876 = vmatpush.msra.mxu0 %v844
    %877 = vmatmul.f32.gmra.mxu0 %v859
    %v878 = vpop.f32.mrf.mxu0
    %v879 = vadd.f32 0.0, %v878
    %880 = vdwg.mxu0
    %881 = vmatpush.msra.mxu0 0.0
    %882 = vmatpush.msra.mxu0 0.0
    %883 = vmatpush.msra.mxu0 0.0
    %884 = vmatpush.msra.mxu0 0.0
    %885 = vmatpush.msra.mxu0 0.0
    %886 = vmatpush.msra.mxu0 0.0
    %887 = vmatpush.msra.mxu0 0.0
    %888 = vmatpush.msra.mxu0 0.0
    %889 = vmatpush.msra.mxu0 0.0
    %890 = vmatpush.msra.mxu0 0.0
    %891 = vmatpush.msra.mxu0 0.0
    %892 = vmatpush.msra.mxu0 0.0
    %893 = vmatpush.msra.mxu0 0.0
    %894 = vmatpush.msra.mxu0 0.0
    %895 = vmatpush.msra.mxu0 %v853
    %896 = vmatpush.msra.mxu0 %v850
    %897 = vmatmul.f32.gmra.mxu0 %v859
    %v898 = vpop.f32.mrf.mxu0
    %v899 = vadd.f32 0.0, %v898
    %900 = vdwg.mxu0
    %v902 = vsel %vm857, %v820, 0
    %904 = vmatpush.msra.mxu0 0.0
    %905 = vmatpush.msra.mxu0 0.0
    %906 = vmatpush.msra.mxu0 0.0
    %907 = vmatpush.msra.mxu0 0.0
    %908 = vmatpush.msra.mxu0 0.0
    %909 = vmatpush.msra.mxu0 0.0
    %910 = vmatpush.msra.mxu0 0.0
    %911 = vmatpush.msra.mxu0 0.0
    %912 = vmatpush.msra.mxu0 0.0
    %913 = vmatpush.msra.mxu0 0.0
    %914 = vmatpush.msra.mxu0 0.0
    %915 = vmatpush.msra.mxu0 0.0
    %916 = vmatpush.msra.mxu0 0.0
    %917 = vmatpush.msra.mxu0 0.0
    %918 = vmatpush.msra.mxu0 %v812
    %919 = vmatpush.msra.mxu0 %v809
    %920 = vmatmul.f32.gmra.mxu0 %v902
    %v921 = vpop.f32.mrf.mxu0
    %v922 = vadd.f32 %v879, %v921
    %923 = vdwg.mxu0
    %924 = vmatpush.msra.mxu0 0.0
    %925 = vmatpush.msra.mxu0 0.0
    %926 = vmatpush.msra.mxu0 0.0
    %927 = vmatpush.msra.mxu0 0.0
    %928 = vmatpush.msra.mxu0 0.0
    %929 = vmatpush.msra.mxu0 0.0
    %930 = vmatpush.msra.mxu0 0.0
    %931 = vmatpush.msra.mxu0 0.0
    %932 = vmatpush.msra.mxu0 0.0
    %933 = vmatpush.msra.mxu0 0.0
    %934 = vmatpush.msra.mxu0 0.0
    %935 = vmatpush.msra.mxu0 0.0
    %936 = vmatpush.msra.mxu0 0.0
    %937 = vmatpush.msra.mxu0 0.0
    %938 = vmatpush.msra.mxu0 %v818
    %939 = vmatpush.msra.mxu0 %v815
    %940 = vmatmul.f32.gmra.mxu0 %v902
    %v941 = vpop.f32.mrf.mxu0
    %v942 = vadd.f32 %v899, %v941
    %943 = vdwg.mxu0
    %s944 = scalar_lea.vmem %s25, 64
    %v945 = vld [vmem:[%s944] sm:$0xff]
    %v946 = vld [vmem:[%s944 + $0x8] sm:$0xff]
    %v947 = vld [vmem:[%s944 + $0x10] sm:$0xff]
    %v948 = vld [vmem:[%s944 + $0x18] sm:$0xff]
    %949 = vmatpush.msra.mxu0 0.0
    %950 = vmatpush.msra.mxu0 0.0
    %951 = vmatpush.msra.mxu0 0.0
    %952 = vmatpush.msra.mxu0 0.0
    %953 = vmatpush.msra.mxu0 0.0
    %954 = vmatpush.msra.mxu0 0.0
    %955 = vmatpush.msra.mxu0 0.0
    %956 = vmatpush.msra.mxu0 0.0
    %957 = vmatpush.msra.mxu0 0.0
    %958 = vmatpush.msra.mxu0 0.0
    %959 = vmatpush.msra.mxu0 0.0
    %960 = vmatpush.msra.mxu0 0.0
    %961 = vmatpush.msra.mxu0 %v948
    %962 = vmatpush.msra.mxu0 %v947
    %963 = vmatpush.msra.mxu0 %v946
    %964 = vmatpush.msra.mxu0 %v945
    %965 = vmatmul.f32.gmra.mxu0 %v780
    %v966 = vpop.f32.mrf.mxu0
    %v967 = vadd.f32 0.0, %v966
    %968 = vmatmul.f32.gmra.mxu0 %v783
    %v969 = vpop.f32.mrf.mxu0
    %v970 = vadd.f32 0.0, %v969
    %971 = vmatmul.f32.gmra.mxu0 %v786
    %v972 = vpop.f32.mrf.mxu0
    %v973 = vadd.f32 0.0, %v972
    %974 = vmatmul.f32.gmra.mxu0 %v789
    %v975 = vpop.f32.mrf.mxu0
    %v976 = vadd.f32 0.0, %v975
    %977 = vdwg.mxu0
    %s978 = scalar_lea.vmem %s23, 16
    %v979 = vld [vmem:[%s978] sm:$0xff]
    %v981 = vsel %vm857, %v979, 0
    %983 = vmatpush.msra.mxu0 0.0
    %984 = vmatpush.msra.mxu0 0.0
    %985 = vmatpush.msra.mxu0 0.0
    %986 = vmatpush.msra.mxu0 0.0
    %987 = vmatpush.msra.mxu0 0.0
    %988 = vmatpush.msra.mxu0 0.0
    %989 = vmatpush.msra.mxu0 0.0
    %990 = vmatpush.msra.mxu0 0.0
    %991 = vmatpush.msra.mxu0 0.0
    %992 = vmatpush.msra.mxu0 0.0
    %993 = vmatpush.msra.mxu0 0.0
    %994 = vmatpush.msra.mxu0 0.0
    %995 = vmatpush.msra.mxu0 0.0
    %996 = vmatpush.msra.mxu0 0.0
    %997 = vmatpush.msra.mxu0 %v970
    %998 = vmatpush.msra.mxu0 %v967
    %999 = vmatmul.f32.gmra.mxu0 %v981
    %v1000 = vpop.f32.mrf.mxu0
    %v1001 = vadd.f32 0.0, %v1000
    %1002 = vdwg.mxu0
    %1003 = vmatpush.msra.mxu0 0.0
    %1004 = vmatpush.msra.mxu0 0.0
    %1005 = vmatpush.msra.mxu0 0.0
    %1006 = vmatpush.msra.mxu0 0.0
    %1007 = vmatpush.msra.mxu0 0.0
    %1008 = vmatpush.msra.mxu0 0.0
    %1009 = vmatpush.msra.mxu0 0.0
    %1010 = vmatpush.msra.mxu0 0.0
    %1011 = vmatpush.msra.mxu0 0.0
    %1012 = vmatpush.msra.mxu0 0.0
    %1013 = vmatpush.msra.mxu0 0.0
    %1014 = vmatpush.msra.mxu0 0.0
    %1015 = vmatpush.msra.mxu0 0.0
    %1016 = vmatpush.msra.mxu0 0.0
    %1017 = vmatpush.msra.mxu0 %v976
    %1018 = vmatpush.msra.mxu0 %v973
    %1019 = vmatmul.f32.gmra.mxu0 %v981
    %v1020 = vpop.f32.mrf.mxu0
    %v1021 = vadd.f32 0.0, %v1020
    %1022 = vdwg.mxu0
    %v1023 = vadd.f32 %v922, %v1001
    %v1024 = vadd.f32 %v942, %v1021
    %vm1025 = vcmask 523264
    %v1026 = vsel %vm1025, %v1023, 0.0
    %v1027 = vrot.slane %v1026, 4
    %v1028 = vadd.f32 %v1026, %v1027
    %v1029 = vrot.slane %v1028, 2
    %v1030 = vadd.f32 %v1028, %v1029
    %v1031 = vrot.slane %v1030, 1
    %v1032 = vadd.f32 %v1030, %v1031
    %v1033 = vsel %vm1025, %v1024, 0.0
    %v1034 = vrot.slane %v1033, 4
    %v1035 = vadd.f32 %v1033, %v1034
    %v1036 = vrot.slane %v1035, 2
    %v1037 = vadd.f32 %v1035, %v1036
    %v1038 = vrot.slane %v1037, 1
    %v1039 = vadd.f32 %v1037, %v1038
    %v1040 = vsel %vm1025, %v1032, 0.0
    %v1041 = vsel %vm1025, %v1039, 0.0
    %v1042 = vadd.f32 %v1040, %v1041
    %v1043 = vmul.f32 %v1042, 0.0625
    %v1044 = vsub.f32 %v1023, %v1043
    %v1045 = vsub.f32 %v1024, %v1043
    %v1046 = vmul.f32 %v1044, %v1044
    %v1047 = vmul.f32 %v1045, %v1045
    %v1048 = vsel %vm1025, %v1046, 0.0
    %v1049 = vrot.slane %v1048, 4
    %v1050 = vadd.f32 %v1048, %v1049
    %v1051 = vrot.slane %v1050, 2
    %v1052 = vadd.f32 %v1050, %v1051
    %v1053 = vrot.slane %v1052, 1
    %v1054 = vadd.f32 %v1052, %v1053
    %v1055 = vsel %vm1025, %v1047, 0.0
    %v1056 = vrot.slane %v1055, 4
    %v1057 = vadd.f32 %v1055, %v1056
    %v1058 = vrot.slane %v1057, 2
    %v1059 = vadd.f32 %v1057, %v1058
    %v1060 = vrot.slane %v1059, 1
    %v1061 = vadd.f32 %v1059, %v1060
    %v1062 = vsel %vm1025, %v1054, 0.0
    %v1063 = vsel %vm1025, %v1061, 0.0
    %v1064 = vadd.f32 %v1062, %v1063
    %v1065 = vld [vmem:[%s27] sm:$0x1]
    %v1066 = vmul.f32 %v1064, 0.0625
    %v1067 = vadd.f32 %v1066, 1e-05
    %v1068 = vrsqrt.pop %v1067
    %v1069 = vmul.f32 %v1068, %v1067
    %v1070 = vmul.f32 %v1069, %v1068
    %v1071 = vmul.f32 0.5, %v1070
    %v1072 = vsub.f32 1.5, %v1071
    %v1073 = vmul.f32 %v1068, %v1072
    %vm1074 = vweird.f32 %v1067
    %vm1075 = vweird.f32 %v1068
    %vm1076 = vmor %vm1074, %vm1075
    %v1077 = vsel %vm1076, %v1068, %v1073
    %v1078 = vmul.f32 %v1065, %v1077
    %v1080 = vperm.slane %v1078, 0
    %v1082 = vmul.f32 %v1044, %v1080
    %v1083 = vmul.f32 %v1045, %v1080
    %v1084 = vld [vmem:[%s29] sm:$0x1]
    %v1086 = vperm.slane %v1084, 0
    %v1088 = vadd.f32 %v1082, %v1086
    %v1089 = vadd.f32 %v1083, %v1086
    %vm1090 = vcmp.gt.f32.partialorder %v1088, 0.0
    %vm1091 = vcmp.gt.f32.partialorder %v1089, 0.0
    %v1092 = vmul.f32 %v1088, 0.01
    %v1093 = vmul.f32 %v1089, 0.01
    %v1094 = vsel %vm1090, %v1088, %v1092
    %v1095 = vsel %vm1091, %v1089, %v1093
    %v1096 = vld [vmem:[%s33] sm:$0xff]
    %v1097 = vld [vmem:[%s33 + $0x8] sm:$0xff]
    %v1098 = vld [vmem:[%s33 + $0x10] sm:$0xff]
    %v1099 = vld [vmem:[%s33 + $0x18] sm:$0xff]
    %v1100 = vld [vmem:[%s33 + $0x20] sm:$0xff]
    %v1101 = vld [vmem:[%s33 + $0x28] sm:$0xff]
    %v1102 = vld [vmem:[%s33 + $0x30] sm:$0xff]
    %v1103 = vld [vmem:[%s33 + $0x38] sm:$0xff]
    %v1105 = vsel %vm1025, %v1094, 0
    %v1108 = vsel %vm1025, %v1095, 0
    %1110 = vmatpush.msra.mxu0 0.0
    %1111 = vmatpush.msra.mxu0 0.0
    %1112 = vmatpush.msra.mxu0 0.0
    %1113 = vmatpush.msra.mxu0 0.0
    %1114 = vmatpush.msra.mxu0 0.0
    %1115 = vmatpush.msra.mxu0 0.0
    %1116 = vmatpush.msra.mxu0 0.0
    %1117 = vmatpush.msra.mxu0 0.0
    %1118 = vmatpush.msra.mxu0 %v1103
    %1119 = vmatpush.msra.mxu0 %v1102
    %1120 = vmatpush.msra.mxu0 %v1101
    %1121 = vmatpush.msra.mxu0 %v1100
    %1122 = vmatpush.msra.mxu0 %v1099
    %1123 = vmatpush.msra.mxu0 %v1098
    %1124 = vmatpush.msra.mxu0 %v1097
    %1125 = vmatpush.msra.mxu0 %v1096
    %1126 = vmatmul.f32.gmra.mxu0 %v1105
    %v1127 = vpop.f32.mrf.mxu0
    %v1128 = vadd.f32 0.0, %v1127
    %1129 = vmatmul.f32.gmra.mxu0 %v1108
    %v1130 = vpop.f32.mrf.mxu0
    %v1131 = vadd.f32 0.0, %v1130
    %1132 = vdwg.mxu0
    %v1133 = vld [vmem:[%s31] sm:$0xf]
    %s1134 = scalar_lea.vmem %s33, 64
    %v1135 = vld [vmem:[%s1134] sm:$0xff]
    %v1136 = vld [vmem:[%s1134 + $0x8] sm:$0xff]
    %v1137 = vld [vmem:[%s1134 + $0x10] sm:$0xff]
    %v1138 = vld [vmem:[%s1134 + $0x18] sm:$0xff]
    %v1139 = vld [vmem:[%s1134 + $0x20] sm:$0xff]
    %v1140 = vld [vmem:[%s1134 + $0x28] sm:$0xff]
    %v1141 = vld [vmem:[%s1134 + $0x30] sm:$0xff]
    %v1142 = vld [vmem:[%s1134 + $0x38] sm:$0xff]
    %1143 = vmatpush.msra.mxu0 0.0
    %1144 = vmatpush.msra.mxu0 0.0
    %1145 = vmatpush.msra.mxu0 0.0
    %1146 = vmatpush.msra.mxu0 0.0
    %1147 = vmatpush.msra.mxu0 0.0
    %1148 = vmatpush.msra.mxu0 0.0
    %1149 = vmatpush.msra.mxu0 0.0
    %1150 = vmatpush.msra.mxu0 0.0
    %1151 = vmatpush.msra.mxu0 %v1142
    %1152 = vmatpush.msra.mxu0 %v1141
    %1153 = vmatpush.msra.mxu0 %v1140
    %1154 = vmatpush.msra.mxu0 %v1139
    %1155 = vmatpush.msra.mxu0 %v1138
    %1156 = vmatpush.msra.mxu0 %v1137
    %1157 = vmatpush.msra.mxu0 %v1136
    %1158 = vmatpush.msra.mxu0 %v1135
    %1159 = vmatmul.f32.gmra.mxu0 %v1105
    %v1160 = vpop.f32.mrf.mxu0
    %v1161 = vadd.f32 0.0, %v1160
    %1162 = vmatmul.f32.gmra.mxu0 %v1108
    %v1163 = vpop.f32.mrf.mxu0
    %v1164 = vadd.f32 0.0, %v1163
    %1165 = vdwg.mxu0
    %s1166 = scalar_lea.vmem %s31, 4
    %v1167 = vld [vmem:[%s1166] sm:$0xf]
    %vm1168 = vcmask 64512
    %v1170 = vsel %vm1168, %v1167, 0
    %1172 = vmatpush.msra.mxu0 0.0
    %1173 = vmatpush.msra.mxu0 0.0
    %1174 = vmatpush.msra.mxu0 0.0
    %1175 = vmatpush.msra.mxu0 0.0
    %1176 = vmatpush.msra.mxu0 0.0
    %1177 = vmatpush.msra.mxu0 0.0
    %1178 = vmatpush.msra.mxu0 0.0
    %1179 = vmatpush.msra.mxu0 0.0
    %1180 = vmatpush.msra.mxu0 0.0
    %1181 = vmatpush.msra.mxu0 0.0
    %1182 = vmatpush.msra.mxu0 0.0
    %1183 = vmatpush.msra.mxu0 0.0
    %1184 = vmatpush.msra.mxu0 0.0
    %1185 = vmatpush.msra.mxu0 0.0
    %1186 = vmatpush.msra.mxu0 0.0
    %1187 = vmatpush.msra.mxu0 %v1161
    %1188 = vmatmul.f32.gmra.mxu0 %v1170
    %v1189 = vpop.f32.mrf.mxu0
    %v1190 = vadd.f32 0.0, %v1189
    %1191 = vdwg.mxu0
    %1192 = vmatpush.msra.mxu0 0.0
    %1193 = vmatpush.msra.mxu0 0.0
    %1194 = vmatpush.msra.mxu0 0.0
    %1195 = vmatpush.msra.mxu0 0.0
    %1196 = vmatpush.msra.mxu0 0.0
    %1197 = vmatpush.msra.mxu0 0.0
    %1198 = vmatpush.msra.mxu0 0.0
    %1199 = vmatpush.msra.mxu0 0.0
    %1200 = vmatpush.msra.mxu0 0.0
    %1201 = vmatpush.msra.mxu0 0.0
    %1202 = vmatpush.msra.mxu0 0.0
    %1203 = vmatpush.msra.mxu0 0.0
    %1204 = vmatpush.msra.mxu0 0.0
    %1205 = vmatpush.msra.mxu0 0.0
    %1206 = vmatpush.msra.mxu0 0.0
    %1207 = vmatpush.msra.mxu0 %v1164
    %1208 = vmatmul.f32.gmra.mxu0 %v1170
    %v1209 = vpop.f32.mrf.mxu0
    %v1210 = vadd.f32 0.0, %v1209
    %1211 = vdwg.mxu0
    %v1213 = vsel %vm1168, %v1133, 0
    %1215 = vmatpush.msra.mxu0 0.0
    %1216 = vmatpush.msra.mxu0 0.0
    %1217 = vmatpush.msra.mxu0 0.0
    %1218 = vmatpush.msra.mxu0 0.0
    %1219 = vmatpush.msra.mxu0 0.0
    %1220 = vmatpush.msra.mxu0 0.0
    %1221 = vmatpush.msra.mxu0 0.0
    %1222 = vmatpush.msra.mxu0 0.0
    %1223 = vmatpush.msra.mxu0 0.0
    %1224 = vmatpush.msra.mxu0 0.0
    %1225 = vmatpush.msra.mxu0 0.0
    %1226 = vmatpush.msra.mxu0 0.0
    %1227 = vmatpush.msra.mxu0 0.0
    %1228 = vmatpush.msra.mxu0 0.0
    %1229 = vmatpush.msra.mxu0 0.0
    %1230 = vmatpush.msra.mxu0 %v1128
    %1231 = vmatmul.f32.gmra.mxu0 %v1213
    %v1232 = vpop.f32.mrf.mxu0
    %v1233 = vadd.f32 %v1190, %v1232
    %1234 = vdwg.mxu0
    %1235 = vmatpush.msra.mxu0 0.0
    %1236 = vmatpush.msra.mxu0 0.0
    %1237 = vmatpush.msra.mxu0 0.0
    %1238 = vmatpush.msra.mxu0 0.0
    %1239 = vmatpush.msra.mxu0 0.0
    %1240 = vmatpush.msra.mxu0 0.0
    %1241 = vmatpush.msra.mxu0 0.0
    %1242 = vmatpush.msra.mxu0 0.0
    %1243 = vmatpush.msra.mxu0 0.0
    %1244 = vmatpush.msra.mxu0 0.0
    %1245 = vmatpush.msra.mxu0 0.0
    %1246 = vmatpush.msra.mxu0 0.0
    %1247 = vmatpush.msra.mxu0 0.0
    %1248 = vmatpush.msra.mxu0 0.0
    %1249 = vmatpush.msra.mxu0 0.0
    %1250 = vmatpush.msra.mxu0 %v1131
    %1251 = vmatmul.f32.gmra.mxu0 %v1213
    %v1252 = vpop.f32.mrf.mxu0
    %v1253 = vadd.f32 %v1210, %v1252
    %1254 = vdwg.mxu0
    %s1255 = scalar_lea.vmem %s33, 128
    %v1256 = vld [vmem:[%s1255] sm:$0xff]
    %v1257 = vld [vmem:[%s1255 + $0x8] sm:$0xff]
    %v1258 = vld [vmem:[%s1255 + $0x10] sm:$0xff]
    %v1259 = vld [vmem:[%s1255 + $0x18] sm:$0xff]
    %v1260 = vld [vmem:[%s1255 + $0x20] sm:$0xff]
    %v1261 = vld [vmem:[%s1255 + $0x28] sm:$0xff]
    %v1262 = vld [vmem:[%s1255 + $0x30] sm:$0xff]
    %v1263 = vld [vmem:[%s1255 + $0x38] sm:$0xff]
    %1264 = vmatpush.msra.mxu0 0.0
    %1265 = vmatpush.msra.mxu0 0.0
    %1266 = vmatpush.msra.mxu0 0.0
    %1267 = vmatpush.msra.mxu0 0.0
    %1268 = vmatpush.msra.mxu0 0.0
    %1269 = vmatpush.msra.mxu0 0.0
    %1270 = vmatpush.msra.mxu0 0.0
    %1271 = vmatpush.msra.mxu0 0.0
    %1272 = vmatpush.msra.mxu0 %v1263
    %1273 = vmatpush.msra.mxu0 %v1262
    %1274 = vmatpush.msra.mxu0 %v1261
    %1275 = vmatpush.msra.mxu0 %v1260
    %1276 = vmatpush.msra.mxu0 %v1259
    %1277 = vmatpush.msra.mxu0 %v1258
    %1278 = vmatpush.msra.mxu0 %v1257
    %1279 = vmatpush.msra.mxu0 %v1256
    %1280 = vmatmul.f32.gmra.mxu0 %v1105
    %v1281 = vpop.f32.mrf.mxu0
    %v1282 = vadd.f32 0.0, %v1281
    %1283 = vmatmul.f32.gmra.mxu0 %v1108
    %v1284 = vpop.f32.mrf.mxu0
    %v1285 = vadd.f32 0.0, %v1284
    %1286 = vdwg.mxu0
    %s1287 = scalar_lea.vmem %s31, 8
    %v1288 = vld [vmem:[%s1287] sm:$0xf]
    %v1290 = vsel %vm1168, %v1288, 0
    %1292 = vmatpush.msra.mxu0 0.0
    %1293 = vmatpush.msra.mxu0 0.0
    %1294 = vmatpush.msra.mxu0 0.0
    %1295 = vmatpush.msra.mxu0 0.0
    %1296 = vmatpush.msra.mxu0 0.0
    %1297 = vmatpush.msra.mxu0 0.0
    %1298 = vmatpush.msra.mxu0 0.0
    %1299 = vmatpush.msra.mxu0 0.0
    %1300 = vmatpush.msra.mxu0 0.0
    %1301 = vmatpush.msra.mxu0 0.0
    %1302 = vmatpush.msra.mxu0 0.0
    %1303 = vmatpush.msra.mxu0 0.0
    %1304 = vmatpush.msra.mxu0 0.0
    %1305 = vmatpush.msra.mxu0 0.0
    %1306 = vmatpush.msra.mxu0 0.0
    %1307 = vmatpush.msra.mxu0 %v1282
    %1308 = vmatmul.f32.gmra.mxu0 %v1290
    %v1309 = vpop.f32.mrf.mxu0
    %v1310 = vadd.f32 0.0, %v1309
    %1311 = vdwg.mxu0
    %1312 = vmatpush.msra.mxu0 0.0
    %1313 = vmatpush.msra.mxu0 0.0
    %1314 = vmatpush.msra.mxu0 0.0
    %1315 = vmatpush.msra.mxu0 0.0
    %1316 = vmatpush.msra.mxu0 0.0
    %1317 = vmatpush.msra.mxu0 0.0
    %1318 = vmatpush.msra.mxu0 0.0
    %1319 = vmatpush.msra.mxu0 0.0
    %1320 = vmatpush.msra.mxu0 0.0
    %1321 = vmatpush.msra.mxu0 0.0
    %1322 = vmatpush.msra.mxu0 0.0
    %1323 = vmatpush.msra.mxu0 0.0
    %1324 = vmatpush.msra.mxu0 0.0
    %1325 = vmatpush.msra.mxu0 0.0
    %1326 = vmatpush.msra.mxu0 0.0
    %1327 = vmatpush.msra.mxu0 %v1285
    %1328 = vmatmul.f32.gmra.mxu0 %v1290
    %v1329 = vpop.f32.mrf.mxu0
    %v1330 = vadd.f32 0.0, %v1329
    %1331 = vdwg.mxu0
    %v1332 = vadd.f32 %v1233, %v1310
    %v1333 = vadd.f32 %v1253, %v1330
    %vm1334 = vcmask 1043456
    %v1335 = vsel %vm1334, %v1332, 0.0
    %v1336 = vrot.slane %v1335, 4
    %v1337 = vadd.f32 %v1335, %v1336
    %v1338 = vrot.slane %v1337, 2
    %v1339 = vadd.f32 %v1337, %v1338
    %v1340 = vrot.slane %v1339, 1
    %v1341 = vadd.f32 %v1339, %v1340
    %v1342 = vsel %vm1334, %v1333, 0.0
    %v1343 = vrot.slane %v1342, 4
    %v1344 = vadd.f32 %v1342, %v1343
    %v1345 = vrot.slane %v1344, 2
    %v1346 = vadd.f32 %v1344, %v1345
    %v1347 = vrot.slane %v1346, 1
    %v1348 = vadd.f32 %v1346, %v1347
    %v1349 = vadd.f32 %v1341, %v1348
    %v1350 = vmul.f32 %v1349, 0.125
    %v1351 = vsub.f32 %v1332, %v1350
    %v1352 = vsub.f32 %v1333, %v1350
    %v1353 = vmul.f32 %v1351, %v1351
    %v1354 = vmul.f32 %v1352, %v1352
    %v1355 = vsel %vm1334, %v1353, 0.0
    %v1356 = vrot.slane %v1355, 4
    %v1357 = vadd.f32 %v1355, %v1356
    %v1358 = vrot.slane %v1357, 2
    %v1359 = vadd.f32 %v1357, %v1358
    %v1360 = vrot.slane %v1359, 1
    %v1361 = vadd.f32 %v1359, %v1360
    %v1362 = vsel %vm1334, %v1354, 0.0
    %v1363 = vrot.slane %v1362, 4
    %v1364 = vadd.f32 %v1362, %v1363
    %v1365 = vrot.slane %v1364, 2
    %v1366 = vadd.f32 %v1364, %v1365
    %v1367 = vrot.slane %v1366, 1
    %v1368 = vadd.f32 %v1366, %v1367
    %v1369 = vadd.f32 %v1361, %v1368
    %v1370 = vld [vmem:[%s35] sm:$0x1]
    %v1371 = vmul.f32 %v1369, 0.125
    %v1372 = vadd.f32 %v1371, 1e-05
    %v1373 = vrsqrt.pop %v1372
    %v1374 = vmul.f32 %v1373, %v1372
    %v1375 = vmul.f32 %v1374, %v1373
    %v1376 = vmul.f32 0.5, %v1375
    %v1377 = vsub.f32 1.5, %v1376
    %v1378 = vmul.f32 %v1373, %v1377
    %vm1379 = vweird.f32 %v1372
    %vm1380 = vweird.f32 %v1373
    %vm1381 = vmor %vm1379, %vm1380
    %v1382 = vsel %vm1381, %v1373, %v1378
    %v1383 = vmul.f32 %v1370, %v1382
    %v1385 = vperm.slane %v1383, 0
    %v1387 = vmul.f32 %v1351, %v1385
    %v1388 = vmul.f32 %v1352, %v1385
    %v1389 = vld [vmem:[%s37] sm:$0x1]
    %v1391 = vperm.slane %v1389, 0
    %v1393 = vadd.f32 %v1387, %v1391
    %v1394 = vadd.f32 %v1388, %v1391
    %vm1395 = vcmp.gt.f32.partialorder %v1393, 0.0
    %vm1396 = vcmp.gt.f32.partialorder %v1394, 0.0
    %v1397 = vmul.f32 %v1393, 0.01
    %v1398 = vmul.f32 %v1394, 0.01
    %v1399 = vsel %vm1395, %v1393, %v1397
    %v1400 = vsel %vm1396, %v1394, %v1398
    %v1401 = vld [vmem:[%s39] sm:$0xff]
    %v1402 = vld [vmem:[%s39 + $0x8] sm:$0xff]
    %v1403 = vld [vmem:[%s39 + $0x10] sm:$0xff]
    %v1404 = vld [vmem:[%s39 + $0x18] sm:$0xff]
    %v1405 = vld [vmem:[%s39 + $0x20] sm:$0xff]
    %v1406 = vld [vmem:[%s39 + $0x28] sm:$0xff]
    %v1407 = vld [vmem:[%s39 + $0x30] sm:$0xff]
    %v1408 = vld [vmem:[%s39 + $0x38] sm:$0xff]
    %v1409 = vld [vmem:[%s39 + $0x40] sm:$0xff]
    %v1410 = vld [vmem:[%s39 + $0x48] sm:$0xff]
    %v1411 = vld [vmem:[%s39 + $0x50] sm:$0xff]
    %v1412 = vld [vmem:[%s39 + $0x58] sm:$0xff]
    %v1413 = vld [vmem:[%s39 + $0x60] sm:$0xff]
    %v1414 = vld [vmem:[%s39 + $0x68] sm:$0xff]
    %v1415 = vld [vmem:[%s39 + $0x70] sm:$0xff]
    %v1416 = vld [vmem:[%s39 + $0x78] sm:$0xff]
    %s1417 = scalar_lea.vmem %s39, 128
    %v1418 = vld [vmem:[%s1417] sm:$0xff]
    %v1419 = vld [vmem:[%s1417 + $0x8] sm:$0xff]
    %v1420 = vld [vmem:[%s1417 + $0x10] sm:$0xff]
    %v1421 = vld [vmem:[%s1417 + $0x18] sm:$0xff]
    %v1422 = vld [vmem:[%s1417 + $0x20] sm:$0xff]
    %v1423 = vld [vmem:[%s1417 + $0x28] sm:$0xff]
    %v1424 = vld [vmem:[%s1417 + $0x30] sm:$0xff]
    %v1425 = vld [vmem:[%s1417 + $0x38] sm:$0xff]
    %v1426 = vld [vmem:[%s1417 + $0x40] sm:$0xff]
    %v1427 = vld [vmem:[%s1417 + $0x48] sm:$0xff]
    %v1428 = vld [vmem:[%s1417 + $0x50] sm:$0xff]
    %v1429 = vld [vmem:[%s1417 + $0x58] sm:$0xff]
    %v1430 = vld [vmem:[%s1417 + $0x60] sm:$0xff]
    %v1431 = vld [vmem:[%s1417 + $0x68] sm:$0xff]
    %v1432 = vld [vmem:[%s1417 + $0x70] sm:$0xff]
    %v1433 = vld [vmem:[%s1417 + $0x78] sm:$0xff]
    %v1436 = vrot.slane %v1399, 1
    %vm1437 = vcmask 1041409
    %v1438 = vsel %vm1437, %v1400, %v1436
    %1440 = vmatpush.msra.mxu0 %v1433
    %1441 = vmatpush.msra.mxu0 %v1432
    %1442 = vmatpush.msra.mxu0 %v1431
    %1443 = vmatpush.msra.mxu0 %v1430
    %1444 = vmatpush.msra.mxu0 %v1429
    %1445 = vmatpush.msra.mxu0 %v1428
    %1446 = vmatpush.msra.mxu0 %v1427
    %1447 = vmatpush.msra.mxu0 %v1426
    %1448 = vmatpush.msra.mxu0 %v1425
    %1449 = vmatpush.msra.mxu0 %v1424
    %1450 = vmatpush.msra.mxu0 %v1423
    %1451 = vmatpush.msra.mxu0 %v1422
    %1452 = vmatpush.msra.mxu0 %v1421
    %1453 = vmatpush.msra.mxu0 %v1420
    %1454 = vmatpush.msra.mxu0 %v1419
    %1455 = vmatpush.msra.mxu0 %v1418
    %1456 = vmatmul.f32.gmra.mxu0 %v1438
    %v1457 = vpop.f32.mrf.mxu0
    %v1458 = vadd.f32 0.0, %v1457
    %1459 = vdwg.mxu0
    %v1460 = vrot.slane %v1400, 7
    %v1461 = vsel %vm1437, %v1460, %v1399
    %1463 = vmatpush.msra.mxu0 %v1416
    %1464 = vmatpush.msra.mxu0 %v1415
    %1465 = vmatpush.msra.mxu0 %v1414
    %1466 = vmatpush.msra.mxu0 %v1413
    %1467 = vmatpush.msra.mxu0 %v1412
    %1468 = vmatpush.msra.mxu0 %v1411
    %1469 = vmatpush.msra.mxu0 %v1410
    %1470 = vmatpush.msra.mxu0 %v1409
    %1471 = vmatpush.msra.mxu0 %v1408
    %1472 = vmatpush.msra.mxu0 %v1407
    %1473 = vmatpush.msra.mxu0 %v1406
    %1474 = vmatpush.msra.mxu0 %v1405
    %1475 = vmatpush.msra.mxu0 %v1404
    %1476 = vmatpush.msra.mxu0 %v1403
    %1477 = vmatpush.msra.mxu0 %v1402
    %1478 = vmatpush.msra.mxu0 %v1401
    %1479 = vmatmul.f32.gmra.mxu0 %v1461
    %v1480 = vpop.f32.mrf.mxu0
    %v1481 = vadd.f32 %v1458, %v1480
    %1482 = vdwg.mxu0
    %v1484 = vrot.slane %v1481, 1
    %s1486 = scalar_lea.vmem %s39, 256
    %v1487 = vld [vmem:[%s1486] sm:$0xff]
    %v1488 = vld [vmem:[%s1486 + $0x8] sm:$0xff]
    %v1489 = vld [vmem:[%s1486 + $0x10] sm:$0xff]
    %v1490 = vld [vmem:[%s1486 + $0x18] sm:$0xff]
    %v1491 = vld [vmem:[%s1486 + $0x20] sm:$0xff]
    %v1492 = vld [vmem:[%s1486 + $0x28] sm:$0xff]
    %v1493 = vld [vmem:[%s1486 + $0x30] sm:$0xff]
    %v1494 = vld [vmem:[%s1486 + $0x38] sm:$0xff]
    %v1495 = vld [vmem:[%s1486 + $0x40] sm:$0xff]
    %v1496 = vld [vmem:[%s1486 + $0x48] sm:$0xff]
    %v1497 = vld [vmem:[%s1486 + $0x50] sm:$0xff]
    %v1498 = vld [vmem:[%s1486 + $0x58] sm:$0xff]
    %v1499 = vld [vmem:[%s1486 + $0x60] sm:$0xff]
    %v1500 = vld [vmem:[%s1486 + $0x68] sm:$0xff]
    %v1501 = vld [vmem:[%s1486 + $0x70] sm:$0xff]
    %v1502 = vld [vmem:[%s1486 + $0x78] sm:$0xff]
    %v1503 = vrot.slane %v1399, 2
    %v1504 = vrot.slane %v1400, 1
    %v1505 = vsel %vm1437, %v1504, %v1503
    %1507 = vmatpush.msra.mxu0 %v1502
    %1508 = vmatpush.msra.mxu0 %v1501
    %1509 = vmatpush.msra.mxu0 %v1500
    %1510 = vmatpush.msra.mxu0 %v1499
    %1511 = vmatpush.msra.mxu0 %v1498
    %1512 = vmatpush.msra.mxu0 %v1497
    %1513 = vmatpush.msra.mxu0 %v1496
    %1514 = vmatpush.msra.mxu0 %v1495
    %1515 = vmatpush.msra.mxu0 %v1494
    %1516 = vmatpush.msra.mxu0 %v1493
    %1517 = vmatpush.msra.mxu0 %v1492
    %1518 = vmatpush.msra.mxu0 %v1491
    %1519 = vmatpush.msra.mxu0 %v1490
    %1520 = vmatpush.msra.mxu0 %v1489
    %1521 = vmatpush.msra.mxu0 %v1488
    %1522 = vmatpush.msra.mxu0 %v1487
    %1523 = vmatmul.f32.gmra.mxu0 %v1505
    %v1524 = vpop.f32.mrf.mxu0
    %v1525 = vadd.f32 0.0, %v1524
    %1526 = vdwg.mxu0
    %v1528 = vrot.slane %v1525, 1
    %v1530 = vadd.f32 %v1481, %v1525
    %v1531 = vadd.f32 %v1484, %v1528
    %s1532 = scalar_lea.vmem %s39, 384
    %v1533 = vld [vmem:[%s1532] sm:$0xff]
    %v1534 = vld [vmem:[%s1532 + $0x8] sm:$0xff]
    %v1535 = vld [vmem:[%s1532 + $0x10] sm:$0xff]
    %v1536 = vld [vmem:[%s1532 + $0x18] sm:$0xff]
    %v1537 = vld [vmem:[%s1532 + $0x20] sm:$0xff]
    %v1538 = vld [vmem:[%s1532 + $0x28] sm:$0xff]
    %v1539 = vld [vmem:[%s1532 + $0x30] sm:$0xff]
    %v1540 = vld [vmem:[%s1532 + $0x38] sm:$0xff]
    %v1541 = vld [vmem:[%s1532 + $0x40] sm:$0xff]
    %v1542 = vld [vmem:[%s1532 + $0x48] sm:$0xff]
    %v1543 = vld [vmem:[%s1532 + $0x50] sm:$0xff]
    %v1544 = vld [vmem:[%s1532 + $0x58] sm:$0xff]
    %v1545 = vld [vmem:[%s1532 + $0x60] sm:$0xff]
    %v1546 = vld [vmem:[%s1532 + $0x68] sm:$0xff]
    %v1547 = vld [vmem:[%s1532 + $0x70] sm:$0xff]
    %v1548 = vld [vmem:[%s1532 + $0x78] sm:$0xff]
    %v1549 = vrot.slane %v1399, 3
    %v1550 = vrot.slane %v1400, 2
    %v1551 = vsel %vm1437, %v1550, %v1549
    %1553 = vmatpush.msra.mxu0 %v1548
    %1554 = vmatpush.msra.mxu0 %v1547
    %1555 = vmatpush.msra.mxu0 %v1546
    %1556 = vmatpush.msra.mxu0 %v1545
    %1557 = vmatpush.msra.mxu0 %v1544
    %1558 = vmatpush.msra.mxu0 %v1543
    %1559 = vmatpush.msra.mxu0 %v1542
    %1560 = vmatpush.msra.mxu0 %v1541
    %1561 = vmatpush.msra.mxu0 %v1540
    %1562 = vmatpush.msra.mxu0 %v1539
    %1563 = vmatpush.msra.mxu0 %v1538
    %1564 = vmatpush.msra.mxu0 %v1537
    %1565 = vmatpush.msra.mxu0 %v1536
    %1566 = vmatpush.msra.mxu0 %v1535
    %1567 = vmatpush.msra.mxu0 %v1534
    %1568 = vmatpush.msra.mxu0 %v1533
    %1569 = vmatmul.f32.gmra.mxu0 %v1551
    %v1570 = vpop.f32.mrf.mxu0
    %v1571 = vadd.f32 0.0, %v1570
    %1572 = vdwg.mxu0
    %v1574 = vrot.slane %v1571, 1
    %v1576 = vadd.f32 %v1530, %v1571
    %v1577 = vadd.f32 %v1531, %v1574
    %v1578 = vld [vmem:[%s41] sm:$0x1]
    %v1579 = vadd.f32 %v1576, %v1578
    %v1580 = vadd.f32 %v1577, %v1578
    %vm1581 = vcmask 122880
    %1582 = vst.msk [vmem:[#allocation5] sm:$0x1] %vm1581, %v1579
    %1583 = vst.msk [vmem:[#allocation5 + $0x1] sm:$0x1] %vm1581, %v1580
    %v1586 = vperm.slane %v1579, 0
    %v1587 = vperm.slane %v1580, 0
    %1588 = vrot.lane.b32.xlu0 %v1586, 112
    %v1589 = vpop.permute.xlu0 %1588
    %1590 = vrot.lane.b32.xlu0 %v1587, 112
    %v1591 = vpop.permute.xlu0 %1590
    %1594 = vst.msk [vmem:[#allocation7] sm:$0x1] %vm1581, %v1589
    %1595 = vst.msk [vmem:[#allocation7 + $0x1] sm:$0x1] %vm1581, %v1591
    %v1596 = vld [vmem:[%s5] sm:$0x1]
    %v1597 = vld [vmem:[%s5 + $0x1] sm:$0x1]
    %v1598 = vmul.f32 %v1579, 0.5
    %v1599 = vmul.f32 %v1580, 0.5
    %v1600 = vmul.f32 %v1598, 1.442695
    %v1601 = vpow.pop %v1600
    %v1602 = vmul.f32 %v1599, 1.442695
    %v1603 = vpow.pop %v1602
    %1606 = vrot.lane.b32.xlu0 %v1601, 112
    %v1607 = vpop.permute.xlu0 %1606
    %1608 = vrot.lane.b32.xlu0 %v1603, 112
    %v1609 = vpop.permute.xlu0 %1608
    %v1612 = vmul.f32 %v1596, %v1607
    %v1613 = vmul.f32 %v1597, %v1609
    %v1614 = vadd.f32 %v1612, %v1579
    %v1615 = vadd.f32 %v1613, %v1580
    %v1616 = vld [vmem:[%s43] sm:$0xff]
    %v1617 = vld [vmem:[%s43 + $0x8] sm:$0xff]
    %v1618 = vld [vmem:[%s3] sm:$0x1]
    %v1619 = vld [vmem:[%s3 + $0x1] sm:$0x1]
    %v1620 = vld [vmem:[%s45] sm:$0xff]
    %v1621 = vld [vmem:[%s45 + $0x8] sm:$0x3]
    %1624 = vst [vmem:[#allocation1] ss:$9 sm:$0xff] %v1618
    %s1625 = scalar_lea.vmem [#allocation1], 1
    %1626 = vst [vmem:[%s1625] ss:$9 sm:$0xff] %v1619
    %v1627 = vld [vmem:[#allocation1] sm:$0xff]
    %v1628 = vsel %vm213, %v1627, 0
    %v1631 = vsel %vm377, %v1621, 0
    %1633 = vmatpush.msra.mxu0 0.0
    %1634 = vmatpush.msra.mxu0 0.0
    %1635 = vmatpush.msra.mxu0 0.0
    %1636 = vmatpush.msra.mxu0 0.0
    %1637 = vmatpush.msra.mxu0 0.0
    %1638 = vmatpush.msra.mxu0 0.0
    %1639 = vmatpush.msra.mxu0 0.0
    %1640 = vmatpush.msra.mxu0 0.0
    %1641 = vmatpush.msra.mxu0 0.0
    %1642 = vmatpush.msra.mxu0 0.0
    %1643 = vmatpush.msra.mxu0 0.0
    %1644 = vmatpush.msra.mxu0 0.0
    %1645 = vmatpush.msra.mxu0 0.0
    %1646 = vmatpush.msra.mxu0 0.0
    %1647 = vmatpush.msra.mxu0 %v1631
    %1648 = vmatpush.msra.mxu0 %v1620
    %1649 = vmatmul.f32.gmra.mxu0 %v1628
    %v1650 = vpop.f32.mrf.mxu0
    %v1651 = vadd.f32 0.0, %v1650
    %1652 = vdwg.mxu0
    %1655 = vst [vmem:[#allocation1] ss:$9 sm:$0xff] %v1614
    %s1656 = scalar_lea.vmem [#allocation1], 1
    %1657 = vst [vmem:[%s1656] ss:$9 sm:$0xff] %v1615
    %v1658 = vld [vmem:[#allocation1] sm:$0xff]
    %v1659 = vsel %vm857, %v1658, 0
    %1661 = vmatpush.msra.mxu0 0.0
    %1662 = vmatpush.msra.mxu0 0.0
    %1663 = vmatpush.msra.mxu0 0.0
    %1664 = vmatpush.msra.mxu0 0.0
    %1665 = vmatpush.msra.mxu0 0.0
    %1666 = vmatpush.msra.mxu0 0.0
    %1667 = vmatpush.msra.mxu0 0.0
    %1668 = vmatpush.msra.mxu0 0.0
    %1669 = vmatpush.msra.mxu0 0.0
    %1670 = vmatpush.msra.mxu0 0.0
    %1671 = vmatpush.msra.mxu0 0.0
    %1672 = vmatpush.msra.mxu0 0.0
    %1673 = vmatpush.msra.mxu0 0.0
    %1674 = vmatpush.msra.mxu0 0.0
    %1675 = vmatpush.msra.mxu0 %v1617
    %1676 = vmatpush.msra.mxu0 %v1616
    %1677 = vmatmul.f32.gmra.mxu0 %v1659
    %v1678 = vpop.f32.mrf.mxu0
    %v1679 = vadd.f32 %v1651, %v1678
    %1680 = vdwg.mxu0
    %v1682 = vrot.slane %v1679, 1
    %v1684 = vld [vmem:[%s47] sm:$0x1]
    %v1685 = vadd.f32 %v1679, %v1684
    %v1686 = vadd.f32 %v1682, %v1684
    %v1687 = vlaneseq
    %v1688 = vshrl.u32 %v1687, 7
    %vm1689 = vcmp.eq.s32.totalorder %v1688, 0
    %v1690 = vsel %vm1689, 1, 0
    %vm1691 = vcmp.eq.s32.totalorder %v1690, 1
    %v1694 = vperm.slane %v1685, 0
    %v1695 = vperm.slane %v1686, 0
    %v1698 = vsel %vm1691, %v1694, 0.0
    %v1699 = vsel %vm1691, %v1695, 0.0
    %s1700 = scalar_lea.vmem %s43, 16
    %v1701 = vld [vmem:[%s1700] sm:$0xff]
    %v1702 = vld [vmem:[%s1700 + $0x8] sm:$0xff]
    %s1703 = scalar_lea.vmem %s45, 16
    %v1704 = vld [vmem:[%s1703] sm:$0xff]
    %v1705 = vld [vmem:[%s1703 + $0x8] sm:$0x3]
    %1706 = vst [vmem:[#allocation1] ss:$9 sm:$0xff] %v1618
    %s1707 = scalar_lea.vmem [#allocation1], 1
    %1708 = vst [vmem:[%s1707] ss:$9 sm:$0xff] %v1619
    %v1709 = vld [vmem:[#allocation1] sm:$0xff]
    %v1710 = vsel %vm213, %v1709, 0
    %v1713 = vsel %vm377, %v1705, 0
    %1715 = vmatpush.msra.mxu0 0.0
    %1716 = vmatpush.msra.mxu0 0.0
    %1717 = vmatpush.msra.mxu0 0.0
    %1718 = vmatpush.msra.mxu0 0.0
    %1719 = vmatpush.msra.mxu0 0.0
    %1720 = vmatpush.msra.mxu0 0.0
    %1721 = vmatpush.msra.mxu0 0.0
    %1722 = vmatpush.msra.mxu0 0.0
    %1723 = vmatpush.msra.mxu0 0.0
    %1724 = vmatpush.msra.mxu0 0.0
    %1725 = vmatpush.msra.mxu0 0.0
    %1726 = vmatpush.msra.mxu0 0.0
    %1727 = vmatpush.msra.mxu0 0.0
    %1728 = vmatpush.msra.mxu0 0.0
    %1729 = vmatpush.msra.mxu0 %v1713
    %1730 = vmatpush.msra.mxu0 %v1704
    %1731 = vmatmul.f32.gmra.mxu0 %v1710
    %v1732 = vpop.f32.mrf.mxu0
    %v1733 = vadd.f32 0.0, %v1732
    %1734 = vdwg.mxu0
    %1735 = vst [vmem:[#allocation1] ss:$9 sm:$0xff] %v1614
    %s1736 = scalar_lea.vmem [#allocation1], 1
    %1737 = vst [vmem:[%s1736] ss:$9 sm:$0xff] %v1615
    %v1738 = vld [vmem:[#allocation1] sm:$0xff]
    %v1739 = vsel %vm857, %v1738, 0
    %1741 = vmatpush.msra.mxu0 0.0
    %1742 = vmatpush.msra.mxu0 0.0
    %1743 = vmatpush.msra.mxu0 0.0
    %1744 = vmatpush.msra.mxu0 0.0
    %1745 = vmatpush.msra.mxu0 0.0
    %1746 = vmatpush.msra.mxu0 0.0
    %1747 = vmatpush.msra.mxu0 0.0
    %1748 = vmatpush.msra.mxu0 0.0
    %1749 = vmatpush.msra.mxu0 0.0
    %1750 = vmatpush.msra.mxu0 0.0
    %1751 = vmatpush.msra.mxu0 0.0
    %1752 = vmatpush.msra.mxu0 0.0
    %1753 = vmatpush.msra.mxu0 0.0
    %1754 = vmatpush.msra.mxu0 0.0
    %1755 = vmatpush.msra.mxu0 %v1702
    %1756 = vmatpush.msra.mxu0 %v1701
    %1757 = vmatmul.f32.gmra.mxu0 %v1739
    %v1758 = vpop.f32.mrf.mxu0
    %v1759 = vadd.f32 %v1733, %v1758
    %1760 = vdwg.mxu0
    %v1762 = vrot.slane %v1759, 1
    %s1764 = scalar_lea.vmem %s47, 1
    %v1765 = vld [vmem:[%s1764] sm:$0x1]
    %v1766 = vadd.f32 %v1759, %v1765
    %v1767 = vadd.f32 %v1762, %v1765
    %vm1768 = vcmp.eq.s32.totalorder %v1688, 1
    %v1769 = vsel %vm1768, 1, 0
    %vm1770 = vcmp.eq.s32.totalorder %v1769, 1
    %v1773 = vperm.slane %v1766, 0
    %v1774 = vperm.slane %v1767, 0
    %v1777 = vsel %vm1770, %v1773, 0.0
    %v1778 = vsel %vm1770, %v1774, 0.0
    %v1779 = vadd.f32 %v1698, %v1777
    %v1780 = vadd.f32 %v1699, %v1778
    %s1781 = scalar_lea.vmem %s43, 32
    %v1782 = vld [vmem:[%s1781] sm:$0xff]
    %v1783 = vld [vmem:[%s1781 + $0x8] sm:$0xff]
    %s1784 = scalar_lea.vmem %s45, 32
    %v1785 = vld [vmem:[%s1784] sm:$0xff]
    %v1786 = vld [vmem:[%s1784 + $0x8] sm:$0x3]
    %1787 = vst [vmem:[#allocation1] ss:$9 sm:$0xff] %v1618
    %s1788 = scalar_lea.vmem [#allocation1], 1
    %1789 = vst [vmem:[%s1788] ss:$9 sm:$0xff] %v1619
    %v1790 = vld [vmem:[#allocation1] sm:$0xff]
    %v1791 = vsel %vm213, %v1790, 0
    %v1794 = vsel %vm377, %v1786, 0
    %1796 = vmatpush.msra.mxu0 0.0
    %1797 = vmatpush.msra.mxu0 0.0
    %1798 = vmatpush.msra.mxu0 0.0
    %1799 = vmatpush.msra.mxu0 0.0
    %1800 = vmatpush.msra.mxu0 0.0
    %1801 = vmatpush.msra.mxu0 0.0
    %1802 = vmatpush.msra.mxu0 0.0
    %1803 = vmatpush.msra.mxu0 0.0
    %1804 = vmatpush.msra.mxu0 0.0
    %1805 = vmatpush.msra.mxu0 0.0
    %1806 = vmatpush.msra.mxu0 0.0
    %1807 = vmatpush.msra.mxu0 0.0
    %1808 = vmatpush.msra.mxu0 0.0
    %1809 = vmatpush.msra.mxu0 0.0
    %1810 = vmatpush.msra.mxu0 %v1794
    %1811 = vmatpush.msra.mxu0 %v1785
    %1812 = vmatmul.f32.gmra.mxu0 %v1791
    %v1813 = vpop.f32.mrf.mxu0
    %v1814 = vadd.f32 0.0, %v1813
    %1815 = vdwg.mxu0
    %1816 = vst [vmem:[#allocation1] ss:$9 sm:$0xff] %v1614
    %s1817 = scalar_lea.vmem [#allocation1], 1
    %1818 = vst [vmem:[%s1817] ss:$9 sm:$0xff] %v1615
    %v1819 = vld [vmem:[#allocation1] sm:$0xff]
    %v1820 = vsel %vm857, %v1819, 0
    %1822 = vmatpush.msra.mxu0 0.0
    %1823 = vmatpush.msra.mxu0 0.0
    %1824 = vmatpush.msra.mxu0 0.0
    %1825 = vmatpush.msra.mxu0 0.0
    %1826 = vmatpush.msra.mxu0 0.0
    %1827 = vmatpush.msra.mxu0 0.0
    %1828 = vmatpush.msra.mxu0 0.0
    %1829 = vmatpush.msra.mxu0 0.0
    %1830 = vmatpush.msra.mxu0 0.0
    %1831 = vmatpush.msra.mxu0 0.0
    %1832 = vmatpush.msra.mxu0 0.0
    %1833 = vmatpush.msra.mxu0 0.0
    %1834 = vmatpush.msra.mxu0 0.0
    %1835 = vmatpush.msra.mxu0 0.0
    %1836 = vmatpush.msra.mxu0 %v1783
    %1837 = vmatpush.msra.mxu0 %v1782
    %1838 = vmatmul.f32.gmra.mxu0 %v1820
    %v1839 = vpop.f32.mrf.mxu0
    %v1840 = vadd.f32 %v1814, %v1839
    %1841 = vdwg.mxu0
    %v1843 = vrot.slane %v1840, 1
    %s1845 = scalar_lea.vmem %s47, 2
    %v1846 = vld [vmem:[%s1845] sm:$0x1]
    %v1847 = vadd.f32 %v1840, %v1846
    %v1848 = vadd.f32 %v1843, %v1846
    %vm1849 = vcmp.eq.s32.totalorder %v1688, 2
    %v1850 = vsel %vm1849, 1, 0
    %vm1851 = vcmp.eq.s32.totalorder %v1850, 1
    %v1854 = vperm.slane %v1847, 0
    %v1855 = vperm.slane %v1848, 0
    %v1858 = vsel %vm1851, %v1854, 0.0
    %v1859 = vsel %vm1851, %v1855, 0.0
    %v1860 = vadd.f32 %v1779, %v1858
    %v1861 = vadd.f32 %v1780, %v1859
    %s1862 = scalar_lea.vmem %s43, 48
    %v1863 = vld [vmem:[%s1862] sm:$0xff]
    %v1864 = vld [vmem:[%s1862 + $0x8] sm:$0xff]
    %s1865 = scalar_lea.vmem %s45, 48
    %v1866 = vld [vmem:[%s1865] sm:$0xff]
    %v1867 = vld [vmem:[%s1865 + $0x8] sm:$0x3]
    %1868 = vst [vmem:[#allocation1] ss:$9 sm:$0xff] %v1618
    %s1869 = scalar_lea.vmem [#allocation1], 1
    %1870 = vst [vmem:[%s1869] ss:$9 sm:$0xff] %v1619
    %v1871 = vld [vmem:[#allocation1] sm:$0xff]
    %v1872 = vsel %vm213, %v1871, 0
    %v1875 = vsel %vm377, %v1867, 0
    %1877 = vmatpush.msra.mxu0 0.0
    %1878 = vmatpush.msra.mxu0 0.0
    %1879 = vmatpush.msra.mxu0 0.0
    %1880 = vmatpush.msra.mxu0 0.0
    %1881 = vmatpush.msra.mxu0 0.0
    %1882 = vmatpush.msra.mxu0 0.0
    %1883 = vmatpush.msra.mxu0 0.0
    %1884 = vmatpush.msra.mxu0 0.0
    %1885 = vmatpush.msra.mxu0 0.0
    %1886 = vmatpush.msra.mxu0 0.0
    %1887 = vmatpush.msra.mxu0 0.0
    %1888 = vmatpush.msra.mxu0 0.0
    %1889 = vmatpush.msra.mxu0 0.0
    %1890 = vmatpush.msra.mxu0 0.0
    %1891 = vmatpush.msra.mxu0 %v1875
    %1892 = vmatpush.msra.mxu0 %v1866
    %1893 = vmatmul.f32.gmra.mxu0 %v1872
    %v1894 = vpop.f32.mrf.mxu0
    %v1895 = vadd.f32 0.0, %v1894
    %1896 = vdwg.mxu0
    %1897 = vst [vmem:[#allocation1] ss:$9 sm:$0xff] %v1614
    %s1898 = scalar_lea.vmem [#allocation1], 1
    %1899 = vst [vmem:[%s1898] ss:$9 sm:$0xff] %v1615
    %v1900 = vld [vmem:[#allocation1] sm:$0xff]
    %v1901 = vsel %vm857, %v1900, 0
    %1903 = vmatpush.msra.mxu0 0.0
    %1904 = vmatpush.msra.mxu0 0.0
    %1905 = vmatpush.msra.mxu0 0.0
    %1906 = vmatpush.msra.mxu0 0.0
    %1907 = vmatpush.msra.mxu0 0.0
    %1908 = vmatpush.msra.mxu0 0.0
    %1909 = vmatpush.msra.mxu0 0.0
    %1910 = vmatpush.msra.mxu0 0.0
    %1911 = vmatpush.msra.mxu0 0.0
    %1912 = vmatpush.msra.mxu0 0.0
    %1913 = vmatpush.msra.mxu0 0.0
    %1914 = vmatpush.msra.mxu0 0.0
    %1915 = vmatpush.msra.mxu0 0.0
    %1916 = vmatpush.msra.mxu0 0.0
    %1917 = vmatpush.msra.mxu0 %v1864
    %1918 = vmatpush.msra.mxu0 %v1863
    %1919 = vmatmul.f32.gmra.mxu0 %v1901
    %v1920 = vpop.f32.mrf.mxu0
    %v1921 = vadd.f32 %v1895, %v1920
    %1922 = vdwg.mxu0
    %v1924 = vrot.slane %v1921, 1
    %s1926 = scalar_lea.vmem %s47, 3
    %v1927 = vld [vmem:[%s1926] sm:$0x1]
    %v1928 = vadd.f32 %v1921, %v1927
    %v1929 = vadd.f32 %v1924, %v1927
    %vm1930 = vcmp.eq.s32.totalorder %v1688, 3
    %v1931 = vsel %vm1930, 1, 0
    %vm1932 = vcmp.eq.s32.totalorder %v1931, 1
    %v1935 = vperm.slane %v1928, 0
    %v1936 = vperm.slane %v1929, 0
    %v1939 = vsel %vm1932, %v1935, 0.0
    %v1940 = vsel %vm1932, %v1936, 0.0
    %v1941 = vadd.f32 %v1860, %v1939
    %v1942 = vadd.f32 %v1861, %v1940
    %v1943 = vld [vmem:[%s51] sm:$0xff]
    %v1944 = vld [vmem:[%s51 + $0x8] sm:$0xff]
    %v1945 = vld [vmem:[%s51 + $0x10] sm:$0xff]
    %v1946 = vld [vmem:[%s51 + $0x18] sm:$0xff]
    %v1947 = vld [vmem:[%s51 + $0x20] sm:$0xff]
    %v1948 = vld [vmem:[%s51 + $0x28] sm:$0xff]
    %v1949 = vld [vmem:[%s51 + $0x30] sm:$0xff]
    %v1950 = vld [vmem:[%s51 + $0x38] sm:$0xff]
    %v1951 = vld [vmem:[%s51 + $0x40] sm:$0xff]
    %v1952 = vld [vmem:[%s51 + $0x48] sm:$0xff]
    %v1953 = vld [vmem:[%s51 + $0x50] sm:$0xff]
    %v1954 = vld [vmem:[%s51 + $0x58] sm:$0xff]
    %v1955 = vld [vmem:[%s51 + $0x60] sm:$0xff]
    %v1956 = vld [vmem:[%s51 + $0x68] sm:$0xff]
    %v1957 = vld [vmem:[%s51 + $0x70] sm:$0xff]
    %v1958 = vld [vmem:[%s51 + $0x78] sm:$0xff]
    %1961 = vst [vmem:[#allocation1] ss:$2 sm:$0xff] %v1941
    %s1962 = scalar_lea.vmem [#allocation1], 1
    %1963 = vst [vmem:[%s1962] ss:$2 sm:$0xff] %v1942
    %v1964 = vld.sshfl [vmem:[#allocation1] sm:$0xff pattern:$0x75316420]
    %1966 = vmatpush.msra.mxu0 %v1958
    %1967 = vmatpush.msra.mxu0 %v1957
    %1968 = vmatpush.msra.mxu0 %v1956
    %1969 = vmatpush.msra.mxu0 %v1955
    %1970 = vmatpush.msra.mxu0 %v1954
    %1971 = vmatpush.msra.mxu0 %v1953
    %1972 = vmatpush.msra.mxu0 %v1952
    %1973 = vmatpush.msra.mxu0 %v1951
    %1974 = vmatpush.msra.mxu0 %v1950
    %1975 = vmatpush.msra.mxu0 %v1949
    %1976 = vmatpush.msra.mxu0 %v1948
    %1977 = vmatpush.msra.mxu0 %v1947
    %1978 = vmatpush.msra.mxu0 %v1946
    %1979 = vmatpush.msra.mxu0 %v1945
    %1980 = vmatpush.msra.mxu0 %v1944
    %1981 = vmatpush.msra.mxu0 %v1943
    %1982 = vmatmul.f32.gmra.mxu0 %v1964
    %v1983 = vpop.f32.mrf.mxu0
    %v1984 = vadd.f32 0.0, %v1983
    %1985 = vdwg.mxu0
    %v1987 = vrot.slane %v1984, 4
    %v1988 = vld [vmem:[%s49] sm:$0xff]
    %s1989 = scalar_lea.vmem %s51, 128
    %v1990 = vld [vmem:[%s1989] sm:$0xff]
    %v1991 = vld [vmem:[%s1989 + $0x8] sm:$0xff]
    %v1992 = vld [vmem:[%s1989 + $0x10] sm:$0xff]
    %v1993 = vld [vmem:[%s1989 + $0x18] sm:$0xff]
    %v1994 = vld [vmem:[%s1989 + $0x20] sm:$0xff]
    %v1995 = vld [vmem:[%s1989 + $0x28] sm:$0xff]
    %v1996 = vld [vmem:[%s1989 + $0x30] sm:$0xff]
    %v1997 = vld [vmem:[%s1989 + $0x38] sm:$0xff]
    %v1998 = vld [vmem:[%s1989 + $0x40] sm:$0xff]
    %v1999 = vld [vmem:[%s1989 + $0x48] sm:$0xff]
    %v2000 = vld [vmem:[%s1989 + $0x50] sm:$0xff]
    %v2001 = vld [vmem:[%s1989 + $0x58] sm:$0xff]
    %v2002 = vld [vmem:[%s1989 + $0x60] sm:$0xff]
    %v2003 = vld [vmem:[%s1989 + $0x68] sm:$0xff]
    %v2004 = vld [vmem:[%s1989 + $0x70] sm:$0xff]
    %v2005 = vld [vmem:[%s1989 + $0x78] sm:$0xff]
    %2006 = vst [vmem:[#allocation1] ss:$2 sm:$0xff] %v1941
    %s2007 = scalar_lea.vmem [#allocation1], 1
    %2008 = vst [vmem:[%s2007] ss:$2 sm:$0xff] %v1942
    %v2009 = vld.sshfl [vmem:[#allocation1] sm:$0xff pattern:$0x75316420]
    %2011 = vmatpush.msra.mxu0 %v2005
    %2012 = vmatpush.msra.mxu0 %v2004
    %2013 = vmatpush.msra.mxu0 %v2003
    %2014 = vmatpush.msra.mxu0 %v2002
    %2015 = vmatpush.msra.mxu0 %v2001
    %2016 = vmatpush.msra.mxu0 %v2000
    %2017 = vmatpush.msra.mxu0 %v1999
    %2018 = vmatpush.msra.mxu0 %v1998
    %2019 = vmatpush.msra.mxu0 %v1997
    %2020 = vmatpush.msra.mxu0 %v1996
    %2021 = vmatpush.msra.mxu0 %v1995
    %2022 = vmatpush.msra.mxu0 %v1994
    %2023 = vmatpush.msra.mxu0 %v1993
    %2024 = vmatpush.msra.mxu0 %v1992
    %2025 = vmatpush.msra.mxu0 %v1991
    %2026 = vmatpush.msra.mxu0 %v1990
    %2027 = vmatmul.f32.gmra.mxu0 %v2009
    %v2028 = vpop.f32.mrf.mxu0
    %v2029 = vadd.f32 0.0, %v2028
    %2030 = vdwg.mxu0
    %v2032 = vrot.slane %v2029, 4
    %s2033 = scalar_lea.vmem %s49, 8
    %v2034 = vld [vmem:[%s2033] sm:$0xff]
    %vm2035 = vcmask 31744
    %v2037 = vsel %vm2035, %v2034, 0
    %v2039 = vsel %vm1334, %v2029, 0
    %2041 = vmatpush.msra.mxu0 0.0
    %2042 = vmatpush.msra.mxu0 0.0
    %2043 = vmatpush.msra.mxu0 0.0
    %2044 = vmatpush.msra.mxu0 0.0
    %2045 = vmatpush.msra.mxu0 0.0
    %2046 = vmatpush.msra.mxu0 0.0
    %2047 = vmatpush.msra.mxu0 0.0
    %2048 = vmatpush.msra.mxu0 0.0
    %2049 = vmatpush.msra.mxu0 0.0
    %2050 = vmatpush.msra.mxu0 0.0
    %2051 = vmatpush.msra.mxu0 0.0
    %2052 = vmatpush.msra.mxu0 0.0
    %2053 = vmatpush.msra.mxu0 0.0
    %2054 = vmatpush.msra.mxu0 0.0
    %2055 = vmatpush.msra.mxu0 0.0
    %2056 = vmatpush.msra.mxu0 %v2039
    %2057 = vmatmul.f32.gmra.mxu0 %v2037
    %v2058 = vpop.f32.mrf.mxu0
    %v2059 = vadd.f32 0.0, %v2058
    %2060 = vdwg.mxu0
    %v2061 = vsel %vm1334, %v2032, 0
    %2063 = vmatpush.msra.mxu0 0.0
    %2064 = vmatpush.msra.mxu0 0.0
    %2065 = vmatpush.msra.mxu0 0.0
    %2066 = vmatpush.msra.mxu0 0.0
    %2067 = vmatpush.msra.mxu0 0.0
    %2068 = vmatpush.msra.mxu0 0.0
    %2069 = vmatpush.msra.mxu0 0.0
    %2070 = vmatpush.msra.mxu0 0.0
    %2071 = vmatpush.msra.mxu0 0.0
    %2072 = vmatpush.msra.mxu0 0.0
    %2073 = vmatpush.msra.mxu0 0.0
    %2074 = vmatpush.msra.mxu0 0.0
    %2075 = vmatpush.msra.mxu0 0.0
    %2076 = vmatpush.msra.mxu0 0.0
    %2077 = vmatpush.msra.mxu0 0.0
    %2078 = vmatpush.msra.mxu0 %v2061
    %2079 = vmatmul.f32.gmra.mxu0 %v2037
    %v2080 = vpop.f32.mrf.mxu0
    %v2081 = vadd.f32 0.0, %v2080
    %2082 = vdwg.mxu0
    %v2084 = vsel %vm2035, %v1988, 0
    %v2086 = vsel %vm1334, %v1984, 0
    %2088 = vmatpush.msra.mxu0 0.0
    %2089 = vmatpush.msra.mxu0 0.0
    %2090 = vmatpush.msra.mxu0 0.0
    %2091 = vmatpush.msra.mxu0 0.0
    %2092 = vmatpush.msra.mxu0 0.0
    %2093 = vmatpush.msra.mxu0 0.0
    %2094 = vmatpush.msra.mxu0 0.0
    %2095 = vmatpush.msra.mxu0 0.0
    %2096 = vmatpush.msra.mxu0 0.0
    %2097 = vmatpush.msra.mxu0 0.0
    %2098 = vmatpush.msra.mxu0 0.0
    %2099 = vmatpush.msra.mxu0 0.0
    %2100 = vmatpush.msra.mxu0 0.0
    %2101 = vmatpush.msra.mxu0 0.0
    %2102 = vmatpush.msra.mxu0 0.0
    %2103 = vmatpush.msra.mxu0 %v2086
    %2104 = vmatmul.f32.gmra.mxu0 %v2084
    %v2105 = vpop.f32.mrf.mxu0
    %v2106 = vadd.f32 %v2059, %v2105
    %2107 = vdwg.mxu0
    %v2108 = vsel %vm1334, %v1987, 0
    %2110 = vmatpush.msra.mxu0 0.0
    %2111 = vmatpush.msra.mxu0 0.0
    %2112 = vmatpush.msra.mxu0 0.0
    %2113 = vmatpush.msra.mxu0 0.0
    %2114 = vmatpush.msra.mxu0 0.0
    %2115 = vmatpush.msra.mxu0 0.0
    %2116 = vmatpush.msra.mxu0 0.0
    %2117 = vmatpush.msra.mxu0 0.0
    %2118 = vmatpush.msra.mxu0 0.0
    %2119 = vmatpush.msra.mxu0 0.0
    %2120 = vmatpush.msra.mxu0 0.0
    %2121 = vmatpush.msra.mxu0 0.0
    %2122 = vmatpush.msra.mxu0 0.0
    %2123 = vmatpush.msra.mxu0 0.0
    %2124 = vmatpush.msra.mxu0 0.0
    %2125 = vmatpush.msra.mxu0 %v2108
    %2126 = vmatmul.f32.gmra.mxu0 %v2084
    %v2127 = vpop.f32.mrf.mxu0
    %v2128 = vadd.f32 %v2081, %v2127
    %2129 = vdwg.mxu0
    %s2130 = scalar_lea.vmem %s51, 256
    %v2131 = vld [vmem:[%s2130] sm:$0xff]
    %v2132 = vld [vmem:[%s2130 + $0x8] sm:$0xff]
    %v2133 = vld [vmem:[%s2130 + $0x10] sm:$0xff]
    %v2134 = vld [vmem:[%s2130 + $0x18] sm:$0xff]
    %v2135 = vld [vmem:[%s2130 + $0x20] sm:$0xff]
    %v2136 = vld [vmem:[%s2130 + $0x28] sm:$0xff]
    %v2137 = vld [vmem:[%s2130 + $0x30] sm:$0xff]
    %v2138 = vld [vmem:[%s2130 + $0x38] sm:$0xff]
    %v2139 = vld [vmem:[%s2130 + $0x40] sm:$0xff]
    %v2140 = vld [vmem:[%s2130 + $0x48] sm:$0xff]
    %v2141 = vld [vmem:[%s2130 + $0x50] sm:$0xff]
    %v2142 = vld [vmem:[%s2130 + $0x58] sm:$0xff]
    %v2143 = vld [vmem:[%s2130 + $0x60] sm:$0xff]
    %v2144 = vld [vmem:[%s2130 + $0x68] sm:$0xff]
    %v2145 = vld [vmem:[%s2130 + $0x70] sm:$0xff]
    %v2146 = vld [vmem:[%s2130 + $0x78] sm:$0xff]
    %2147 = vst [vmem:[#allocation1] ss:$2 sm:$0xff] %v1941
    %s2148 = scalar_lea.vmem [#allocation1], 1
    %2149 = vst [vmem:[%s2148] ss:$2 sm:$0xff] %v1942
    %v2150 = vld.sshfl [vmem:[#allocation1] sm:$0xff pattern:$0x75316420]
    %2152 = vmatpush.msra.mxu0 %v2146
    %2153 = vmatpush.msra.mxu0 %v2145
    %2154 = vmatpush.msra.mxu0 %v2144
    %2155 = vmatpush.msra.mxu0 %v2143
    %2156 = vmatpush.msra.mxu0 %v2142
    %2157 = vmatpush.msra.mxu0 %v2141
    %2158 = vmatpush.msra.mxu0 %v2140
    %2159 = vmatpush.msra.mxu0 %v2139
    %2160 = vmatpush.msra.mxu0 %v2138
    %2161 = vmatpush.msra.mxu0 %v2137
    %2162 = vmatpush.msra.mxu0 %v2136
    %2163 = vmatpush.msra.mxu0 %v2135
    %2164 = vmatpush.msra.mxu0 %v2134
    %2165 = vmatpush.msra.mxu0 %v2133
    %2166 = vmatpush.msra.mxu0 %v2132
    %2167 = vmatpush.msra.mxu0 %v2131
    %2168 = vmatmul.f32.gmra.mxu0 %v2150
    %v2169 = vpop.f32.mrf.mxu0
    %v2170 = vadd.f32 0.0, %v2169
    %2171 = vdwg.mxu0
    %v2173 = vrot.slane %v2170, 4
    %s2174 = scalar_lea.vmem %s49, 16
    %v2175 = vld [vmem:[%s2174] sm:$0xff]
    %v2177 = vsel %vm2035, %v2175, 0
    %v2179 = vsel %vm1334, %v2170, 0
    %2181 = vmatpush.msra.mxu0 0.0
    %2182 = vmatpush.msra.mxu0 0.0
    %2183 = vmatpush.msra.mxu0 0.0
    %2184 = vmatpush.msra.mxu0 0.0
    %2185 = vmatpush.msra.mxu0 0.0
    %2186 = vmatpush.msra.mxu0 0.0
    %2187 = vmatpush.msra.mxu0 0.0
    %2188 = vmatpush.msra.mxu0 0.0
    %2189 = vmatpush.msra.mxu0 0.0
    %2190 = vmatpush.msra.mxu0 0.0
    %2191 = vmatpush.msra.mxu0 0.0
    %2192 = vmatpush.msra.mxu0 0.0
    %2193 = vmatpush.msra.mxu0 0.0
    %2194 = vmatpush.msra.mxu0 0.0
    %2195 = vmatpush.msra.mxu0 0.0
    %2196 = vmatpush.msra.mxu0 %v2179
    %2197 = vmatmul.f32.gmra.mxu0 %v2177
    %v2198 = vpop.f32.mrf.mxu0
    %v2199 = vadd.f32 0.0, %v2198
    %2200 = vdwg.mxu0
    %v2201 = vsel %vm1334, %v2173, 0
    %2203 = vmatpush.msra.mxu0 0.0
    %2204 = vmatpush.msra.mxu0 0.0
    %2205 = vmatpush.msra.mxu0 0.0
    %2206 = vmatpush.msra.mxu0 0.0
    %2207 = vmatpush.msra.mxu0 0.0
    %2208 = vmatpush.msra.mxu0 0.0
    %2209 = vmatpush.msra.mxu0 0.0
    %2210 = vmatpush.msra.mxu0 0.0
    %2211 = vmatpush.msra.mxu0 0.0
    %2212 = vmatpush.msra.mxu0 0.0
    %2213 = vmatpush.msra.mxu0 0.0
    %2214 = vmatpush.msra.mxu0 0.0
    %2215 = vmatpush.msra.mxu0 0.0
    %2216 = vmatpush.msra.mxu0 0.0
    %2217 = vmatpush.msra.mxu0 0.0
    %2218 = vmatpush.msra.mxu0 %v2201
    %2219 = vmatmul.f32.gmra.mxu0 %v2177
    %v2220 = vpop.f32.mrf.mxu0
    %v2221 = vadd.f32 0.0, %v2220
    %2222 = vdwg.mxu0
    %v2223 = vadd.f32 %v2106, %v2199
    %v2224 = vadd.f32 %v2128, %v2221
    %v2225 = vsel %vm1025, %v2223, 0.0
    %v2226 = vrot.slane %v2225, 4
    %v2227 = vadd.f32 %v2225, %v2226
    %v2228 = vrot.slane %v2227, 2
    %v2229 = vadd.f32 %v2227, %v2228
    %v2230 = vrot.slane %v2229, 1
    %v2231 = vadd.f32 %v2229, %v2230
    %v2232 = vsel %vm1025, %v2224, 0.0
    %v2233 = vrot.slane %v2232, 4
    %v2234 = vadd.f32 %v2232, %v2233
    %v2235 = vrot.slane %v2234, 2
    %v2236 = vadd.f32 %v2234, %v2235
    %v2237 = vrot.slane %v2236, 1
    %v2238 = vadd.f32 %v2236, %v2237
    %v2239 = vsel %vm1025, %v2231, 0.0
    %v2240 = vsel %vm1025, %v2238, 0.0
    %v2241 = vadd.f32 %v2239, %v2240
    %v2242 = vmul.f32 %v2241, 0.0625
    %v2243 = vsub.f32 %v2223, %v2242
    %v2244 = vsub.f32 %v2224, %v2242
    %v2245 = vmul.f32 %v2243, %v2243
    %v2246 = vmul.f32 %v2244, %v2244
    %v2247 = vsel %vm1025, %v2245, 0.0
    %v2248 = vrot.slane %v2247, 4
    %v2249 = vadd.f32 %v2247, %v2248
    %v2250 = vrot.slane %v2249, 2
    %v2251 = vadd.f32 %v2249, %v2250
    %v2252 = vrot.slane %v2251, 1
    %v2253 = vadd.f32 %v2251, %v2252
    %v2254 = vsel %vm1025, %v2246, 0.0
    %v2255 = vrot.slane %v2254, 4
    %v2256 = vadd.f32 %v2254, %v2255
    %v2257 = vrot.slane %v2256, 2
    %v2258 = vadd.f32 %v2256, %v2257
    %v2259 = vrot.slane %v2258, 1
    %v2260 = vadd.f32 %v2258, %v2259
    %v2261 = vsel %vm1025, %v2253, 0.0
    %v2262 = vsel %vm1025, %v2260, 0.0
    %v2263 = vadd.f32 %v2261, %v2262
    %v2264 = vld [vmem:[%s53] sm:$0x1]
    %v2265 = vmul.f32 %v2263, 0.0625
    %v2266 = vadd.f32 %v2265, 1e-05
    %v2267 = vrsqrt.pop %v2266
    %v2268 = vmul.f32 %v2267, %v2266
    %v2269 = vmul.f32 %v2268, %v2267
    %v2270 = vmul.f32 0.5, %v2269
    %v2271 = vsub.f32 1.5, %v2270
    %v2272 = vmul.f32 %v2267, %v2271
    %vm2273 = vweird.f32 %v2266
    %vm2274 = vweird.f32 %v2267
    %vm2275 = vmor %vm2273, %vm2274
    %v2276 = vsel %vm2275, %v2267, %v2272
    %v2277 = vmul.f32 %v2264, %v2276
    %v2279 = vperm.slane %v2277, 0
    %v2281 = vmul.f32 %v2243, %v2279
    %v2282 = vmul.f32 %v2244, %v2279
    %v2283 = vld [vmem:[%s55] sm:$0x1]
    %v2285 = vperm.slane %v2283, 0
    %v2287 = vadd.f32 %v2281, %v2285
    %v2288 = vadd.f32 %v2282, %v2285
    %vm2289 = vcmp.gt.f32.partialorder %v2287, 0.0
    %vm2290 = vcmp.gt.f32.partialorder %v2288, 0.0
    %v2291 = vmul.f32 %v2287, 0.01
    %v2292 = vmul.f32 %v2288, 0.01
    %v2293 = vsel %vm2289, %v2287, %v2291
    %v2294 = vsel %vm2290, %v2288, %v2292
    %v2295 = vld [vmem:[%s59] sm:$0xff]
    %v2296 = vld [vmem:[%s59 + $0x8] sm:$0xff]
    %v2297 = vld [vmem:[%s59 + $0x10] sm:$0xff]
    %v2298 = vld [vmem:[%s59 + $0x18] sm:$0xff]
    %v2299 = vld [vmem:[%s59 + $0x20] sm:$0xff]
    %v2300 = vld [vmem:[%s59 + $0x28] sm:$0xff]
    %v2301 = vld [vmem:[%s59 + $0x30] sm:$0xff]
    %v2302 = vld [vmem:[%s59 + $0x38] sm:$0xff]
    %v2304 = vsel %vm1025, %v2293, 0
    %v2307 = vsel %vm1025, %v2294, 0
    %2309 = vmatpush.msra.mxu0 0.0
    %2310 = vmatpush.msra.mxu0 0.0
    %2311 = vmatpush.msra.mxu0 0.0
    %2312 = vmatpush.msra.mxu0 0.0
    %2313 = vmatpush.msra.mxu0 0.0
    %2314 = vmatpush.msra.mxu0 0.0
    %2315 = vmatpush.msra.mxu0 0.0
    %2316 = vmatpush.msra.mxu0 0.0
    %2317 = vmatpush.msra.mxu0 %v2302
    %2318 = vmatpush.msra.mxu0 %v2301
    %2319 = vmatpush.msra.mxu0 %v2300
    %2320 = vmatpush.msra.mxu0 %v2299
    %2321 = vmatpush.msra.mxu0 %v2298
    %2322 = vmatpush.msra.mxu0 %v2297
    %2323 = vmatpush.msra.mxu0 %v2296
    %2324 = vmatpush.msra.mxu0 %v2295
    %2325 = vmatmul.f32.gmra.mxu0 %v2304
    %v2326 = vpop.f32.mrf.mxu0
    %v2327 = vadd.f32 0.0, %v2326
    %2328 = vmatmul.f32.gmra.mxu0 %v2307
    %v2329 = vpop.f32.mrf.mxu0
    %v2330 = vadd.f32 0.0, %v2329
    %2331 = vdwg.mxu0
    %v2332 = vld [vmem:[%s57] sm:$0xff]
    %v2333 = vld [vmem:[%s57 + $0x8] sm:$0xff]
    %s2334 = scalar_lea.vmem %s59, 64
    %v2335 = vld [vmem:[%s2334] sm:$0xff]
    %v2336 = vld [vmem:[%s2334 + $0x8] sm:$0xff]
    %v2337 = vld [vmem:[%s2334 + $0x10] sm:$0xff]
    %v2338 = vld [vmem:[%s2334 + $0x18] sm:$0xff]
    %v2339 = vld [vmem:[%s2334 + $0x20] sm:$0xff]
    %v2340 = vld [vmem:[%s2334 + $0x28] sm:$0xff]
    %v2341 = vld [vmem:[%s2334 + $0x30] sm:$0xff]
    %v2342 = vld [vmem:[%s2334 + $0x38] sm:$0xff]
    %2343 = vmatpush.msra.mxu0 0.0
    %2344 = vmatpush.msra.mxu0 0.0
    %2345 = vmatpush.msra.mxu0 0.0
    %2346 = vmatpush.msra.mxu0 0.0
    %2347 = vmatpush.msra.mxu0 0.0
    %2348 = vmatpush.msra.mxu0 0.0
    %2349 = vmatpush.msra.mxu0 0.0
    %2350 = vmatpush.msra.mxu0 0.0
    %2351 = vmatpush.msra.mxu0 %v2342
    %2352 = vmatpush.msra.mxu0 %v2341
    %2353 = vmatpush.msra.mxu0 %v2340
    %2354 = vmatpush.msra.mxu0 %v2339
    %2355 = vmatpush.msra.mxu0 %v2338
    %2356 = vmatpush.msra.mxu0 %v2337
    %2357 = vmatpush.msra.mxu0 %v2336
    %2358 = vmatpush.msra.mxu0 %v2335
    %2359 = vmatmul.f32.gmra.mxu0 %v2304
    %v2360 = vpop.f32.mrf.mxu0
    %v2361 = vadd.f32 0.0, %v2360
    %2362 = vmatmul.f32.gmra.mxu0 %v2307
    %v2363 = vpop.f32.mrf.mxu0
    %v2364 = vadd.f32 0.0, %v2363
    %2365 = vdwg.mxu0
    %s2366 = scalar_lea.vmem %s57, 16
    %v2367 = vld [vmem:[%s2366] sm:$0xff]
    %v2368 = vld [vmem:[%s2366 + $0x8] sm:$0xff]
    %v2370 = vsel %vm1168, %v2367, 0
    %v2373 = vsel %vm1168, %v2368, 0
    %2375 = vmatpush.msra.mxu0 0.0
    %2376 = vmatpush.msra.mxu0 0.0
    %2377 = vmatpush.msra.mxu0 0.0
    %2378 = vmatpush.msra.mxu0 0.0
    %2379 = vmatpush.msra.mxu0 0.0
    %2380 = vmatpush.msra.mxu0 0.0
    %2381 = vmatpush.msra.mxu0 0.0
    %2382 = vmatpush.msra.mxu0 0.0
    %2383 = vmatpush.msra.mxu0 0.0
    %2384 = vmatpush.msra.mxu0 0.0
    %2385 = vmatpush.msra.mxu0 0.0
    %2386 = vmatpush.msra.mxu0 0.0
    %2387 = vmatpush.msra.mxu0 0.0
    %2388 = vmatpush.msra.mxu0 0.0
    %2389 = vmatpush.msra.mxu0 0.0
    %2390 = vmatpush.msra.mxu0 %v2361
    %2391 = vmatmul.f32.gmra.mxu0 %v2370
    %v2392 = vpop.f32.mrf.mxu0
    %v2393 = vadd.f32 0.0, %v2392
    %2394 = vmatmul.f32.gmra.mxu0 %v2373
    %v2395 = vpop.f32.mrf.mxu0
    %v2396 = vadd.f32 0.0, %v2395
    %2397 = vdwg.mxu0
    %2398 = vmatpush.msra.mxu0 0.0
    %2399 = vmatpush.msra.mxu0 0.0
    %2400 = vmatpush.msra.mxu0 0.0
    %2401 = vmatpush.msra.mxu0 0.0
    %2402 = vmatpush.msra.mxu0 0.0
    %2403 = vmatpush.msra.mxu0 0.0
    %2404 = vmatpush.msra.mxu0 0.0
    %2405 = vmatpush.msra.mxu0 0.0
    %2406 = vmatpush.msra.mxu0 0.0
    %2407 = vmatpush.msra.mxu0 0.0
    %2408 = vmatpush.msra.mxu0 0.0
    %2409 = vmatpush.msra.mxu0 0.0
    %2410 = vmatpush.msra.mxu0 0.0
    %2411 = vmatpush.msra.mxu0 0.0
    %2412 = vmatpush.msra.mxu0 0.0
    %2413 = vmatpush.msra.mxu0 %v2364
    %2414 = vmatmul.f32.gmra.mxu0 %v2370
    %v2415 = vpop.f32.mrf.mxu0
    %v2416 = vadd.f32 0.0, %v2415
    %2417 = vmatmul.f32.gmra.mxu0 %v2373
    %v2418 = vpop.f32.mrf.mxu0
    %v2419 = vadd.f32 0.0, %v2418
    %2420 = vdwg.mxu0
    %v2422 = vsel %vm1168, %v2332, 0
    %v2425 = vsel %vm1168, %v2333, 0
    %2427 = vmatpush.msra.mxu0 0.0
    %2428 = vmatpush.msra.mxu0 0.0
    %2429 = vmatpush.msra.mxu0 0.0
    %2430 = vmatpush.msra.mxu0 0.0
    %2431 = vmatpush.msra.mxu0 0.0
    %2432 = vmatpush.msra.mxu0 0.0
    %2433 = vmatpush.msra.mxu0 0.0
    %2434 = vmatpush.msra.mxu0 0.0
    %2435 = vmatpush.msra.mxu0 0.0
    %2436 = vmatpush.msra.mxu0 0.0
    %2437 = vmatpush.msra.mxu0 0.0
    %2438 = vmatpush.msra.mxu0 0.0
    %2439 = vmatpush.msra.mxu0 0.0
    %2440 = vmatpush.msra.mxu0 0.0
    %2441 = vmatpush.msra.mxu0 0.0
    %2442 = vmatpush.msra.mxu0 %v2327
    %2443 = vmatmul.f32.gmra.mxu0 %v2422
    %v2444 = vpop.f32.mrf.mxu0
    %v2445 = vadd.f32 %v2393, %v2444
    %2446 = vmatmul.f32.gmra.mxu0 %v2425
    %v2447 = vpop.f32.mrf.mxu0
    %v2448 = vadd.f32 %v2396, %v2447
    %2449 = vdwg.mxu0
    %2450 = vmatpush.msra.mxu0 0.0
    %2451 = vmatpush.msra.mxu0 0.0
    %2452 = vmatpush.msra.mxu0 0.0
    %2453 = vmatpush.msra.mxu0 0.0
    %2454 = vmatpush.msra.mxu0 0.0
    %2455 = vmatpush.msra.mxu0 0.0
    %2456 = vmatpush.msra.mxu0 0.0
    %2457 = vmatpush.msra.mxu0 0.0
    %2458 = vmatpush.msra.mxu0 0.0
    %2459 = vmatpush.msra.mxu0 0.0
    %2460 = vmatpush.msra.mxu0 0.0
    %2461 = vmatpush.msra.mxu0 0.0
    %2462 = vmatpush.msra.mxu0 0.0
    %2463 = vmatpush.msra.mxu0 0.0
    %2464 = vmatpush.msra.mxu0 0.0
    %2465 = vmatpush.msra.mxu0 %v2330
    %2466 = vmatmul.f32.gmra.mxu0 %v2422
    %v2467 = vpop.f32.mrf.mxu0
    %v2468 = vadd.f32 %v2416, %v2467
    %2469 = vmatmul.f32.gmra.mxu0 %v2425
    %v2470 = vpop.f32.mrf.mxu0
    %v2471 = vadd.f32 %v2419, %v2470
    %2472 = vdwg.mxu0
    %s2473 = scalar_lea.vmem %s59, 128
    %v2474 = vld [vmem:[%s2473] sm:$0xff]
    %v2475 = vld [vmem:[%s2473 + $0x8] sm:$0xff]
    %v2476 = vld [vmem:[%s2473 + $0x10] sm:$0xff]
    %v2477 = vld [vmem:[%s2473 + $0x18] sm:$0xff]
    %v2478 = vld [vmem:[%s2473 + $0x20] sm:$0xff]
    %v2479 = vld [vmem:[%s2473 + $0x28] sm:$0xff]
    %v2480 = vld [vmem:[%s2473 + $0x30] sm:$0xff]
    %v2481 = vld [vmem:[%s2473 + $0x38] sm:$0xff]
    %2482 = vmatpush.msra.mxu0 0.0
    %2483 = vmatpush.msra.mxu0 0.0
    %2484 = vmatpush.msra.mxu0 0.0
    %2485 = vmatpush.msra.mxu0 0.0
    %2486 = vmatpush.msra.mxu0 0.0
    %2487 = vmatpush.msra.mxu0 0.0
    %2488 = vmatpush.msra.mxu0 0.0
    %2489 = vmatpush.msra.mxu0 0.0
    %2490 = vmatpush.msra.mxu0 %v2481
    %2491 = vmatpush.msra.mxu0 %v2480
    %2492 = vmatpush.msra.mxu0 %v2479
    %2493 = vmatpush.msra.mxu0 %v2478
    %2494 = vmatpush.msra.mxu0 %v2477
    %2495 = vmatpush.msra.mxu0 %v2476
    %2496 = vmatpush.msra.mxu0 %v2475
    %2497 = vmatpush.msra.mxu0 %v2474
    %2498 = vmatmul.f32.gmra.mxu0 %v2304
    %v2499 = vpop.f32.mrf.mxu0
    %v2500 = vadd.f32 0.0, %v2499
    %2501 = vmatmul.f32.gmra.mxu0 %v2307
    %v2502 = vpop.f32.mrf.mxu0
    %v2503 = vadd.f32 0.0, %v2502
    %2504 = vdwg.mxu0
    %s2505 = scalar_lea.vmem %s57, 32
    %v2506 = vld [vmem:[%s2505] sm:$0xff]
    %v2507 = vld [vmem:[%s2505 + $0x8] sm:$0xff]
    %v2509 = vsel %vm1168, %v2506, 0
    %v2512 = vsel %vm1168, %v2507, 0
    %2514 = vmatpush.msra.mxu0 0.0
    %2515 = vmatpush.msra.mxu0 0.0
    %2516 = vmatpush.msra.mxu0 0.0
    %2517 = vmatpush.msra.mxu0 0.0
    %2518 = vmatpush.msra.mxu0 0.0
    %2519 = vmatpush.msra.mxu0 0.0
    %2520 = vmatpush.msra.mxu0 0.0
    %2521 = vmatpush.msra.mxu0 0.0
    %2522 = vmatpush.msra.mxu0 0.0
    %2523 = vmatpush.msra.mxu0 0.0
    %2524 = vmatpush.msra.mxu0 0.0
    %2525 = vmatpush.msra.mxu0 0.0
    %2526 = vmatpush.msra.mxu0 0.0
    %2527 = vmatpush.msra.mxu0 0.0
    %2528 = vmatpush.msra.mxu0 0.0
    %2529 = vmatpush.msra.mxu0 %v2500
    %2530 = vmatmul.f32.gmra.mxu0 %v2509
    %v2531 = vpop.f32.mrf.mxu0
    %v2532 = vadd.f32 0.0, %v2531
    %2533 = vmatmul.f32.gmra.mxu0 %v2512
    %v2534 = vpop.f32.mrf.mxu0
    %v2535 = vadd.f32 0.0, %v2534
    %2536 = vdwg.mxu0
    %2537 = vmatpush.msra.mxu0 0.0
    %2538 = vmatpush.msra.mxu0 0.0
    %2539 = vmatpush.msra.mxu0 0.0
    %2540 = vmatpush.msra.mxu0 0.0
    %2541 = vmatpush.msra.mxu0 0.0
    %2542 = vmatpush.msra.mxu0 0.0
    %2543 = vmatpush.msra.mxu0 0.0
    %2544 = vmatpush.msra.mxu0 0.0
    %2545 = vmatpush.msra.mxu0 0.0
    %2546 = vmatpush.msra.mxu0 0.0
    %2547 = vmatpush.msra.mxu0 0.0
    %2548 = vmatpush.msra.mxu0 0.0
    %2549 = vmatpush.msra.mxu0 0.0
    %2550 = vmatpush.msra.mxu0 0.0
    %2551 = vmatpush.msra.mxu0 0.0
    %2552 = vmatpush.msra.mxu0 %v2503
    %2553 = vmatmul.f32.gmra.mxu0 %v2509
    %v2554 = vpop.f32.mrf.mxu0
    %v2555 = vadd.f32 0.0, %v2554
    %2556 = vmatmul.f32.gmra.mxu0 %v2512
    %v2557 = vpop.f32.mrf.mxu0
    %v2558 = vadd.f32 0.0, %v2557
    %2559 = vdwg.mxu0
    %v2560 = vadd.f32 %v2445, %v2532
    %v2561 = vadd.f32 %v2448, %v2535
    %v2562 = vadd.f32 %v2468, %v2555
    %v2563 = vadd.f32 %v2471, %v2558
    %v2564 = vsel %vm473, %v2560, 0.0
    %v2565 = vsel %vm473, %v2561, 0.0
    %v2566 = vadd.f32 %v2564, %v2565
    %v2567 = vrot.slane %v2566, 4
    %v2568 = vadd.f32 %v2566, %v2567
    %v2569 = vrot.slane %v2568, 2
    %v2570 = vadd.f32 %v2568, %v2569
    %v2571 = vrot.slane %v2570, 1
    %v2572 = vadd.f32 %v2570, %v2571
    %v2573 = vsel %vm473, %v2562, 0.0
    %v2574 = vsel %vm473, %v2563, 0.0
    %v2575 = vadd.f32 %v2573, %v2574
    %v2576 = vrot.slane %v2575, 4
    %v2577 = vadd.f32 %v2575, %v2576
    %v2578 = vrot.slane %v2577, 2
    %v2579 = vadd.f32 %v2577, %v2578
    %v2580 = vrot.slane %v2579, 1
    %v2581 = vadd.f32 %v2579, %v2580
    %v2582 = vsel %vm473, %v2572, 0.0
    %v2583 = vsel %vm473, %v2581, 0.0
    %v2584 = vadd.f32 %v2582, %v2583
    %v2585 = vmul.f32 %v2584, 0.03125
    %v2586 = vsub.f32 %v2560, %v2585
    %v2587 = vsub.f32 %v2561, %v2585
    %v2588 = vsub.f32 %v2562, %v2585
    %v2589 = vsub.f32 %v2563, %v2585
    %v2590 = vmul.f32 %v2586, %v2586
    %v2591 = vmul.f32 %v2587, %v2587
    %v2592 = vmul.f32 %v2588, %v2588
    %v2593 = vmul.f32 %v2589, %v2589
    %v2594 = vsel %vm473, %v2590, 0.0
    %v2595 = vsel %vm473, %v2591, 0.0
    %v2596 = vadd.f32 %v2594, %v2595
    %v2597 = vrot.slane %v2596, 4
    %v2598 = vadd.f32 %v2596, %v2597
    %v2599 = vrot.slane %v2598, 2
    %v2600 = vadd.f32 %v2598, %v2599
    %v2601 = vrot.slane %v2600, 1
    %v2602 = vadd.f32 %v2600, %v2601
    %v2603 = vsel %vm473, %v2592, 0.0
    %v2604 = vsel %vm473, %v2593, 0.0
    %v2605 = vadd.f32 %v2603, %v2604
    %v2606 = vrot.slane %v2605, 4
    %v2607 = vadd.f32 %v2605, %v2606
    %v2608 = vrot.slane %v2607, 2
    %v2609 = vadd.f32 %v2607, %v2608
    %v2610 = vrot.slane %v2609, 1
    %v2611 = vadd.f32 %v2609, %v2610
    %v2612 = vsel %vm473, %v2602, 0.0
    %v2613 = vsel %vm473, %v2611, 0.0
    %v2614 = vadd.f32 %v2612, %v2613
    %v2615 = vld [vmem:[%s61] sm:$0x1]
    %v2616 = vmul.f32 %v2614, 0.03125
    %v2617 = vadd.f32 %v2616, 1e-05
    %v2618 = vrsqrt.pop %v2617
    %v2619 = vmul.f32 %v2618, %v2617
    %v2620 = vmul.f32 %v2619, %v2618
    %v2621 = vmul.f32 0.5, %v2620
    %v2622 = vsub.f32 1.5, %v2621
    %v2623 = vmul.f32 %v2618, %v2622
    %vm2624 = vweird.f32 %v2617
    %vm2625 = vweird.f32 %v2618
    %vm2626 = vmor %vm2624, %vm2625
    %v2627 = vsel %vm2626, %v2618, %v2623
    %v2628 = vmul.f32 %v2615, %v2627
    %v2630 = vperm.slane %v2628, 0
    %v2632 = vmul.f32 %v2586, %v2630
    %v2633 = vmul.f32 %v2587, %v2630
    %v2634 = vmul.f32 %v2588, %v2630
    %v2635 = vmul.f32 %v2589, %v2630
    %v2636 = vld [vmem:[%s63] sm:$0x1]
    %v2638 = vperm.slane %v2636, 0
    %v2640 = vadd.f32 %v2632, %v2638
    %v2641 = vadd.f32 %v2633, %v2638
    %v2642 = vadd.f32 %v2634, %v2638
    %v2643 = vadd.f32 %v2635, %v2638
    %vm2644 = vcmp.gt.f32.partialorder %v2640, 0.0
    %vm2645 = vcmp.gt.f32.partialorder %v2641, 0.0
    %vm2646 = vcmp.gt.f32.partialorder %v2642, 0.0
    %vm2647 = vcmp.gt.f32.partialorder %v2643, 0.0
    %v2648 = vmul.f32 %v2640, 0.01
    %v2649 = vmul.f32 %v2641, 0.01
    %v2650 = vmul.f32 %v2642, 0.01
    %v2651 = vmul.f32 %v2643, 0.01
    %v2652 = vsel %vm2644, %v2640, %v2648
    %v2653 = vsel %vm2645, %v2641, %v2649
    %v2654 = vsel %vm2646, %v2642, %v2650
    %v2655 = vsel %vm2647, %v2643, %v2651
    %v2656 = vld [vmem:[%s67] sm:$0xff]
    %v2657 = vld [vmem:[%s67 + $0x8] sm:$0xff]
    %v2658 = vld [vmem:[%s67 + $0x10] sm:$0xff]
    %v2659 = vld [vmem:[%s67 + $0x18] sm:$0xff]
    %v2661 = vsel %vm473, %v2652, 0
    %v2664 = vsel %vm473, %v2653, 0
    %v2667 = vsel %vm473, %v2654, 0
    %v2670 = vsel %vm473, %v2655, 0
    %2672 = vmatpush.msra.mxu0 0.0
    %2673 = vmatpush.msra.mxu0 0.0
    %2674 = vmatpush.msra.mxu0 0.0
    %2675 = vmatpush.msra.mxu0 0.0
    %2676 = vmatpush.msra.mxu0 0.0
    %2677 = vmatpush.msra.mxu0 0.0
    %2678 = vmatpush.msra.mxu0 0.0
    %2679 = vmatpush.msra.mxu0 0.0
    %2680 = vmatpush.msra.mxu0 0.0
    %2681 = vmatpush.msra.mxu0 0.0
    %2682 = vmatpush.msra.mxu0 0.0
    %2683 = vmatpush.msra.mxu0 0.0
    %2684 = vmatpush.msra.mxu0 %v2659
    %2685 = vmatpush.msra.mxu0 %v2658
    %2686 = vmatpush.msra.mxu0 %v2657
    %2687 = vmatpush.msra.mxu0 %v2656
    %2688 = vmatmul.f32.gmra.mxu0 %v2661
    %v2689 = vpop.f32.mrf.mxu0
    %v2690 = vadd.f32 0.0, %v2689
    %2691 = vmatmul.f32.gmra.mxu0 %v2664
    %v2692 = vpop.f32.mrf.mxu0
    %v2693 = vadd.f32 0.0, %v2692
    %2694 = vmatmul.f32.gmra.mxu0 %v2667
    %v2695 = vpop.f32.mrf.mxu0
    %v2696 = vadd.f32 0.0, %v2695
    %2697 = vmatmul.f32.gmra.mxu0 %v2670
    %v2698 = vpop.f32.mrf.mxu0
    %v2699 = vadd.f32 0.0, %v2698
    %2700 = vdwg.mxu0
    %v2701 = vld [vmem:[%s65] sm:$0xff]
    %v2702 = vld [vmem:[%s65 + $0x8] sm:$0xff]
    %v2703 = vld [vmem:[%s65 + $0x10] sm:$0xff]
    %v2704 = vld [vmem:[%s65 + $0x18] sm:$0xff]
    %s2705 = scalar_lea.vmem %s67, 32
    %v2706 = vld [vmem:[%s2705] sm:$0xff]
    %v2707 = vld [vmem:[%s2705 + $0x8] sm:$0xff]
    %v2708 = vld [vmem:[%s2705 + $0x10] sm:$0xff]
    %v2709 = vld [vmem:[%s2705 + $0x18] sm:$0xff]
    %2710 = vmatpush.msra.mxu0 0.0
    %2711 = vmatpush.msra.mxu0 0.0
    %2712 = vmatpush.msra.mxu0 0.0
    %2713 = vmatpush.msra.mxu0 0.0
    %2714 = vmatpush.msra.mxu0 0.0
    %2715 = vmatpush.msra.mxu0 0.0
    %2716 = vmatpush.msra.mxu0 0.0
    %2717 = vmatpush.msra.mxu0 0.0
    %2718 = vmatpush.msra.mxu0 0.0
    %2719 = vmatpush.msra.mxu0 0.0
    %2720 = vmatpush.msra.mxu0 0.0
    %2721 = vmatpush.msra.mxu0 0.0
    %2722 = vmatpush.msra.mxu0 %v2709
    %2723 = vmatpush.msra.mxu0 %v2708
    %2724 = vmatpush.msra.mxu0 %v2707
    %2725 = vmatpush.msra.mxu0 %v2706
    %2726 = vmatmul.f32.gmra.mxu0 %v2661
    %v2727 = vpop.f32.mrf.mxu0
    %v2728 = vadd.f32 0.0, %v2727
    %2729 = vmatmul.f32.gmra.mxu0 %v2664
    %v2730 = vpop.f32.mrf.mxu0
    %v2731 = vadd.f32 0.0, %v2730
    %2732 = vmatmul.f32.gmra.mxu0 %v2667
    %v2733 = vpop.f32.mrf.mxu0
    %v2734 = vadd.f32 0.0, %v2733
    %2735 = vmatmul.f32.gmra.mxu0 %v2670
    %v2736 = vpop.f32.mrf.mxu0
    %v2737 = vadd.f32 0.0, %v2736
    %2738 = vdwg.mxu0
    %s2739 = scalar_lea.vmem %s65, 32
    %v2740 = vld [vmem:[%s2739] sm:$0xff]
    %v2741 = vld [vmem:[%s2739 + $0x8] sm:$0xff]
    %v2742 = vld [vmem:[%s2739 + $0x10] sm:$0xff]
    %v2743 = vld [vmem:[%s2739 + $0x18] sm:$0xff]
    %v2745 = vsel %vm857, %v2740, 0
    %v2748 = vsel %vm857, %v2741, 0
    %v2751 = vsel %vm857, %v2742, 0
    %v2754 = vsel %vm857, %v2743, 0
    %2756 = vmatpush.msra.mxu0 0.0
    %2757 = vmatpush.msra.mxu0 0.0
    %2758 = vmatpush.msra.mxu0 0.0
    %2759 = vmatpush.msra.mxu0 0.0
    %2760 = vmatpush.msra.mxu0 0.0
    %2761 = vmatpush.msra.mxu0 0.0
    %2762 = vmatpush.msra.mxu0 0.0
    %2763 = vmatpush.msra.mxu0 0.0
    %2764 = vmatpush.msra.mxu0 0.0
    %2765 = vmatpush.msra.mxu0 0.0
    %2766 = vmatpush.msra.mxu0 0.0
    %2767 = vmatpush.msra.mxu0 0.0
    %2768 = vmatpush.msra.mxu0 0.0
    %2769 = vmatpush.msra.mxu0 0.0
    %2770 = vmatpush.msra.mxu0 %v2731
    %2771 = vmatpush.msra.mxu0 %v2728
    %2772 = vmatmul.f32.gmra.mxu0 %v2745
    %v2773 = vpop.f32.mrf.mxu0
    %v2774 = vadd.f32 0.0, %v2773
    %2775 = vmatmul.f32.gmra.mxu0 %v2748
    %v2776 = vpop.f32.mrf.mxu0
    %v2777 = vadd.f32 0.0, %v2776
    %2778 = vmatmul.f32.gmra.mxu0 %v2751
    %v2779 = vpop.f32.mrf.mxu0
    %v2780 = vadd.f32 0.0, %v2779
    %2781 = vmatmul.f32.gmra.mxu0 %v2754
    %v2782 = vpop.f32.mrf.mxu0
    %v2783 = vadd.f32 0.0, %v2782
    %2784 = vdwg.mxu0
    %2785 = vmatpush.msra.mxu0 0.0
    %2786 = vmatpush.msra.mxu0 0.0
    %2787 = vmatpush.msra.mxu0 0.0
    %2788 = vmatpush.msra.mxu0 0.0
    %2789 = vmatpush.msra.mxu0 0.0
    %2790 = vmatpush.msra.mxu0 0.0
    %2791 = vmatpush.msra.mxu0 0.0
    %2792 = vmatpush.msra.mxu0 0.0
    %2793 = vmatpush.msra.mxu0 0.0
    %2794 = vmatpush.msra.mxu0 0.0
    %2795 = vmatpush.msra.mxu0 0.0
    %2796 = vmatpush.msra.mxu0 0.0
    %2797 = vmatpush.msra.mxu0 0.0
    %2798 = vmatpush.msra.mxu0 0.0
    %2799 = vmatpush.msra.mxu0 %v2737
    %2800 = vmatpush.msra.mxu0 %v2734
    %2801 = vmatmul.f32.gmra.mxu0 %v2745
    %v2802 = vpop.f32.mrf.mxu0
    %v2803 = vadd.f32 0.0, %v2802
    %2804 = vmatmul.f32.gmra.mxu0 %v2748
    %v2805 = vpop.f32.mrf.mxu0
    %v2806 = vadd.f32 0.0, %v2805
    %2807 = vmatmul.f32.gmra.mxu0 %v2751
    %v2808 = vpop.f32.mrf.mxu0
    %v2809 = vadd.f32 0.0, %v2808
    %2810 = vmatmul.f32.gmra.mxu0 %v2754
    %v2811 = vpop.f32.mrf.mxu0
    %v2812 = vadd.f32 0.0, %v2811
    %2813 = vdwg.mxu0
    %v2815 = vsel %vm857, %v2701, 0
    %v2818 = vsel %vm857, %v2702, 0
    %v2821 = vsel %vm857, %v2703, 0
    %v2824 = vsel %vm857, %v2704, 0
    %2826 = vmatpush.msra.mxu0 0.0
    %2827 = vmatpush.msra.mxu0 0.0
    %2828 = vmatpush.msra.mxu0 0.0
    %2829 = vmatpush.msra.mxu0 0.0
    %2830 = vmatpush.msra.mxu0 0.0
    %2831 = vmatpush.msra.mxu0 0.0
    %2832 = vmatpush.msra.mxu0 0.0
    %2833 = vmatpush.msra.mxu0 0.0
    %2834 = vmatpush.msra.mxu0 0.0
    %2835 = vmatpush.msra.mxu0 0.0
    %2836 = vmatpush.msra.mxu0 0.0
    %2837 = vmatpush.msra.mxu0 0.0
    %2838 = vmatpush.msra.mxu0 0.0
    %2839 = vmatpush.msra.mxu0 0.0
    %2840 = vmatpush.msra.mxu0 %v2693
    %2841 = vmatpush.msra.mxu0 %v2690
    %2842 = vmatmul.f32.gmra.mxu0 %v2815
    %v2843 = vpop.f32.mrf.mxu0
    %v2844 = vadd.f32 %v2774, %v2843
    %2845 = vmatmul.f32.gmra.mxu0 %v2818
    %v2846 = vpop.f32.mrf.mxu0
    %v2847 = vadd.f32 %v2777, %v2846
    %2848 = vmatmul.f32.gmra.mxu0 %v2821
    %v2849 = vpop.f32.mrf.mxu0
    %v2850 = vadd.f32 %v2780, %v2849
    %2851 = vmatmul.f32.gmra.mxu0 %v2824
    %v2852 = vpop.f32.mrf.mxu0
    %v2853 = vadd.f32 %v2783, %v2852
    %2854 = vdwg.mxu0
    %2855 = vmatpush.msra.mxu0 0.0
    %2856 = vmatpush.msra.mxu0 0.0
    %2857 = vmatpush.msra.mxu0 0.0
    %2858 = vmatpush.msra.mxu0 0.0
    %2859 = vmatpush.msra.mxu0 0.0
    %2860 = vmatpush.msra.mxu0 0.0
    %2861 = vmatpush.msra.mxu0 0.0
    %2862 = vmatpush.msra.mxu0 0.0
    %2863 = vmatpush.msra.mxu0 0.0
    %2864 = vmatpush.msra.mxu0 0.0
    %2865 = vmatpush.msra.mxu0 0.0
    %2866 = vmatpush.msra.mxu0 0.0
    %2867 = vmatpush.msra.mxu0 0.0
    %2868 = vmatpush.msra.mxu0 0.0
    %2869 = vmatpush.msra.mxu0 %v2699
    %2870 = vmatpush.msra.mxu0 %v2696
    %2871 = vmatmul.f32.gmra.mxu0 %v2815
    %v2872 = vpop.f32.mrf.mxu0
    %v2873 = vadd.f32 %v2803, %v2872
    %2874 = vmatmul.f32.gmra.mxu0 %v2818
    %v2875 = vpop.f32.mrf.mxu0
    %v2876 = vadd.f32 %v2806, %v2875
    %2877 = vmatmul.f32.gmra.mxu0 %v2821
    %v2878 = vpop.f32.mrf.mxu0
    %v2879 = vadd.f32 %v2809, %v2878
    %2880 = vmatmul.f32.gmra.mxu0 %v2824
    %v2881 = vpop.f32.mrf.mxu0
    %v2882 = vadd.f32 %v2812, %v2881
    %2883 = vdwg.mxu0
    %s2884 = scalar_lea.vmem %s67, 64
    %v2885 = vld [vmem:[%s2884] sm:$0xff]
    %v2886 = vld [vmem:[%s2884 + $0x8] sm:$0xff]
    %v2887 = vld [vmem:[%s2884 + $0x10] sm:$0xff]
    %v2888 = vld [vmem:[%s2884 + $0x18] sm:$0xff]
    %2889 = vmatpush.msra.mxu0 0.0
    %2890 = vmatpush.msra.mxu0 0.0
    %2891 = vmatpush.msra.mxu0 0.0
    %2892 = vmatpush.msra.mxu0 0.0
    %2893 = vmatpush.msra.mxu0 0.0
    %2894 = vmatpush.msra.mxu0 0.0
    %2895 = vmatpush.msra.mxu0 0.0
    %2896 = vmatpush.msra.mxu0 0.0
    %2897 = vmatpush.msra.mxu0 0.0
    %2898 = vmatpush.msra.mxu0 0.0
    %2899 = vmatpush.msra.mxu0 0.0
    %2900 = vmatpush.msra.mxu0 0.0
    %2901 = vmatpush.msra.mxu0 %v2888
    %2902 = vmatpush.msra.mxu0 %v2887
    %2903 = vmatpush.msra.mxu0 %v2886
    %2904 = vmatpush.msra.mxu0 %v2885
    %2905 = vmatmul.f32.gmra.mxu0 %v2661
    %v2906 = vpop.f32.mrf.mxu0
    %v2907 = vadd.f32 0.0, %v2906
    %2908 = vmatmul.f32.gmra.mxu0 %v2664
    %v2909 = vpop.f32.mrf.mxu0
    %v2910 = vadd.f32 0.0, %v2909
    %2911 = vmatmul.f32.gmra.mxu0 %v2667
    %v2912 = vpop.f32.mrf.mxu0
    %v2913 = vadd.f32 0.0, %v2912
    %2914 = vmatmul.f32.gmra.mxu0 %v2670
    %v2915 = vpop.f32.mrf.mxu0
    %v2916 = vadd.f32 0.0, %v2915
    %2917 = vdwg.mxu0
    %s2918 = scalar_lea.vmem %s65, 64
    %v2919 = vld [vmem:[%s2918] sm:$0xff]
    %v2920 = vld [vmem:[%s2918 + $0x8] sm:$0xff]
    %v2921 = vld [vmem:[%s2918 + $0x10] sm:$0xff]
    %v2922 = vld [vmem:[%s2918 + $0x18] sm:$0xff]
    %v2924 = vsel %vm857, %v2919, 0
    %v2927 = vsel %vm857, %v2920, 0
    %v2930 = vsel %vm857, %v2921, 0
    %v2933 = vsel %vm857, %v2922, 0
    %2935 = vmatpush.msra.mxu0 0.0
    %2936 = vmatpush.msra.mxu0 0.0
    %2937 = vmatpush.msra.mxu0 0.0
    %2938 = vmatpush.msra.mxu0 0.0
    %2939 = vmatpush.msra.mxu0 0.0
    %2940 = vmatpush.msra.mxu0 0.0
    %2941 = vmatpush.msra.mxu0 0.0
    %2942 = vmatpush.msra.mxu0 0.0
    %2943 = vmatpush.msra.mxu0 0.0
    %2944 = vmatpush.msra.mxu0 0.0
    %2945 = vmatpush.msra.mxu0 0.0
    %2946 = vmatpush.msra.mxu0 0.0
    %2947 = vmatpush.msra.mxu0 0.0
    %2948 = vmatpush.msra.mxu0 0.0
    %2949 = vmatpush.msra.mxu0 %v2910
    %2950 = vmatpush.msra.mxu0 %v2907
    %2951 = vmatmul.f32.gmra.mxu0 %v2924
    %v2952 = vpop.f32.mrf.mxu0
    %v2953 = vadd.f32 0.0, %v2952
    %2954 = vmatmul.f32.gmra.mxu0 %v2927
    %v2955 = vpop.f32.mrf.mxu0
    %v2956 = vadd.f32 0.0, %v2955
    %2957 = vmatmul.f32.gmra.mxu0 %v2930
    %v2958 = vpop.f32.mrf.mxu0
    %v2959 = vadd.f32 0.0, %v2958
    %2960 = vmatmul.f32.gmra.mxu0 %v2933
    %v2961 = vpop.f32.mrf.mxu0
    %v2962 = vadd.f32 0.0, %v2961
    %2963 = vdwg.mxu0
    %2964 = vmatpush.msra.mxu0 0.0
    %2965 = vmatpush.msra.mxu0 0.0
    %2966 = vmatpush.msra.mxu0 0.0
    %2967 = vmatpush.msra.mxu0 0.0
    %2968 = vmatpush.msra.mxu0 0.0
    %2969 = vmatpush.msra.mxu0 0.0
    %2970 = vmatpush.msra.mxu0 0.0
    %2971 = vmatpush.msra.mxu0 0.0
    %2972 = vmatpush.msra.mxu0 0.0
    %2973 = vmatpush.msra.mxu0 0.0
    %2974 = vmatpush.msra.mxu0 0.0
    %2975 = vmatpush.msra.mxu0 0.0
    %2976 = vmatpush.msra.mxu0 0.0
    %2977 = vmatpush.msra.mxu0 0.0
    %2978 = vmatpush.msra.mxu0 %v2916
    %2979 = vmatpush.msra.mxu0 %v2913
    %2980 = vmatmul.f32.gmra.mxu0 %v2924
    %v2981 = vpop.f32.mrf.mxu0
    %v2982 = vadd.f32 0.0, %v2981
    %2983 = vmatmul.f32.gmra.mxu0 %v2927
    %v2984 = vpop.f32.mrf.mxu0
    %v2985 = vadd.f32 0.0, %v2984
    %2986 = vmatmul.f32.gmra.mxu0 %v2930
    %v2987 = vpop.f32.mrf.mxu0
    %v2988 = vadd.f32 0.0, %v2987
    %2989 = vmatmul.f32.gmra.mxu0 %v2933
    %v2990 = vpop.f32.mrf.mxu0
    %v2991 = vadd.f32 0.0, %v2990
    %2992 = vdwg.mxu0
    %v2993 = vadd.f32 %v2844, %v2953
    %v2994 = vadd.f32 %v2847, %v2956
    %v2995 = vadd.f32 %v2850, %v2959
    %v2996 = vadd.f32 %v2853, %v2962
    %v2997 = vadd.f32 %v2873, %v2982
    %v2998 = vadd.f32 %v2876, %v2985
    %v2999 = vadd.f32 %v2879, %v2988
    %v3000 = vadd.f32 %v2882, %v2991
    %v3001 = vld [vmem:[#allocation4] sm:$0x1]
    %v3003 = vperm.slane %v3001, 0
    %v3005 = vadd.f32 %v2993, %v3003
    %v3006 = vadd.f32 %v2994, %v3003
    %v3007 = vadd.f32 %v2995, %v3003
    %v3008 = vadd.f32 %v2996, %v3003
    %v3009 = vadd.f32 %v2997, %v3003
    %v3010 = vadd.f32 %v2998, %v3003
    %v3011 = vadd.f32 %v2999, %v3003
    %v3012 = vadd.f32 %v3000, %v3003
    %vm3013 = vcmask 7168
    %3014 = vst.msk [vmem:[%s77] sm:$0xff] %vm3013, %v3005
    %3015 = vst.msk [vmem:[%s77 + $0x8] sm:$0xff] %vm3013, %v3006
    %3016 = vst.msk [vmem:[%s77 + $0x10] sm:$0xff] %vm3013, %v3007
    %3017 = vst.msk [vmem:[%s77 + $0x18] sm:$0xff] %vm3013, %v3008
    %3018 = vst.msk [vmem:[%s77 + $0x20] sm:$0xff] %vm3013, %v3009
    %3019 = vst.msk [vmem:[%s77 + $0x28] sm:$0xff] %vm3013, %v3010
    %3020 = vst.msk [vmem:[%s77 + $0x30] sm:$0xff] %vm3013, %v3011
    %3021 = vst.msk [vmem:[%s77 + $0x38] sm:$0xff] %vm3013, %v3012
    // Predicated region
    $region142: #{cvae_forward.1} parent=1 // pred_check
      _
    $region143: #{cvae_forward.1} parent=1 // pred_check_branch
      %3023 = sbr.rel (0) target = $region145
    $region144: #{cvae_forward.1} parent=1 // pred_region
      _
    $region145: #{cvae_forward.1} parent=1 // pred_fallthru
      _
    // Predicated region
    $region146: #{cvae_forward.1} parent=1 // pred_check
      _
    $region147: #{cvae_forward.1} parent=1 // pred_check_branch
      %3025 = sbr.rel (0) target = $region149
    $region148: #{cvae_forward.1} parent=1 // pred_region
      %3027 = vsyncadd [#allocation6], 0
      %s3028 = sshll.u32 [#allocation5], 4
      %s3029 = int_to_ptr.vmem [resolvable:$true] %s3028
      %s3030 = sshll.u32 %s73, 4
      %s3031 = int_to_ptr.hbm [resolvable:$true] %s3030
      %3036 = dma.vmem_to_hbm [thread:$0]  %s3029, 32, %s3031, [#allocation6], 16, 16, 1
    $region149: #{cvae_forward.1} parent=1 // pred_fallthru
      _
    // Predicated region
    $region150: #{cvae_forward.1} parent=1 // pred_check
      _
    $region151: #{cvae_forward.1} parent=1 // pred_check_branch
      %3038 = sbr.rel (0) target = $region153
    $region152: #{cvae_forward.1} parent=1 // pred_region
      %3040 = vsyncadd [#allocation8], 0
      %s3041 = sshll.u32 [#allocation7], 4
      %s3042 = int_to_ptr.vmem [resolvable:$true] %s3041
      %s3043 = sshll.u32 %s75, 4
      %s3044 = int_to_ptr.hbm [resolvable:$true] %s3043
      %3049 = dma.vmem_to_hbm [thread:$0]  %s3042, 32, %s3044, [#allocation8], 16, 16, 1
    $region153: #{cvae_forward.1} parent=1 // pred_fallthru
      _
    // Predicated region
    $region154: #{cvae_forward.1} parent=1 // pred_check
      _
    $region155: #{cvae_forward.1} parent=1 // pred_check_branch
      %3051 = sbr.rel (0) target = $region157
    $region156: #{cvae_forward.1} parent=1 // pred_region
      _
    $region157: #{cvae_forward.1} parent=1 // pred_fallthru
      _
    // Predicated region
    $region158: #{cvae_forward.1} parent=1 // pred_check
      _
    $region159: #{cvae_forward.1} parent=1 // pred_check_branch
      %3053 = sbr.rel (0) target = $region161
    $region160: #{cvae_forward.1} parent=1 // pred_region
      _
    $region161: #{cvae_forward.1} parent=1 // pred_fallthru
      _
    // Predicated region
    $region162: #{cvae_forward.1} parent=1 // pred_check
      _
    $region163: #{cvae_forward.1} parent=1 // pred_check_branch
      %3055 = sbr.rel (0) target = $region165
    $region164: #{cvae_forward.1} parent=1 // pred_region
      %3057 = dma.done [#allocation6], 32
    $region165: #{cvae_forward.1} parent=1 // pred_fallthru
      _
    // Predicated region
    $region166: #{cvae_forward.1} parent=1 // pred_check
      _
    $region167: #{cvae_forward.1} parent=1 // pred_check_branch
      %3059 = sbr.rel (0) target = $region169
    $region168: #{cvae_forward.1} parent=1 // pred_region
      %3061 = dma.done [#allocation8], 32
    $region169: #{cvae_forward.1} parent=1 // pred_fallthru
      _
    // Predicated region
    $region170: #{cvae_forward.1} parent=1 // pred_check
      _
    $region171: #{cvae_forward.1} parent=1 // pred_check_branch
      %3063 = sbr.rel (0) target = $region173
    $region172: #{cvae_forward.1} parent=1 // pred_region
      _
    $region173: #{cvae_forward.1} parent=1 // pred_fallthru
      _
    %3064 = vsyncpa [#allocation6], 1
    %3065 = vsyncpa [#allocation8], 1

</llo_original>
